<compile_context>
chip_gen: v7x
topology: tpu7x:2x2x1
jax: 0.10.0
libtpu: 0.0.40
codegen_flags: <defaults>
</compile_context>

<pallas_src>
import jax
import jax.numpy as jnp
import numpy as np
from jax.experimental import pallas as pl
from jax.experimental.pallas import tpu as pltpu

GP = 128   # padded per-gate / hidden lane width (one full vreg of lanes)
BP = 8     # padded batch (one sublane group)


# ---------------------------------------------------------------------------
# Fused Pallas kernel (factory: num_layers / seq_len are static)
# ---------------------------------------------------------------------------
def make_fused_lstm_kernel(num_layers, seq_len):
    """Kernel argument order:
         x (S*BP, I),
         [wih (in_pad, 4*GP) bf16, whh (GP, 4*GP) bf16, bias (1, 4*GP) f32] * L,
         dw1 (GP, GP) bf16, db1 (1, GP) f32, dw2 (GP, GP) bf16, db2 (1, GP) f32,
         o (S*BP, GP) f32,
         gpre scratch (S*BP, 4*GP) f32, hbuf scratch (S*BP, GP) f32
       Packed gate order inside the 4*GP axis is i, f, o, g (each GP lanes).
    """
    S = seq_len

    def kernel(*refs):
        x_ref = refs[0]
        layer_refs = refs[1:1 + 3 * num_layers]
        dw1_ref, db1_ref, dw2_ref, db2_ref = refs[1 + 3 * num_layers:
                                                  5 + 3 * num_layers]
        o_ref = refs[5 + 3 * num_layers]
        gpre_ref = refs[6 + 3 * num_layers]     # hoisted gate pre-activations
        hbuf_ref = refs[7 + 3 * num_layers]     # per-layer h sequence

        for l in range(num_layers):
            wih = layer_refs[3 * l + 0][...]     # bf16 (in_pad, 4*GP)
            whh = layer_refs[3 * l + 1][...]     # bf16 (GP, 4*GP)
            b = layer_refs[3 * l + 2][...]       # f32  (1, 4*GP)

            # Hoisted input projection for ALL timesteps (one big matmul),
            # combined bias folded in.  Only h @ W_hh stays on the serial path.
            inp = x_ref[...] if l == 0 else hbuf_ref[...]
            gpre_ref[...] = (jnp.dot(inp.astype(jnp.bfloat16), wih,
                                     preferred_element_type=jnp.float32) + b)

            h = jnp.zeros((BP, GP), jnp.float32)
            c = jnp.zeros((BP, GP), jnp.float32)
            # Statically unrolled recurrence: per step one (8,128)@(128,512)
            # bf16 matmul + full-vreg gate nonlinearities; h/c stay in vregs,
            # each h is stored once as an aligned (8,128) tile.
            for t in range(S):
                gates = gpre_ref[pl.ds(t * BP, BP), :] + jnp.dot(
                    h.astype(jnp.bfloat16), whh,
                    preferred_element_type=jnp.float32)           # (BP, 4*GP) f32
                sig = jax.nn.sigmoid(gates[:, :3 * GP])           # i | f | o
                i_g = sig[:, 0 * GP:1 * GP]
                f_g = sig[:, 1 * GP:2 * GP]
                o_g = sig[:, 2 * GP:3 * GP]
                g_g = jnp.tanh(gates[:, 3 * GP:4 * GP])
                c = f_g * c + i_g * g_g
                h = o_g * jnp.tanh(c)
                hbuf_ref[pl.ds(t * BP, BP), :] = h

        # Fused dense head: relu -> dense1 -> relu -> output (all 128-lane).
        a = jnp.maximum(hbuf_ref[...], 0.0)
        h1 = jnp.dot(a.astype(jnp.bfloat16), dw1_ref[...],
                     preferred_element_type=jnp.float32) + db1_ref[...]
        h1 = jnp.maximum(h1, 0.0)
        # Single, lane-dense output store (O padded to 128 lanes).
        o_ref[...] = jnp.dot(h1.astype(jnp.bfloat16), dw2_ref[...],
                             preferred_element_type=jnp.float32) + db2_ref[...]

    return kernel


# ---------------------------------------------------------------------------
# One-time parameter packing (gate-major, 128-lane-per-gate, bf16 weights)
# ---------------------------------------------------------------------------
def prepare_params(params, hidden_size, dense_size, output_size):
    H, D, O = hidden_size, dense_size, output_size
    order = (0, 1, 3, 2)   # PyTorch gate order i,f,g,o -> packed i,f,o,g

    def pack_w(w, in_pad):
        w_t = jnp.asarray(w, jnp.float32).T                     # (in, 4H)
        in_dim = w_t.shape[0]
        blocks = [jnp.pad(w_t[:, g * H:(g + 1) * H],
                          ((0, in_pad - in_dim), (0, GP - H))) for g in order]
        return jnp.concatenate(blocks, axis=1).astype(jnp.bfloat16)

    def pack_b(b):
        b = jnp.asarray(b, jnp.float32)
        blocks = [jnp.pad(b[g * H:(g + 1) * H], (0, GP - H)) for g in order]
        return jnp.concatenate(blocks).reshape(1, 4 * GP)

    args = []
    for li, layer in enumerate(params["lstm"]):
        in_dim = layer["w_ih"].shape[1]
        in_pad = in_dim if li == 0 else GP       # layer>0 input is padded h
        args.append(pack_w(layer["w_ih"], in_pad))          # (in_pad, 4*GP) bf16
        args.append(pack_w(layer["w_hh"], GP))               # (GP, 4*GP)     bf16
        args.append(pack_b(layer["b_ih"] + layer["b_hh"]))   # (1, 4*GP)      f32

    dw1 = jnp.pad(jnp.asarray(params["dense1_w"], jnp.float32).T,
                  ((0, GP - H), (0, GP - D))).astype(jnp.bfloat16)        # (GP, GP)
    db1 = jnp.pad(jnp.asarray(params["dense1_b"], jnp.float32),
                  (0, GP - D)).reshape(1, GP)                             # (1, GP)
    dw2 = jnp.pad(jnp.asarray(params["output_w"], jnp.float32).T,
                  ((0, GP - D), (0, GP - O))).astype(jnp.bfloat16)        # (GP, GP)
    db2 = jnp.pad(jnp.asarray(params["output_b"], jnp.float32),
                  (0, GP - O)).reshape(1, GP)                             # (1, GP)
    args += [dw1, db1, dw2, db2]
    return args


# ---------------------------------------------------------------------------
# Jitted forward wrapper (parameter packing hoisted out, done once)
# ---------------------------------------------------------------------------
def make_lstm_network_forward(params, seq_len, batch, input_size, hidden_size,
                              dense_size, output_size):
    num_layers = len(params["lstm"])
    prepped = prepare_params(params, hidden_size, dense_size, output_size)
    kern = make_fused_lstm_kernel(num_layers, seq_len)
    n_in = 1 + 3 * num_layers + 4
    S, B, I, O = seq_len, batch, input_size, output_size

    @jax.jit
    def fwd(x, *p):
        # Pad batch 2 -> 8 (one sublane group); padded rows are zero and
        # sliced off after the kernel.
        xp = jnp.zeros((S, BP, I), jnp.float32).at[:, :B, :].set(
            x.astype(jnp.float32)).reshape(S * BP, I)
        out = pl.pallas_call(
            kern,
            out_shape=jax.ShapeDtypeStruct((S * BP, GP), jnp.float32),
            in_specs=[pl.BlockSpec(memory_space=pltpu.MemorySpace.VMEM)] * n_in,
            out_specs=pl.BlockSpec(memory_space=pltpu.MemorySpace.VMEM),
            scratch_shapes=[
                pltpu.VMEM((S * BP, 4 * GP), jnp.float32),   # gate preacts
                pltpu.VMEM((S * BP, GP), jnp.float32),       # h sequence
            ],
        )(xp, *p)
        return out.reshape(S, BP, GP)[:, :B, :O]

    return lambda x: fwd(x, *prepped)


# ---------------------------------------------------------------------------
# Pure-JAX reference (correctness check, full f32)
# ---------------------------------------------------------------------------
def reference_forward(x, params):
    h_seq = x
    for layer in params["lstm"]:
        w_ih, w_hh = layer["w_ih"], layer["w_hh"]
        b = layer["b_ih"] + layer["b_hh"]
        H = w_hh.shape[1]
        B = x.shape[1]

        def step(carry, x_t):
            h, c = carry
            g = x_t @ w_ih.T + h @ w_hh.T + b
            i = jax.nn.sigmoid(g[:, :H])
            f = jax.nn.sigmoid(g[:, H:2 * H])
            gg = jnp.tanh(g[:, 2 * H:3 * H])
            o = jax.nn.sigmoid(g[:, 3 * H:])
            c_new = f * c + i * gg
            h_new = o * jnp.tanh(c_new)
            return (h_new, c_new), h_new

        init = (jnp.zeros((B, H), jnp.float32), jnp.zeros((B, H), jnp.float32))
        _, h_seq = jax.lax.scan(step, init, h_seq)
    a = jnp.maximum(h_seq, 0.0)
    d1 = jnp.maximum(a @ params["dense1_w"].T + params["dense1_b"], 0.0)
    return d1 @ params["output_w"].T + params["output_b"]


# ---------------------------------------------------------------------------
# Main
# ---------------------------------------------------------------------------
if __name__ == "__main__":
    # Small shapes consistent with the module's forward.
    input_size, hidden_size, num_layers = 16, 32, 2
    dense_size, output_size = 32, 4
    seq_len, batch = 8, 2

    key = jax.random.PRNGKey(0)

    def nxt():
        global key
        key, sub = jax.random.split(key)
        return sub

    scale = 1.0 / np.sqrt(hidden_size)
    lstm_params = []
    for layer in range(num_layers):
        in_sz = input_size if layer == 0 else hidden_size
        lstm_params.append(dict(
            w_ih=jax.random.uniform(nxt(), (4 * hidden_size, in_sz),
                                    jnp.float32, -scale, scale),
            w_hh=jax.random.uniform(nxt(), (4 * hidden_size, hidden_size),
                                    jnp.float32, -scale, scale),
            b_ih=jax.random.uniform(nxt(), (4 * hidden_size,),
                                    jnp.float32, -scale, scale),
            b_hh=jax.random.uniform(nxt(), (4 * hidden_size,),
                                    jnp.float32, -scale, scale),
        ))

    params = dict(
        lstm=lstm_params,
        dense1_w=jax.random.uniform(nxt(), (dense_size, hidden_size),
                                    jnp.float32, -scale, scale),
        dense1_b=jax.random.uniform(nxt(), (dense_size,), jnp.float32,
                                    -scale, scale),
        output_w=jax.random.uniform(nxt(), (output_size, dense_size),
                                    jnp.float32, -1.0 / np.sqrt(dense_size),
                                    1.0 / np.sqrt(dense_size)),
        output_b=jax.random.uniform(nxt(), (output_size,), jnp.float32,
                                    -1.0 / np.sqrt(dense_size),
                                    1.0 / np.sqrt(dense_size)),
    )

    # layout: (seq_len, batch, input_size) — PyTorch nn.LSTM default layout.
    x = jax.random.normal(nxt(), (seq_len, batch, input_size), jnp.float32)

    forward = make_lstm_network_forward(params, seq_len, batch, input_size,
                                        hidden_size, dense_size, output_size)
    out = forward(x)
    out = jax.block_until_ready(out)

    ref = reference_forward(x, params)
    assert out.shape == (seq_len, batch, output_size)
    # bf16 MXU operands (f32 accumulation/state) -> loosened tolerance.
    np.testing.assert_allclose(np.asarray(out), np.asarray(ref),
                               rtol=3e-2, atol=3e-2)

    print("KERNEL_OK")
</pallas_src>

<mosaic_0001>
module attributes {stable_mosaic.version = 11 : i64} {
  func.func @kernel(%arg0: memref<64x16xf32, #tpu.memory_space<vmem>>, %arg1: memref<16x512xbf16, #tpu.memory_space<vmem>>, %arg2: memref<128x512xbf16, #tpu.memory_space<vmem>>, %arg3: memref<1x512xf32, #tpu.memory_space<vmem>>, %arg4: memref<128x512xbf16, #tpu.memory_space<vmem>>, %arg5: memref<128x512xbf16, #tpu.memory_space<vmem>>, %arg6: memref<1x512xf32, #tpu.memory_space<vmem>>, %arg7: memref<128x128xbf16, #tpu.memory_space<vmem>>, %arg8: memref<1x128xf32, #tpu.memory_space<vmem>>, %arg9: memref<128x128xbf16, #tpu.memory_space<vmem>>, %arg10: memref<1x128xf32, #tpu.memory_space<vmem>>, %arg11: memref<64x128xf32, #tpu.memory_space<vmem>>, %arg12: memref<64x512xf32, #tpu.memory_space<vmem>>, %arg13: memref<64x128xf32, #tpu.memory_space<vmem>>) attributes {dimension_semantics = [], scalar_prefetch = 0 : i64, scratch_operands = 2 : i64, tpu.core_type = #tpu.core_type<tc>} {
    %c0 = arith.constant 0 : index
    %c0_0 = arith.constant 0 : index
    %0 = vector.load %arg1[%c0, %c0_0] : memref<16x512xbf16, #tpu.memory_space<vmem>>, vector<16x512xbf16>
    %c0_1 = arith.constant 0 : index
    %c0_2 = arith.constant 0 : index
    %1 = vector.load %arg2[%c0_1, %c0_2] : memref<128x512xbf16, #tpu.memory_space<vmem>>, vector<128x512xbf16>
    %c0_3 = arith.constant 0 : index
    %c0_4 = arith.constant 0 : index
    %2 = vector.load %arg3[%c0_3, %c0_4] : memref<1x512xf32, #tpu.memory_space<vmem>>, vector<1x512xf32>
    %c0_5 = arith.constant 0 : index
    %c0_6 = arith.constant 0 : index
    %3 = vector.load %arg0[%c0_5, %c0_6] : memref<64x16xf32, #tpu.memory_space<vmem>>, vector<64x16xf32>
    %4 = arith.truncf %3 : vector<64x16xf32> to vector<64x16xbf16>
    %cst = arith.constant dense<0.000000e+00> : vector<64x512xf32>
    %5 = tpu.matmul %4, %0, %cst {dimension_numbers = #tpu.dot_dimension_numbers<[1], [0], [0], [1], [0, 0, 1, 1], [], []>} : vector<64x16xbf16>, vector<16x512xbf16>, vector<64x512xf32> -> vector<64x512xf32>
    %6 = vector.broadcast %2 : vector<1x512xf32> to vector<64x512xf32>
    %7 = arith.addf %5, %6 : vector<64x512xf32>
    %c0_7 = arith.constant 0 : index
    %c0_8 = arith.constant 0 : index
    %8 = vector.load %arg12[%c0_7, %c0_8] : memref<64x512xf32, #tpu.memory_space<vmem>>, vector<64x512xf32>
    tpu.vector_store %arg12[%c0_7, %c0_8], %7 {strides = array<i32>} : memref<64x512xf32, #tpu.memory_space<vmem>>, vector<64x512xf32>,
    %cst_9 = arith.constant 0.000000e+00 : f32
    %9 = vector.broadcast %cst_9 : f32 to vector<8x128xf32>
    %cst_10 = arith.constant 0.000000e+00 : f32
    %10 = vector.broadcast %cst_10 : f32 to vector<8x128xf32>
    %c0_11 = arith.constant 0 : index
    %c0_12 = arith.constant 0 : index
    %11 = vector.load %arg12[%c0_11, %c0_12] : memref<64x512xf32, #tpu.memory_space<vmem>>, vector<8x512xf32>
    %12 = arith.truncf %9 : vector<8x128xf32> to vector<8x128xbf16>
    %cst_13 = arith.constant dense<0.000000e+00> : vector<8x512xf32>
    %13 = tpu.matmul %12, %1, %cst_13 {dimension_numbers = #tpu.dot_dimension_numbers<[1], [0], [0], [1], [0, 0, 1, 1], [], []>} : vector<8x128xbf16>, vector<128x512xbf16>, vector<8x512xf32> -> vector<8x512xf32>
    %14 = arith.addf %11, %13 : vector<8x512xf32>
    %15 = vector.extract_strided_slice %14 {offsets = [0, 0], sizes = [8, 384], strides = [1, 1]} : vector<8x512xf32> to vector<8x384xf32>
    %16 = arith.negf %15 : vector<8x384xf32>
    %17 = math.exp %16 : vector<8x384xf32>
    %cst_14 = arith.constant 1.000000e+00 : f32
    %18 = vector.broadcast %cst_14 : f32 to vector<8x384xf32>
    %19 = arith.addf %18, %17 : vector<8x384xf32>
    %20 = arith.divf %18, %19 : vector<8x384xf32>
    %21 = vector.extract_strided_slice %20 {offsets = [0, 0], sizes = [8, 128], strides = [1, 1]} : vector<8x384xf32> to vector<8x128xf32>
    %22 = vector.extract_strided_slice %20 {offsets = [0, 128], sizes = [8, 128], strides = [1, 1]} : vector<8x384xf32> to vector<8x128xf32>
    %23 = vector.extract_strided_slice %20 {offsets = [0, 256], sizes = [8, 128], strides = [1, 1]} : vector<8x384xf32> to vector<8x128xf32>
    %24 = vector.extract_strided_slice %14 {offsets = [0, 384], sizes = [8, 128], strides = [1, 1]} : vector<8x512xf32> to vector<8x128xf32>
    %25 = math.tanh %24 : vector<8x128xf32>
    %26 = arith.mulf %22, %10 : vector<8x128xf32>
    %27 = arith.mulf %21, %25 : vector<8x128xf32>
    %28 = arith.addf %26, %27 : vector<8x128xf32>
    %29 = math.tanh %28 : vector<8x128xf32>
    %30 = arith.mulf %23, %29 : vector<8x128xf32>
    %c0_15 = arith.constant 0 : index
    %c0_16 = arith.constant 0 : index
    %31 = vector.load %arg13[%c0_15, %c0_16] : memref<64x128xf32, #tpu.memory_space<vmem>>, vector<8x128xf32>
    tpu.vector_store %arg13[%c0_15, %c0_16], %30 {strides = array<i32>} : memref<64x128xf32, #tpu.memory_space<vmem>>, vector<8x128xf32>,
    %c8 = arith.constant 8 : index
    %c0_17 = arith.constant 0 : index
    %32 = vector.load %arg12[%c8, %c0_17] : memref<64x512xf32, #tpu.memory_space<vmem>>, vector<8x512xf32>
    %33 = arith.truncf %30 : vector<8x128xf32> to vector<8x128xbf16>
    %cst_18 = arith.constant dense<0.000000e+00> : vector<8x512xf32>
    %34 = tpu.matmul %33, %1, %cst_18 {dimension_numbers = #tpu.dot_dimension_numbers<[1], [0], [0], [1], [0, 0, 1, 1], [], []>} : vector<8x128xbf16>, vector<128x512xbf16>, vector<8x512xf32> -> vector<8x512xf32>
    %35 = arith.addf %32, %34 : vector<8x512xf32>
    %36 = vector.extract_strided_slice %35 {offsets = [0, 0], sizes = [8, 384], strides = [1, 1]} : vector<8x512xf32> to vector<8x384xf32>
    %37 = arith.negf %36 : vector<8x384xf32>
    %38 = math.exp %37 : vector<8x384xf32>
    %cst_19 = arith.constant 1.000000e+00 : f32
    %39 = vector.broadcast %cst_19 : f32 to vector<8x384xf32>
    %40 = arith.addf %39, %38 : vector<8x384xf32>
    %41 = arith.divf %39, %40 : vector<8x384xf32>
    %42 = vector.extract_strided_slice %41 {offsets = [0, 0], sizes = [8, 128], strides = [1, 1]} : vector<8x384xf32> to vector<8x128xf32>
    %43 = vector.extract_strided_slice %41 {offsets = [0, 128], sizes = [8, 128], strides = [1, 1]} : vector<8x384xf32> to vector<8x128xf32>
    %44 = vector.extract_strided_slice %41 {offsets = [0, 256], sizes = [8, 128], strides = [1, 1]} : vector<8x384xf32> to vector<8x128xf32>
    %45 = vector.extract_strided_slice %35 {offsets = [0, 384], sizes = [8, 128], strides = [1, 1]} : vector<8x512xf32> to vector<8x128xf32>
    %46 = math.tanh %45 : vector<8x128xf32>
    %47 = arith.mulf %43, %28 : vector<8x128xf32>
    %48 = arith.mulf %42, %46 : vector<8x128xf32>
    %49 = arith.addf %47, %48 : vector<8x128xf32>
    %50 = math.tanh %49 : vector<8x128xf32>
    %51 = arith.mulf %44, %50 : vector<8x128xf32>
    %c8_20 = arith.constant 8 : index
    %c0_21 = arith.constant 0 : index
    %52 = vector.load %arg13[%c8_20, %c0_21] : memref<64x128xf32, #tpu.memory_space<vmem>>, vector<8x128xf32>
    tpu.vector_store %arg13[%c8_20, %c0_21], %51 {strides = array<i32>} : memref<64x128xf32, #tpu.memory_space<vmem>>, vector<8x128xf32>,
    %c16 = arith.constant 16 : index
    %c0_22 = arith.constant 0 : index
    %53 = vector.load %arg12[%c16, %c0_22] : memref<64x512xf32, #tpu.memory_space<vmem>>, vector<8x512xf32>
    %54 = arith.truncf %51 : vector<8x128xf32> to vector<8x128xbf16>
    %cst_23 = arith.constant dense<0.000000e+00> : vector<8x512xf32>
    %55 = tpu.matmul %54, %1, %cst_23 {dimension_numbers = #tpu.dot_dimension_numbers<[1], [0], [0], [1], [0, 0, 1, 1], [], []>} : vector<8x128xbf16>, vector<128x512xbf16>, vector<8x512xf32> -> vector<8x512xf32>
    %56 = arith.addf %53, %55 : vector<8x512xf32>
    %57 = vector.extract_strided_slice %56 {offsets = [0, 0], sizes = [8, 384], strides = [1, 1]} : vector<8x512xf32> to vector<8x384xf32>
    %58 = arith.negf %57 : vector<8x384xf32>
    %59 = math.exp %58 : vector<8x384xf32>
    %cst_24 = arith.constant 1.000000e+00 : f32
    %60 = vector.broadcast %cst_24 : f32 to vector<8x384xf32>
    %61 = arith.addf %60, %59 : vector<8x384xf32>
    %62 = arith.divf %60, %61 : vector<8x384xf32>
    %63 = vector.extract_strided_slice %62 {offsets = [0, 0], sizes = [8, 128], strides = [1, 1]} : vector<8x384xf32> to vector<8x128xf32>
    %64 = vector.extract_strided_slice %62 {offsets = [0, 128], sizes = [8, 128], strides = [1, 1]} : vector<8x384xf32> to vector<8x128xf32>
    %65 = vector.extract_strided_slice %62 {offsets = [0, 256], sizes = [8, 128], strides = [1, 1]} : vector<8x384xf32> to vector<8x128xf32>
    %66 = vector.extract_strided_slice %56 {offsets = [0, 384], sizes = [8, 128], strides = [1, 1]} : vector<8x512xf32> to vector<8x128xf32>
    %67 = math.tanh %66 : vector<8x128xf32>
    %68 = arith.mulf %64, %49 : vector<8x128xf32>
    %69 = arith.mulf %63, %67 : vector<8x128xf32>
    %70 = arith.addf %68, %69 : vector<8x128xf32>
    %71 = math.tanh %70 : vector<8x128xf32>
    %72 = arith.mulf %65, %71 : vector<8x128xf32>
    %c16_25 = arith.constant 16 : index
    %c0_26 = arith.constant 0 : index
    %73 = vector.load %arg13[%c16_25, %c0_26] : memref<64x128xf32, #tpu.memory_space<vmem>>, vector<8x128xf32>
    tpu.vector_store %arg13[%c16_25, %c0_26], %72 {strides = array<i32>} : memref<64x128xf32, #tpu.memory_space<vmem>>, vector<8x128xf32>,
    %c24 = arith.constant 24 : index
    %c0_27 = arith.constant 0 : index
    %74 = vector.load %arg12[%c24, %c0_27] : memref<64x512xf32, #tpu.memory_space<vmem>>, vector<8x512xf32>
    %75 = arith.truncf %72 : vector<8x128xf32> to vector<8x128xbf16>
    %cst_28 = arith.constant dense<0.000000e+00> : vector<8x512xf32>
    %76 = tpu.matmul %75, %1, %cst_28 {dimension_numbers = #tpu.dot_dimension_numbers<[1], [0], [0], [1], [0, 0, 1, 1], [], []>} : vector<8x128xbf16>, vector<128x512xbf16>, vector<8x512xf32> -> vector<8x512xf32>
    %77 = arith.addf %74, %76 : vector<8x512xf32>
    %78 = vector.extract_strided_slice %77 {offsets = [0, 0], sizes = [8, 384], strides = [1, 1]} : vector<8x512xf32> to vector<8x384xf32>
    %79 = arith.negf %78 : vector<8x384xf32>
    %80 = math.exp %79 : vector<8x384xf32>
    %cst_29 = arith.constant 1.000000e+00 : f32
    %81 = vector.broadcast %cst_29 : f32 to vector<8x384xf32>
    %82 = arith.addf %81, %80 : vector<8x384xf32>
    %83 = arith.divf %81, %82 : vector<8x384xf32>
    %84 = vector.extract_strided_slice %83 {offsets = [0, 0], sizes = [8, 128], strides = [1, 1]} : vector<8x384xf32> to vector<8x128xf32>
    %85 = vector.extract_strided_slice %83 {offsets = [0, 128], sizes = [8, 128], strides = [1, 1]} : vector<8x384xf32> to vector<8x128xf32>
    %86 = vector.extract_strided_slice %83 {offsets = [0, 256], sizes = [8, 128], strides = [1, 1]} : vector<8x384xf32> to vector<8x128xf32>
    %87 = vector.extract_strided_slice %77 {offsets = [0, 384], sizes = [8, 128], strides = [1, 1]} : vector<8x512xf32> to vector<8x128xf32>
    %88 = math.tanh %87 : vector<8x128xf32>
    %89 = arith.mulf %85, %70 : vector<8x128xf32>
    %90 = arith.mulf %84, %88 : vector<8x128xf32>
    %91 = arith.addf %89, %90 : vector<8x128xf32>
    %92 = math.tanh %91 : vector<8x128xf32>
    %93 = arith.mulf %86, %92 : vector<8x128xf32>
    %c24_30 = arith.constant 24 : index
    %c0_31 = arith.constant 0 : index
    %94 = vector.load %arg13[%c24_30, %c0_31] : memref<64x128xf32, #tpu.memory_space<vmem>>, vector<8x128xf32>
    tpu.vector_store %arg13[%c24_30, %c0_31], %93 {strides = array<i32>} : memref<64x128xf32, #tpu.memory_space<vmem>>, vector<8x128xf32>,
    %c32 = arith.constant 32 : index
    %c0_32 = arith.constant 0 : index
    %95 = vector.load %arg12[%c32, %c0_32] : memref<64x512xf32, #tpu.memory_space<vmem>>, vector<8x512xf32>
    %96 = arith.truncf %93 : vector<8x128xf32> to vector<8x128xbf16>
    %cst_33 = arith.constant dense<0.000000e+00> : vector<8x512xf32>
    %97 = tpu.matmul %96, %1, %cst_33 {dimension_numbers = #tpu.dot_dimension_numbers<[1], [0], [0], [1], [0, 0, 1, 1], [], []>} : vector<8x128xbf16>, vector<128x512xbf16>, vector<8x512xf32> -> vector<8x512xf32>
    %98 = arith.addf %95, %97 : vector<8x512xf32>
    %99 = vector.extract_strided_slice %98 {offsets = [0, 0], sizes = [8, 384], strides = [1, 1]} : vector<8x512xf32> to vector<8x384xf32>
    %100 = arith.negf %99 : vector<8x384xf32>
    %101 = math.exp %100 : vector<8x384xf32>
    %cst_34 = arith.constant 1.000000e+00 : f32
    %102 = vector.broadcast %cst_34 : f32 to vector<8x384xf32>
    %103 = arith.addf %102, %101 : vector<8x384xf32>
    %104 = arith.divf %102, %103 : vector<8x384xf32>
    %105 = vector.extract_strided_slice %104 {offsets = [0, 0], sizes = [8, 128], strides = [1, 1]} : vector<8x384xf32> to vector<8x128xf32>
    %106 = vector.extract_strided_slice %104 {offsets = [0, 128], sizes = [8, 128], strides = [1, 1]} : vector<8x384xf32> to vector<8x128xf32>
    %107 = vector.extract_strided_slice %104 {offsets = [0, 256], sizes = [8, 128], strides = [1, 1]} : vector<8x384xf32> to vector<8x128xf32>
    %108 = vector.extract_strided_slice %98 {offsets = [0, 384], sizes = [8, 128], strides = [1, 1]} : vector<8x512xf32> to vector<8x128xf32>
    %109 = math.tanh %108 : vector<8x128xf32>
    %110 = arith.mulf %106, %91 : vector<8x128xf32>
    %111 = arith.mulf %105, %109 : vector<8x128xf32>
    %112 = arith.addf %110, %111 : vector<8x128xf32>
    %113 = math.tanh %112 : vector<8x128xf32>
    %114 = arith.mulf %107, %113 : vector<8x128xf32>
    %c32_35 = arith.constant 32 : index
    %c0_36 = arith.constant 0 : index
    %115 = vector.load %arg13[%c32_35, %c0_36] : memref<64x128xf32, #tpu.memory_space<vmem>>, vector<8x128xf32>
    tpu.vector_store %arg13[%c32_35, %c0_36], %114 {strides = array<i32>} : memref<64x128xf32, #tpu.memory_space<vmem>>, vector<8x128xf32>,
    %c40 = arith.constant 40 : index
    %c0_37 = arith.constant 0 : index
    %116 = vector.load %arg12[%c40, %c0_37] : memref<64x512xf32, #tpu.memory_space<vmem>>, vector<8x512xf32>
    %117 = arith.truncf %114 : vector<8x128xf32> to vector<8x128xbf16>
    %cst_38 = arith.constant dense<0.000000e+00> : vector<8x512xf32>
    %118 = tpu.matmul %117, %1, %cst_38 {dimension_numbers = #tpu.dot_dimension_numbers<[1], [0], [0], [1], [0, 0, 1, 1], [], []>} : vector<8x128xbf16>, vector<128x512xbf16>, vector<8x512xf32> -> vector<8x512xf32>
    %119 = arith.addf %116, %118 : vector<8x512xf32>
    %120 = vector.extract_strided_slice %119 {offsets = [0, 0], sizes = [8, 384], strides = [1, 1]} : vector<8x512xf32> to vector<8x384xf32>
    %121 = arith.negf %120 : vector<8x384xf32>
    %122 = math.exp %121 : vector<8x384xf32>
    %cst_39 = arith.constant 1.000000e+00 : f32
    %123 = vector.broadcast %cst_39 : f32 to vector<8x384xf32>
    %124 = arith.addf %123, %122 : vector<8x384xf32>
    %125 = arith.divf %123, %124 : vector<8x384xf32>
    %126 = vector.extract_strided_slice %125 {offsets = [0, 0], sizes = [8, 128], strides = [1, 1]} : vector<8x384xf32> to vector<8x128xf32>
    %127 = vector.extract_strided_slice %125 {offsets = [0, 128], sizes = [8, 128], strides = [1, 1]} : vector<8x384xf32> to vector<8x128xf32>
    %128 = vector.extract_strided_slice %125 {offsets = [0, 256], sizes = [8, 128], strides = [1, 1]} : vector<8x384xf32> to vector<8x128xf32>
    %129 = vector.extract_strided_slice %119 {offsets = [0, 384], sizes = [8, 128], strides = [1, 1]} : vector<8x512xf32> to vector<8x128xf32>
    %130 = math.tanh %129 : vector<8x128xf32>
    %131 = arith.mulf %127, %112 : vector<8x128xf32>
    %132 = arith.mulf %126, %130 : vector<8x128xf32>
    %133 = arith.addf %131, %132 : vector<8x128xf32>
    %134 = math.tanh %133 : vector<8x128xf32>
    %135 = arith.mulf %128, %134 : vector<8x128xf32>
    %c40_40 = arith.constant 40 : index
    %c0_41 = arith.constant 0 : index
    %136 = vector.load %arg13[%c40_40, %c0_41] : memref<64x128xf32, #tpu.memory_space<vmem>>, vector<8x128xf32>
    tpu.vector_store %arg13[%c40_40, %c0_41], %135 {strides = array<i32>} : memref<64x128xf32, #tpu.memory_space<vmem>>, vector<8x128xf32>,
    %c48 = arith.constant 48 : index
    %c0_42 = arith.constant 0 : index
    %137 = vector.load %arg12[%c48, %c0_42] : memref<64x512xf32, #tpu.memory_space<vmem>>, vector<8x512xf32>
    %138 = arith.truncf %135 : vector<8x128xf32> to vector<8x128xbf16>
    %cst_43 = arith.constant dense<0.000000e+00> : vector<8x512xf32>
    %139 = tpu.matmul %138, %1, %cst_43 {dimension_numbers = #tpu.dot_dimension_numbers<[1], [0], [0], [1], [0, 0, 1, 1], [], []>} : vector<8x128xbf16>, vector<128x512xbf16>, vector<8x512xf32> -> vector<8x512xf32>
    %140 = arith.addf %137, %139 : vector<8x512xf32>
    %141 = vector.extract_strided_slice %140 {offsets = [0, 0], sizes = [8, 384], strides = [1, 1]} : vector<8x512xf32> to vector<8x384xf32>
    %142 = arith.negf %141 : vector<8x384xf32>
    %143 = math.exp %142 : vector<8x384xf32>
    %cst_44 = arith.constant 1.000000e+00 : f32
    %144 = vector.broadcast %cst_44 : f32 to vector<8x384xf32>
    %145 = arith.addf %144, %143 : vector<8x384xf32>
    %146 = arith.divf %144, %145 : vector<8x384xf32>
    %147 = vector.extract_strided_slice %146 {offsets = [0, 0], sizes = [8, 128], strides = [1, 1]} : vector<8x384xf32> to vector<8x128xf32>
    %148 = vector.extract_strided_slice %146 {offsets = [0, 128], sizes = [8, 128], strides = [1, 1]} : vector<8x384xf32> to vector<8x128xf32>
    %149 = vector.extract_strided_slice %146 {offsets = [0, 256], sizes = [8, 128], strides = [1, 1]} : vector<8x384xf32> to vector<8x128xf32>
    %150 = vector.extract_strided_slice %140 {offsets = [0, 384], sizes = [8, 128], strides = [1, 1]} : vector<8x512xf32> to vector<8x128xf32>
    %151 = math.tanh %150 : vector<8x128xf32>
    %152 = arith.mulf %148, %133 : vector<8x128xf32>
    %153 = arith.mulf %147, %151 : vector<8x128xf32>
    %154 = arith.addf %152, %153 : vector<8x128xf32>
    %155 = math.tanh %154 : vector<8x128xf32>
    %156 = arith.mulf %149, %155 : vector<8x128xf32>
    %c48_45 = arith.constant 48 : index
    %c0_46 = arith.constant 0 : index
    %157 = vector.load %arg13[%c48_45, %c0_46] : memref<64x128xf32, #tpu.memory_space<vmem>>, vector<8x128xf32>
    tpu.vector_store %arg13[%c48_45, %c0_46], %156 {strides = array<i32>} : memref<64x128xf32, #tpu.memory_space<vmem>>, vector<8x128xf32>,
    %c56 = arith.constant 56 : index
    %c0_47 = arith.constant 0 : index
    %158 = vector.load %arg12[%c56, %c0_47] : memref<64x512xf32, #tpu.memory_space<vmem>>, vector<8x512xf32>
    %159 = arith.truncf %156 : vector<8x128xf32> to vector<8x128xbf16>
    %cst_48 = arith.constant dense<0.000000e+00> : vector<8x512xf32>
    %160 = tpu.matmul %159, %1, %cst_48 {dimension_numbers = #tpu.dot_dimension_numbers<[1], [0], [0], [1], [0, 0, 1, 1], [], []>} : vector<8x128xbf16>, vector<128x512xbf16>, vector<8x512xf32> -> vector<8x512xf32>
    %161 = arith.addf %158, %160 : vector<8x512xf32>
    %162 = vector.extract_strided_slice %161 {offsets = [0, 0], sizes = [8, 384], strides = [1, 1]} : vector<8x512xf32> to vector<8x384xf32>
    %163 = arith.negf %162 : vector<8x384xf32>
    %164 = math.exp %163 : vector<8x384xf32>
    %cst_49 = arith.constant 1.000000e+00 : f32
    %165 = vector.broadcast %cst_49 : f32 to vector<8x384xf32>
    %166 = arith.addf %165, %164 : vector<8x384xf32>
    %167 = arith.divf %165, %166 : vector<8x384xf32>
    %168 = vector.extract_strided_slice %167 {offsets = [0, 0], sizes = [8, 128], strides = [1, 1]} : vector<8x384xf32> to vector<8x128xf32>
    %169 = vector.extract_strided_slice %167 {offsets = [0, 128], sizes = [8, 128], strides = [1, 1]} : vector<8x384xf32> to vector<8x128xf32>
    %170 = vector.extract_strided_slice %167 {offsets = [0, 256], sizes = [8, 128], strides = [1, 1]} : vector<8x384xf32> to vector<8x128xf32>
    %171 = vector.extract_strided_slice %161 {offsets = [0, 384], sizes = [8, 128], strides = [1, 1]} : vector<8x512xf32> to vector<8x128xf32>
    %172 = math.tanh %171 : vector<8x128xf32>
    %173 = arith.mulf %169, %154 : vector<8x128xf32>
    %174 = arith.mulf %168, %172 : vector<8x128xf32>
    %175 = arith.addf %173, %174 : vector<8x128xf32>
    %176 = math.tanh %175 : vector<8x128xf32>
    %177 = arith.mulf %170, %176 : vector<8x128xf32>
    %c56_50 = arith.constant 56 : index
    %c0_51 = arith.constant 0 : index
    %178 = vector.load %arg13[%c56_50, %c0_51] : memref<64x128xf32, #tpu.memory_space<vmem>>, vector<8x128xf32>
    tpu.vector_store %arg13[%c56_50, %c0_51], %177 {strides = array<i32>} : memref<64x128xf32, #tpu.memory_space<vmem>>, vector<8x128xf32>,
    %c0_52 = arith.constant 0 : index
    %c0_53 = arith.constant 0 : index
    %179 = vector.load %arg4[%c0_52, %c0_53] : memref<128x512xbf16, #tpu.memory_space<vmem>>, vector<128x512xbf16>
    %c0_54 = arith.constant 0 : index
    %c0_55 = arith.constant 0 : index
    %180 = vector.load %arg5[%c0_54, %c0_55] : memref<128x512xbf16, #tpu.memory_space<vmem>>, vector<128x512xbf16>
    %c0_56 = arith.constant 0 : index
    %c0_57 = arith.constant 0 : index
    %181 = vector.load %arg6[%c0_56, %c0_57] : memref<1x512xf32, #tpu.memory_space<vmem>>, vector<1x512xf32>
    %c0_58 = arith.constant 0 : index
    %c0_59 = arith.constant 0 : index
    %182 = vector.load %arg13[%c0_58, %c0_59] : memref<64x128xf32, #tpu.memory_space<vmem>>, vector<64x128xf32>
    %183 = arith.truncf %182 : vector<64x128xf32> to vector<64x128xbf16>
    %cst_60 = arith.constant dense<0.000000e+00> : vector<64x512xf32>
    %184 = tpu.matmul %183, %179, %cst_60 {dimension_numbers = #tpu.dot_dimension_numbers<[1], [0], [0], [1], [0, 0, 1, 1], [], []>} : vector<64x128xbf16>, vector<128x512xbf16>, vector<64x512xf32> -> vector<64x512xf32>
    %185 = vector.broadcast %181 : vector<1x512xf32> to vector<64x512xf32>
    %186 = arith.addf %184, %185 : vector<64x512xf32>
    %c0_61 = arith.constant 0 : index
    %c0_62 = arith.constant 0 : index
    %187 = vector.load %arg12[%c0_61, %c0_62] : memref<64x512xf32, #tpu.memory_space<vmem>>, vector<64x512xf32>
    tpu.vector_store %arg12[%c0_61, %c0_62], %186 {strides = array<i32>} : memref<64x512xf32, #tpu.memory_space<vmem>>, vector<64x512xf32>,
    %cst_63 = arith.constant 0.000000e+00 : f32
    %188 = vector.broadcast %cst_63 : f32 to vector<8x128xf32>
    %cst_64 = arith.constant 0.000000e+00 : f32
    %189 = vector.broadcast %cst_64 : f32 to vector<8x128xf32>
    %c0_65 = arith.constant 0 : index
    %c0_66 = arith.constant 0 : index
    %190 = vector.load %arg12[%c0_65, %c0_66] : memref<64x512xf32, #tpu.memory_space<vmem>>, vector<8x512xf32>
    %191 = arith.truncf %188 : vector<8x128xf32> to vector<8x128xbf16>
    %cst_67 = arith.constant dense<0.000000e+00> : vector<8x512xf32>
    %192 = tpu.matmul %191, %180, %cst_67 {dimension_numbers = #tpu.dot_dimension_numbers<[1], [0], [0], [1], [0, 0, 1, 1], [], []>} : vector<8x128xbf16>, vector<128x512xbf16>, vector<8x512xf32> -> vector<8x512xf32>
    %193 = arith.addf %190, %192 : vector<8x512xf32>
    %194 = vector.extract_strided_slice %193 {offsets = [0, 0], sizes = [8, 384], strides = [1, 1]} : vector<8x512xf32> to vector<8x384xf32>
    %195 = arith.negf %194 : vector<8x384xf32>
    %196 = math.exp %195 : vector<8x384xf32>
    %cst_68 = arith.constant 1.000000e+00 : f32
    %197 = vector.broadcast %cst_68 : f32 to vector<8x384xf32>
    %198 = arith.addf %197, %196 : vector<8x384xf32>
    %199 = arith.divf %197, %198 : vector<8x384xf32>
    %200 = vector.extract_strided_slice %199 {offsets = [0, 0], sizes = [8, 128], strides = [1, 1]} : vector<8x384xf32> to vector<8x128xf32>
    %201 = vector.extract_strided_slice %199 {offsets = [0, 128], sizes = [8, 128], strides = [1, 1]} : vector<8x384xf32> to vector<8x128xf32>
    %202 = vector.extract_strided_slice %199 {offsets = [0, 256], sizes = [8, 128], strides = [1, 1]} : vector<8x384xf32> to vector<8x128xf32>
    %203 = vector.extract_strided_slice %193 {offsets = [0, 384], sizes = [8, 128], strides = [1, 1]} : vector<8x512xf32> to vector<8x128xf32>
    %204 = math.tanh %203 : vector<8x128xf32>
    %205 = arith.mulf %201, %189 : vector<8x128xf32>
    %206 = arith.mulf %200, %204 : vector<8x128xf32>
    %207 = arith.addf %205, %206 : vector<8x128xf32>
    %208 = math.tanh %207 : vector<8x128xf32>
    %209 = arith.mulf %202, %208 : vector<8x128xf32>
    %c0_69 = arith.constant 0 : index
    %c0_70 = arith.constant 0 : index
    %210 = vector.load %arg13[%c0_69, %c0_70] : memref<64x128xf32, #tpu.memory_space<vmem>>, vector<8x128xf32>
    tpu.vector_store %arg13[%c0_69, %c0_70], %209 {strides = array<i32>} : memref<64x128xf32, #tpu.memory_space<vmem>>, vector<8x128xf32>,
    %c8_71 = arith.constant 8 : index
    %c0_72 = arith.constant 0 : index
    %211 = vector.load %arg12[%c8_71, %c0_72] : memref<64x512xf32, #tpu.memory_space<vmem>>, vector<8x512xf32>
    %212 = arith.truncf %209 : vector<8x128xf32> to vector<8x128xbf16>
    %cst_73 = arith.constant dense<0.000000e+00> : vector<8x512xf32>
    %213 = tpu.matmul %212, %180, %cst_73 {dimension_numbers = #tpu.dot_dimension_numbers<[1], [0], [0], [1], [0, 0, 1, 1], [], []>} : vector<8x128xbf16>, vector<128x512xbf16>, vector<8x512xf32> -> vector<8x512xf32>
    %214 = arith.addf %211, %213 : vector<8x512xf32>
    %215 = vector.extract_strided_slice %214 {offsets = [0, 0], sizes = [8, 384], strides = [1, 1]} : vector<8x512xf32> to vector<8x384xf32>
    %216 = arith.negf %215 : vector<8x384xf32>
    %217 = math.exp %216 : vector<8x384xf32>
    %cst_74 = arith.constant 1.000000e+00 : f32
    %218 = vector.broadcast %cst_74 : f32 to vector<8x384xf32>
    %219 = arith.addf %218, %217 : vector<8x384xf32>
    %220 = arith.divf %218, %219 : vector<8x384xf32>
    %221 = vector.extract_strided_slice %220 {offsets = [0, 0], sizes = [8, 128], strides = [1, 1]} : vector<8x384xf32> to vector<8x128xf32>
    %222 = vector.extract_strided_slice %220 {offsets = [0, 128], sizes = [8, 128], strides = [1, 1]} : vector<8x384xf32> to vector<8x128xf32>
    %223 = vector.extract_strided_slice %220 {offsets = [0, 256], sizes = [8, 128], strides = [1, 1]} : vector<8x384xf32> to vector<8x128xf32>
    %224 = vector.extract_strided_slice %214 {offsets = [0, 384], sizes = [8, 128], strides = [1, 1]} : vector<8x512xf32> to vector<8x128xf32>
    %225 = math.tanh %224 : vector<8x128xf32>
    %226 = arith.mulf %222, %207 : vector<8x128xf32>
    %227 = arith.mulf %221, %225 : vector<8x128xf32>
    %228 = arith.addf %226, %227 : vector<8x128xf32>
    %229 = math.tanh %228 : vector<8x128xf32>
    %230 = arith.mulf %223, %229 : vector<8x128xf32>
    %c8_75 = arith.constant 8 : index
    %c0_76 = arith.constant 0 : index
    %231 = vector.load %arg13[%c8_75, %c0_76] : memref<64x128xf32, #tpu.memory_space<vmem>>, vector<8x128xf32>
    tpu.vector_store %arg13[%c8_75, %c0_76], %230 {strides = array<i32>} : memref<64x128xf32, #tpu.memory_space<vmem>>, vector<8x128xf32>,
    %c16_77 = arith.constant 16 : index
    %c0_78 = arith.constant 0 : index
    %232 = vector.load %arg12[%c16_77, %c0_78] : memref<64x512xf32, #tpu.memory_space<vmem>>, vector<8x512xf32>
    %233 = arith.truncf %230 : vector<8x128xf32> to vector<8x128xbf16>
    %cst_79 = arith.constant dense<0.000000e+00> : vector<8x512xf32>
    %234 = tpu.matmul %233, %180, %cst_79 {dimension_numbers = #tpu.dot_dimension_numbers<[1], [0], [0], [1], [0, 0, 1, 1], [], []>} : vector<8x128xbf16>, vector<128x512xbf16>, vector<8x512xf32> -> vector<8x512xf32>
    %235 = arith.addf %232, %234 : vector<8x512xf32>
    %236 = vector.extract_strided_slice %235 {offsets = [0, 0], sizes = [8, 384], strides = [1, 1]} : vector<8x512xf32> to vector<8x384xf32>
    %237 = arith.negf %236 : vector<8x384xf32>
    %238 = math.exp %237 : vector<8x384xf32>
    %cst_80 = arith.constant 1.000000e+00 : f32
    %239 = vector.broadcast %cst_80 : f32 to vector<8x384xf32>
    %240 = arith.addf %239, %238 : vector<8x384xf32>
    %241 = arith.divf %239, %240 : vector<8x384xf32>
    %242 = vector.extract_strided_slice %241 {offsets = [0, 0], sizes = [8, 128], strides = [1, 1]} : vector<8x384xf32> to vector<8x128xf32>
    %243 = vector.extract_strided_slice %241 {offsets = [0, 128], sizes = [8, 128], strides = [1, 1]} : vector<8x384xf32> to vector<8x128xf32>
    %244 = vector.extract_strided_slice %241 {offsets = [0, 256], sizes = [8, 128], strides = [1, 1]} : vector<8x384xf32> to vector<8x128xf32>
    %245 = vector.extract_strided_slice %235 {offsets = [0, 384], sizes = [8, 128], strides = [1, 1]} : vector<8x512xf32> to vector<8x128xf32>
    %246 = math.tanh %245 : vector<8x128xf32>
    %247 = arith.mulf %243, %228 : vector<8x128xf32>
    %248 = arith.mulf %242, %246 : vector<8x128xf32>
    %249 = arith.addf %247, %248 : vector<8x128xf32>
    %250 = math.tanh %249 : vector<8x128xf32>
    %251 = arith.mulf %244, %250 : vector<8x128xf32>
    %c16_81 = arith.constant 16 : index
    %c0_82 = arith.constant 0 : index
    %252 = vector.load %arg13[%c16_81, %c0_82] : memref<64x128xf32, #tpu.memory_space<vmem>>, vector<8x128xf32>
    tpu.vector_store %arg13[%c16_81, %c0_82], %251 {strides = array<i32>} : memref<64x128xf32, #tpu.memory_space<vmem>>, vector<8x128xf32>,
    %c24_83 = arith.constant 24 : index
    %c0_84 = arith.constant 0 : index
    %253 = vector.load %arg12[%c24_83, %c0_84] : memref<64x512xf32, #tpu.memory_space<vmem>>, vector<8x512xf32>
    %254 = arith.truncf %251 : vector<8x128xf32> to vector<8x128xbf16>
    %cst_85 = arith.constant dense<0.000000e+00> : vector<8x512xf32>
    %255 = tpu.matmul %254, %180, %cst_85 {dimension_numbers = #tpu.dot_dimension_numbers<[1], [0], [0], [1], [0, 0, 1, 1], [], []>} : vector<8x128xbf16>, vector<128x512xbf16>, vector<8x512xf32> -> vector<8x512xf32>
    %256 = arith.addf %253, %255 : vector<8x512xf32>
    %257 = vector.extract_strided_slice %256 {offsets = [0, 0], sizes = [8, 384], strides = [1, 1]} : vector<8x512xf32> to vector<8x384xf32>
    %258 = arith.negf %257 : vector<8x384xf32>
    %259 = math.exp %258 : vector<8x384xf32>
    %cst_86 = arith.constant 1.000000e+00 : f32
    %260 = vector.broadcast %cst_86 : f32 to vector<8x384xf32>
    %261 = arith.addf %260, %259 : vector<8x384xf32>
    %262 = arith.divf %260, %261 : vector<8x384xf32>
    %263 = vector.extract_strided_slice %262 {offsets = [0, 0], sizes = [8, 128], strides = [1, 1]} : vector<8x384xf32> to vector<8x128xf32>
    %264 = vector.extract_strided_slice %262 {offsets = [0, 128], sizes = [8, 128], strides = [1, 1]} : vector<8x384xf32> to vector<8x128xf32>
    %265 = vector.extract_strided_slice %262 {offsets = [0, 256], sizes = [8, 128], strides = [1, 1]} : vector<8x384xf32> to vector<8x128xf32>
    %266 = vector.extract_strided_slice %256 {offsets = [0, 384], sizes = [8, 128], strides = [1, 1]} : vector<8x512xf32> to vector<8x128xf32>
    %267 = math.tanh %266 : vector<8x128xf32>
    %268 = arith.mulf %264, %249 : vector<8x128xf32>
    %269 = arith.mulf %263, %267 : vector<8x128xf32>
    %270 = arith.addf %268, %269 : vector<8x128xf32>
    %271 = math.tanh %270 : vector<8x128xf32>
    %272 = arith.mulf %265, %271 : vector<8x128xf32>
    %c24_87 = arith.constant 24 : index
    %c0_88 = arith.constant 0 : index
    %273 = vector.load %arg13[%c24_87, %c0_88] : memref<64x128xf32, #tpu.memory_space<vmem>>, vector<8x128xf32>
    tpu.vector_store %arg13[%c24_87, %c0_88], %272 {strides = array<i32>} : memref<64x128xf32, #tpu.memory_space<vmem>>, vector<8x128xf32>,
    %c32_89 = arith.constant 32 : index
    %c0_90 = arith.constant 0 : index
    %274 = vector.load %arg12[%c32_89, %c0_90] : memref<64x512xf32, #tpu.memory_space<vmem>>, vector<8x512xf32>
    %275 = arith.truncf %272 : vector<8x128xf32> to vector<8x128xbf16>
    %cst_91 = arith.constant dense<0.000000e+00> : vector<8x512xf32>
    %276 = tpu.matmul %275, %180, %cst_91 {dimension_numbers = #tpu.dot_dimension_numbers<[1], [0], [0], [1], [0, 0, 1, 1], [], []>} : vector<8x128xbf16>, vector<128x512xbf16>, vector<8x512xf32> -> vector<8x512xf32>
    %277 = arith.addf %274, %276 : vector<8x512xf32>
    %278 = vector.extract_strided_slice %277 {offsets = [0, 0], sizes = [8, 384], strides = [1, 1]} : vector<8x512xf32> to vector<8x384xf32>
    %279 = arith.negf %278 : vector<8x384xf32>
    %280 = math.exp %279 : vector<8x384xf32>
    %cst_92 = arith.constant 1.000000e+00 : f32
    %281 = vector.broadcast %cst_92 : f32 to vector<8x384xf32>
    %282 = arith.addf %281, %280 : vector<8x384xf32>
    %283 = arith.divf %281, %282 : vector<8x384xf32>
    %284 = vector.extract_strided_slice %283 {offsets = [0, 0], sizes = [8, 128], strides = [1, 1]} : vector<8x384xf32> to vector<8x128xf32>
    %285 = vector.extract_strided_slice %283 {offsets = [0, 128], sizes = [8, 128], strides = [1, 1]} : vector<8x384xf32> to vector<8x128xf32>
    %286 = vector.extract_strided_slice %283 {offsets = [0, 256], sizes = [8, 128], strides = [1, 1]} : vector<8x384xf32> to vector<8x128xf32>
    %287 = vector.extract_strided_slice %277 {offsets = [0, 384], sizes = [8, 128], strides = [1, 1]} : vector<8x512xf32> to vector<8x128xf32>
    %288 = math.tanh %287 : vector<8x128xf32>
    %289 = arith.mulf %285, %270 : vector<8x128xf32>
    %290 = arith.mulf %284, %288 : vector<8x128xf32>
    %291 = arith.addf %289, %290 : vector<8x128xf32>
    %292 = math.tanh %291 : vector<8x128xf32>
    %293 = arith.mulf %286, %292 : vector<8x128xf32>
    %c32_93 = arith.constant 32 : index
    %c0_94 = arith.constant 0 : index
    %294 = vector.load %arg13[%c32_93, %c0_94] : memref<64x128xf32, #tpu.memory_space<vmem>>, vector<8x128xf32>
    tpu.vector_store %arg13[%c32_93, %c0_94], %293 {strides = array<i32>} : memref<64x128xf32, #tpu.memory_space<vmem>>, vector<8x128xf32>,
    %c40_95 = arith.constant 40 : index
    %c0_96 = arith.constant 0 : index
    %295 = vector.load %arg12[%c40_95, %c0_96] : memref<64x512xf32, #tpu.memory_space<vmem>>, vector<8x512xf32>
    %296 = arith.truncf %293 : vector<8x128xf32> to vector<8x128xbf16>
    %cst_97 = arith.constant dense<0.000000e+00> : vector<8x512xf32>
    %297 = tpu.matmul %296, %180, %cst_97 {dimension_numbers = #tpu.dot_dimension_numbers<[1], [0], [0], [1], [0, 0, 1, 1], [], []>} : vector<8x128xbf16>, vector<128x512xbf16>, vector<8x512xf32> -> vector<8x512xf32>
    %298 = arith.addf %295, %297 : vector<8x512xf32>
    %299 = vector.extract_strided_slice %298 {offsets = [0, 0], sizes = [8, 384], strides = [1, 1]} : vector<8x512xf32> to vector<8x384xf32>
    %300 = arith.negf %299 : vector<8x384xf32>
    %301 = math.exp %300 : vector<8x384xf32>
    %cst_98 = arith.constant 1.000000e+00 : f32
    %302 = vector.broadcast %cst_98 : f32 to vector<8x384xf32>
    %303 = arith.addf %302, %301 : vector<8x384xf32>
    %304 = arith.divf %302, %303 : vector<8x384xf32>
    %305 = vector.extract_strided_slice %304 {offsets = [0, 0], sizes = [8, 128], strides = [1, 1]} : vector<8x384xf32> to vector<8x128xf32>
    %306 = vector.extract_strided_slice %304 {offsets = [0, 128], sizes = [8, 128], strides = [1, 1]} : vector<8x384xf32> to vector<8x128xf32>
    %307 = vector.extract_strided_slice %304 {offsets = [0, 256], sizes = [8, 128], strides = [1, 1]} : vector<8x384xf32> to vector<8x128xf32>
    %308 = vector.extract_strided_slice %298 {offsets = [0, 384], sizes = [8, 128], strides = [1, 1]} : vector<8x512xf32> to vector<8x128xf32>
    %309 = math.tanh %308 : vector<8x128xf32>
    %310 = arith.mulf %306, %291 : vector<8x128xf32>
    %311 = arith.mulf %305, %309 : vector<8x128xf32>
    %312 = arith.addf %310, %311 : vector<8x128xf32>
    %313 = math.tanh %312 : vector<8x128xf32>
    %314 = arith.mulf %307, %313 : vector<8x128xf32>
    %c40_99 = arith.constant 40 : index
    %c0_100 = arith.constant 0 : index
    %315 = vector.load %arg13[%c40_99, %c0_100] : memref<64x128xf32, #tpu.memory_space<vmem>>, vector<8x128xf32>
    tpu.vector_store %arg13[%c40_99, %c0_100], %314 {strides = array<i32>} : memref<64x128xf32, #tpu.memory_space<vmem>>, vector<8x128xf32>,
    %c48_101 = arith.constant 48 : index
    %c0_102 = arith.constant 0 : index
    %316 = vector.load %arg12[%c48_101, %c0_102] : memref<64x512xf32, #tpu.memory_space<vmem>>, vector<8x512xf32>
    %317 = arith.truncf %314 : vector<8x128xf32> to vector<8x128xbf16>
    %cst_103 = arith.constant dense<0.000000e+00> : vector<8x512xf32>
    %318 = tpu.matmul %317, %180, %cst_103 {dimension_numbers = #tpu.dot_dimension_numbers<[1], [0], [0], [1], [0, 0, 1, 1], [], []>} : vector<8x128xbf16>, vector<128x512xbf16>, vector<8x512xf32> -> vector<8x512xf32>
    %319 = arith.addf %316, %318 : vector<8x512xf32>
    %320 = vector.extract_strided_slice %319 {offsets = [0, 0], sizes = [8, 384], strides = [1, 1]} : vector<8x512xf32> to vector<8x384xf32>
    %321 = arith.negf %320 : vector<8x384xf32>
    %322 = math.exp %321 : vector<8x384xf32>
    %cst_104 = arith.constant 1.000000e+00 : f32
    %323 = vector.broadcast %cst_104 : f32 to vector<8x384xf32>
    %324 = arith.addf %323, %322 : vector<8x384xf32>
    %325 = arith.divf %323, %324 : vector<8x384xf32>
    %326 = vector.extract_strided_slice %325 {offsets = [0, 0], sizes = [8, 128], strides = [1, 1]} : vector<8x384xf32> to vector<8x128xf32>
    %327 = vector.extract_strided_slice %325 {offsets = [0, 128], sizes = [8, 128], strides = [1, 1]} : vector<8x384xf32> to vector<8x128xf32>
    %328 = vector.extract_strided_slice %325 {offsets = [0, 256], sizes = [8, 128], strides = [1, 1]} : vector<8x384xf32> to vector<8x128xf32>
    %329 = vector.extract_strided_slice %319 {offsets = [0, 384], sizes = [8, 128], strides = [1, 1]} : vector<8x512xf32> to vector<8x128xf32>
    %330 = math.tanh %329 : vector<8x128xf32>
    %331 = arith.mulf %327, %312 : vector<8x128xf32>
    %332 = arith.mulf %326, %330 : vector<8x128xf32>
    %333 = arith.addf %331, %332 : vector<8x128xf32>
    %334 = math.tanh %333 : vector<8x128xf32>
    %335 = arith.mulf %328, %334 : vector<8x128xf32>
    %c48_105 = arith.constant 48 : index
    %c0_106 = arith.constant 0 : index
    %336 = vector.load %arg13[%c48_105, %c0_106] : memref<64x128xf32, #tpu.memory_space<vmem>>, vector<8x128xf32>
    tpu.vector_store %arg13[%c48_105, %c0_106], %335 {strides = array<i32>} : memref<64x128xf32, #tpu.memory_space<vmem>>, vector<8x128xf32>,
    %c56_107 = arith.constant 56 : index
    %c0_108 = arith.constant 0 : index
    %337 = vector.load %arg12[%c56_107, %c0_108] : memref<64x512xf32, #tpu.memory_space<vmem>>, vector<8x512xf32>
    %338 = arith.truncf %335 : vector<8x128xf32> to vector<8x128xbf16>
    %cst_109 = arith.constant dense<0.000000e+00> : vector<8x512xf32>
    %339 = tpu.matmul %338, %180, %cst_109 {dimension_numbers = #tpu.dot_dimension_numbers<[1], [0], [0], [1], [0, 0, 1, 1], [], []>} : vector<8x128xbf16>, vector<128x512xbf16>, vector<8x512xf32> -> vector<8x512xf32>
    %340 = arith.addf %337, %339 : vector<8x512xf32>
    %341 = vector.extract_strided_slice %340 {offsets = [0, 0], sizes = [8, 384], strides = [1, 1]} : vector<8x512xf32> to vector<8x384xf32>
    %342 = arith.negf %341 : vector<8x384xf32>
    %343 = math.exp %342 : vector<8x384xf32>
    %cst_110 = arith.constant 1.000000e+00 : f32
    %344 = vector.broadcast %cst_110 : f32 to vector<8x384xf32>
    %345 = arith.addf %344, %343 : vector<8x384xf32>
    %346 = arith.divf %344, %345 : vector<8x384xf32>
    %347 = vector.extract_strided_slice %346 {offsets = [0, 0], sizes = [8, 128], strides = [1, 1]} : vector<8x384xf32> to vector<8x128xf32>
    %348 = vector.extract_strided_slice %346 {offsets = [0, 128], sizes = [8, 128], strides = [1, 1]} : vector<8x384xf32> to vector<8x128xf32>
    %349 = vector.extract_strided_slice %346 {offsets = [0, 256], sizes = [8, 128], strides = [1, 1]} : vector<8x384xf32> to vector<8x128xf32>
    %350 = vector.extract_strided_slice %340 {offsets = [0, 384], sizes = [8, 128], strides = [1, 1]} : vector<8x512xf32> to vector<8x128xf32>
    %351 = math.tanh %350 : vector<8x128xf32>
    %352 = arith.mulf %348, %333 : vector<8x128xf32>
    %353 = arith.mulf %347, %351 : vector<8x128xf32>
    %354 = arith.addf %352, %353 : vector<8x128xf32>
    %355 = math.tanh %354 : vector<8x128xf32>
    %356 = arith.mulf %349, %355 : vector<8x128xf32>
    %c56_111 = arith.constant 56 : index
    %c0_112 = arith.constant 0 : index
    %357 = vector.load %arg13[%c56_111, %c0_112] : memref<64x128xf32, #tpu.memory_space<vmem>>, vector<8x128xf32>
    tpu.vector_store %arg13[%c56_111, %c0_112], %356 {strides = array<i32>} : memref<64x128xf32, #tpu.memory_space<vmem>>, vector<8x128xf32>,
    %c0_113 = arith.constant 0 : index
    %c0_114 = arith.constant 0 : index
    %358 = vector.load %arg13[%c0_113, %c0_114] : memref<64x128xf32, #tpu.memory_space<vmem>>, vector<64x128xf32>
    %cst_115 = arith.constant 0.000000e+00 : f32
    %359 = vector.broadcast %cst_115 : f32 to vector<64x128xf32>
    %360 = arith.maximumf %358, %359 : vector<64x128xf32>
    %361 = arith.truncf %360 : vector<64x128xf32> to vector<64x128xbf16>
    %c0_116 = arith.constant 0 : index
    %c0_117 = arith.constant 0 : index
    %362 = vector.load %arg7[%c0_116, %c0_117] : memref<128x128xbf16, #tpu.memory_space<vmem>>, vector<128x128xbf16>
    %cst_118 = arith.constant dense<0.000000e+00> : vector<64x128xf32>
    %363 = tpu.matmul %361, %362, %cst_118 {dimension_numbers = #tpu.dot_dimension_numbers<[1], [0], [0], [1], [0, 0, 1, 1], [], []>} : vector<64x128xbf16>, vector<128x128xbf16>, vector<64x128xf32> -> vector<64x128xf32>
    %c0_119 = arith.constant 0 : index
    %c0_120 = arith.constant 0 : index
    %364 = vector.load %arg8[%c0_119, %c0_120] : memref<1x128xf32, #tpu.memory_space<vmem>>, vector<1x128xf32>
    %365 = vector.broadcast %364 : vector<1x128xf32> to vector<64x128xf32>
    %366 = arith.addf %363, %365 : vector<64x128xf32>
    %cst_121 = arith.constant 0.000000e+00 : f32
    %367 = vector.broadcast %cst_121 : f32 to vector<64x128xf32>
    %368 = arith.maximumf %366, %367 : vector<64x128xf32>
    %369 = arith.truncf %368 : vector<64x128xf32> to vector<64x128xbf16>
    %c0_122 = arith.constant 0 : index
    %c0_123 = arith.constant 0 : index
    %370 = vector.load %arg9[%c0_122, %c0_123] : memref<128x128xbf16, #tpu.memory_space<vmem>>, vector<128x128xbf16>
    %cst_124 = arith.constant dense<0.000000e+00> : vector<64x128xf32>
    %371 = tpu.matmul %369, %370, %cst_124 {dimension_numbers = #tpu.dot_dimension_numbers<[1], [0], [0], [1], [0, 0, 1, 1], [], []>} : vector<64x128xbf16>, vector<128x128xbf16>, vector<64x128xf32> -> vector<64x128xf32>
    %c0_125 = arith.constant 0 : index
    %c0_126 = arith.constant 0 : index
    %372 = vector.load %arg10[%c0_125, %c0_126] : memref<1x128xf32, #tpu.memory_space<vmem>>, vector<1x128xf32>
    %373 = vector.broadcast %372 : vector<1x128xf32> to vector<64x128xf32>
    %374 = arith.addf %371, %373 : vector<64x128xf32>
    %c0_127 = arith.constant 0 : index
    %c0_128 = arith.constant 0 : index
    %375 = vector.load %arg11[%c0_127, %c0_128] : memref<64x128xf32, #tpu.memory_space<vmem>>, vector<64x128xf32>
    tpu.vector_store %arg11[%c0_127, %c0_128], %374 {strides = array<i32>} : memref<64x128xf32, #tpu.memory_space<vmem>>, vector<64x128xf32>,
    return
  }
}

</mosaic_0001>

<llo_original>
// kernel: fwd.1
$region0: #{fwd.1}
  #allocation0 [shape = 'u32[]', space=smem, size = 0x4, offset = 0x4, fixed_abs, tag = 'smem constant byte address 0x4 - core index']
  #allocation1 [shape = 'u32[144,128]{1,0:T(1,128)}', space=vmem, size = 0x12000, scoped, tag = 'internal scratch']
  #allocation2 [shape = 'f32[64,512]{1,0:T(8,128)}', space=vmem, size = 0x20000, scoped, tag = 'scratch operand']
  #allocation3 [shape = 'f32[64,128]{1,0:T(8,128)}', space=vmem, size = 0x8000, scoped, tag = 'scratch operand']
  %s0 = inlined_call_operand.vmem [shape: f32[64,16], index: 0, kind: input, shape index: {}]
  %s1 = inlined_call_operand.vmem [shape: bf16[16,512], index: 1, kind: input, shape index: {}]
  %s2 = inlined_call_operand.hbm [shape: bf16[128,512], index: 2, kind: input, shape index: {}]
  %s3 = inlined_call_operand.vmem [shape: f32[1,512], index: 3, kind: input, shape index: {}]
  %s4 = inlined_call_operand.hbm [shape: bf16[128,512], index: 4, kind: input, shape index: {}]
  %s5 = inlined_call_operand.hbm [shape: bf16[128,512], index: 5, kind: input, shape index: {}]
  %s6 = inlined_call_operand.vmem [shape: f32[1,512], index: 6, kind: input, shape index: {}]
  %s7 = inlined_call_operand.vmem [shape: bf16[128,128], index: 7, kind: input, shape index: {}]
  %s8 = inlined_call_operand.vmem [shape: f32[1,128], index: 8, kind: input, shape index: {}]
  %s9 = inlined_call_operand.hbm [shape: bf16[128,128], index: 9, kind: input, shape index: {}]
  %s10 = inlined_call_operand.vmem [shape: f32[1,128], index: 10, kind: input, shape index: {}]
  %s11 = inlined_call_operand.vmem [shape: f32[64,128], index: 11, kind: output, shape index: {}]
  %s12 = sld [smem:[#allocation0]]
  $region70: #{fwd.1} parent=0
    _
  %s14 = ssub.s32 1, %s12
  %s15 = scalar_select 0, %s14, %s12
  $region1: #{fwd.1} parent=0
    #allocation4 [shape = 'u8[131072]{0}', space=vmem, size = 0x20000, scoped, tag = 'input window, operand 2, single buffered']
    #allocation5 [shape = 's32[1]{0}', space=sflag, size = 0x4, scoped, tag = 'scoped memory for fwd.1']
    #allocation6 [shape = 'u8[131072]{0}', space=vmem, size = 0x20000, scoped, tag = 'input window, operand 4, single buffered']
    #allocation7 [shape = 's32[1]{0}', space=sflag, size = 0x4, scoped, tag = 'scoped memory for fwd.1']
    #allocation8 [shape = 'u8[131072]{0}', space=vmem, size = 0x20000, scoped, tag = 'input window, operand 5, single buffered']
    #allocation9 [shape = 'u8[32768]{0}', space=vmem, size = 0x8000, scoped, tag = 'input window, operand 9, single buffered']
    #allocation10 [shape = 's32[1]{0}', space=sflag, size = 0x4, scoped, tag = 'scoped memory for fwd.1']
    %16 = vsyncpa [#allocation5], 0
    %17 = vsyncpa [#allocation7], 0
    %18 = vsyncpa [#allocation10], 0
    // Predicated region
    $region2: #{fwd.1} parent=1 // pred_check
      _
    $region3: #{fwd.1} parent=1 // pred_check_branch
      %20 = sbr.rel (0) target = $region5
    $region4: #{fwd.1} parent=1 // pred_region
      _
    $region5: #{fwd.1} parent=1 // pred_fallthru
      _
    // Predicated region
    $region6: #{fwd.1} parent=1 // pred_check
      _
    $region7: #{fwd.1} parent=1 // pred_check_branch
      %22 = sbr.rel (0) target = $region9
    $region8: #{fwd.1} parent=1 // pred_region
      _
    $region9: #{fwd.1} parent=1 // pred_fallthru
      _
    // Predicated region
    $region10: #{fwd.1} parent=1 // pred_check
      _
    $region11: #{fwd.1} parent=1 // pred_check_branch
      %24 = sbr.rel (0) target = $region13
    $region12: #{fwd.1} parent=1 // pred_region
      %s26 = ssub.s32 4096, 4096
      %27 = vsyncadd [#allocation5], %s26
      %s28 = sshll.u32 [#allocation4], 4
      %s29 = int_to_ptr.vmem [resolvable:$true] %s28
      %34 = dma.hbm_to_vmem [thread:$0]  %s2, 4096, %s29, [#allocation5], 256, 256, 16
    $region13: #{fwd.1} parent=1 // pred_fallthru
      _
    // Predicated region
    $region14: #{fwd.1} parent=1 // pred_check
      _
    $region15: #{fwd.1} parent=1 // pred_check_branch
      %36 = sbr.rel (0) target = $region17
    $region16: #{fwd.1} parent=1 // pred_region
      _
    $region17: #{fwd.1} parent=1 // pred_fallthru
      _
    // Predicated region
    $region18: #{fwd.1} parent=1 // pred_check
      _
    $region19: #{fwd.1} parent=1 // pred_check_branch
      %38 = sbr.rel (0) target = $region21
    $region20: #{fwd.1} parent=1 // pred_region
      %s40 = ssub.s32 4096, 4096
      %41 = vsyncadd [#allocation7], %s40
      %s42 = sshll.u32 [#allocation6], 4
      %s43 = int_to_ptr.vmem [resolvable:$true] %s42
      %48 = dma.hbm_to_vmem [thread:$0]  %s4, 4096, %s43, [#allocation7], 256, 256, 16
    $region21: #{fwd.1} parent=1 // pred_fallthru
      _
    // Predicated region
    $region22: #{fwd.1} parent=1 // pred_check
      _
    $region23: #{fwd.1} parent=1 // pred_check_branch
      %50 = sbr.rel (0) target = $region25
    $region24: #{fwd.1} parent=1 // pred_region
      %s52 = ssub.s32 4096, 4096
      %53 = vsyncadd [#allocation7], %s52
      %s54 = sshll.u32 [#allocation8], 4
      %s55 = int_to_ptr.vmem [resolvable:$true] %s54
      %60 = dma.hbm_to_vmem [thread:$0]  %s5, 4096, %s55, [#allocation7], 256, 256, 16
    $region25: #{fwd.1} parent=1 // pred_fallthru
      _
    // Predicated region
    $region26: #{fwd.1} parent=1 // pred_check
      _
    $region27: #{fwd.1} parent=1 // pred_check_branch
      %62 = sbr.rel (0) target = $region29
    $region28: #{fwd.1} parent=1 // pred_region
      _
    $region29: #{fwd.1} parent=1 // pred_fallthru
      _
    // Predicated region
    $region30: #{fwd.1} parent=1 // pred_check
      _
    $region31: #{fwd.1} parent=1 // pred_check_branch
      %64 = sbr.rel (0) target = $region33
    $region32: #{fwd.1} parent=1 // pred_region
      _
    $region33: #{fwd.1} parent=1 // pred_fallthru
      _
    // Predicated region
    $region34: #{fwd.1} parent=1 // pred_check
      _
    $region35: #{fwd.1} parent=1 // pred_check_branch
      %66 = sbr.rel (0) target = $region37
    $region36: #{fwd.1} parent=1 // pred_region
      _
    $region37: #{fwd.1} parent=1 // pred_fallthru
      _
    // Predicated region
    $region38: #{fwd.1} parent=1 // pred_check
      _
    $region39: #{fwd.1} parent=1 // pred_check_branch
      %68 = sbr.rel (0) target = $region41
    $region40: #{fwd.1} parent=1 // pred_region
      %s70 = ssub.s32 1024, 1024
      %71 = vsyncadd [#allocation10], %s70
      %s72 = sshll.u32 [#allocation9], 4
      %s73 = int_to_ptr.vmem [resolvable:$true] %s72
      %78 = dma.hbm_to_vmem [thread:$0]  %s9, 1024, %s73, [#allocation10], 64, 64, 4
    $region41: #{fwd.1} parent=1 // pred_fallthru
      _
    // Predicated region
    $region42: #{fwd.1} parent=1 // pred_check
      _
    $region43: #{fwd.1} parent=1 // pred_check_branch
      %80 = sbr.rel (0) target = $region45
    $region44: #{fwd.1} parent=1 // pred_region
      _
    $region45: #{fwd.1} parent=1 // pred_fallthru
      _
    // Predicated region
    $region46: #{fwd.1} parent=1 // pred_check
      _
    $region47: #{fwd.1} parent=1 // pred_check_branch
      %82 = sbr.rel (0) target = $region49
    $region48: #{fwd.1} parent=1 // pred_region
      %83 = dma.done [#allocation5], 4096
    $region49: #{fwd.1} parent=1 // pred_fallthru
      _
    // Predicated region
    $region50: #{fwd.1} parent=1 // pred_check
      _
    $region51: #{fwd.1} parent=1 // pred_check_branch
      %85 = sbr.rel (0) target = $region53
    $region52: #{fwd.1} parent=1 // pred_region
      %86 = dma.done [#allocation7], 4096
    $region53: #{fwd.1} parent=1 // pred_fallthru
      _
    // Predicated region
    $region54: #{fwd.1} parent=1 // pred_check
      _
    $region55: #{fwd.1} parent=1 // pred_check_branch
      %88 = sbr.rel (0) target = $region57
    $region56: #{fwd.1} parent=1 // pred_region
      %89 = dma.done [#allocation7], 4096
    $region57: #{fwd.1} parent=1 // pred_fallthru
      _
    // Predicated region
    $region58: #{fwd.1} parent=1 // pred_check
      _
    $region59: #{fwd.1} parent=1 // pred_check_branch
      %91 = sbr.rel (0) target = $region61
    $region60: #{fwd.1} parent=1 // pred_region
      %92 = dma.done [#allocation10], 1024
    $region61: #{fwd.1} parent=1 // pred_fallthru
      _
    %v94 = vld [vmem:[%s1] sm:$0xff]
    %v95 = vld [vmem:[%s1 + $0x8] sm:$0xff]
    %v96 = vld [vmem:[%s1 + $0x10] sm:$0xff]
    %v97 = vld [vmem:[%s1 + $0x18] sm:$0xff]
    %v98 = vld [vmem:[#allocation4] sm:$0xff]
    %v99 = vld [vmem:[#allocation4 + $0x8] sm:$0xff]
    %v100 = vld [vmem:[#allocation4 + $0x10] sm:$0xff]
    %v101 = vld [vmem:[#allocation4 + $0x18] sm:$0xff]
    %v102 = vld [vmem:[#allocation4 + $0x20] sm:$0xff]
    %v103 = vld [vmem:[#allocation4 + $0x28] sm:$0xff]
    %v104 = vld [vmem:[#allocation4 + $0x30] sm:$0xff]
    %v105 = vld [vmem:[#allocation4 + $0x38] sm:$0xff]
    %v106 = vld [vmem:[#allocation4 + $0x40] sm:$0xff]
    %v107 = vld [vmem:[#allocation4 + $0x48] sm:$0xff]
    %v108 = vld [vmem:[#allocation4 + $0x50] sm:$0xff]
    %v109 = vld [vmem:[#allocation4 + $0x58] sm:$0xff]
    %v110 = vld [vmem:[#allocation4 + $0x60] sm:$0xff]
    %v111 = vld [vmem:[#allocation4 + $0x68] sm:$0xff]
    %v112 = vld [vmem:[#allocation4 + $0x70] sm:$0xff]
    %v113 = vld [vmem:[#allocation4 + $0x78] sm:$0xff]
    %v114 = vld [vmem:[#allocation4 + $0x80] sm:$0xff]
    %v115 = vld [vmem:[#allocation4 + $0x88] sm:$0xff]
    %v116 = vld [vmem:[#allocation4 + $0x90] sm:$0xff]
    %v117 = vld [vmem:[#allocation4 + $0x98] sm:$0xff]
    %v118 = vld [vmem:[#allocation4 + $0xa0] sm:$0xff]
    %v119 = vld [vmem:[#allocation4 + $0xa8] sm:$0xff]
    %v120 = vld [vmem:[#allocation4 + $0xb0] sm:$0xff]
    %v121 = vld [vmem:[#allocation4 + $0xb8] sm:$0xff]
    %v122 = vld [vmem:[#allocation4 + $0xc0] sm:$0xff]
    %v123 = vld [vmem:[#allocation4 + $0xc8] sm:$0xff]
    %v124 = vld [vmem:[#allocation4 + $0xd0] sm:$0xff]
    %v125 = vld [vmem:[#allocation4 + $0xd8] sm:$0xff]
    %v126 = vld [vmem:[#allocation4 + $0xe0] sm:$0xff]
    %v127 = vld [vmem:[#allocation4 + $0xe8] sm:$0xff]
    %v128 = vld [vmem:[#allocation4 + $0xf0] sm:$0xff]
    %v129 = vld [vmem:[#allocation4 + $0xf8] sm:$0xff]
    %v130 = vld [vmem:[%s3] sm:$0xf]
    %v131 = vld [vmem:[%s0] sm:$0xff]
    %v132 = vld [vmem:[%s0 + $0x8] sm:$0xff]
    %v133 = vld [vmem:[%s0 + $0x10] sm:$0xff]
    %v134 = vld [vmem:[%s0 + $0x18] sm:$0xff]
    %v135 = vld [vmem:[%s0 + $0x20] sm:$0xff]
    %v136 = vld [vmem:[%s0 + $0x28] sm:$0xff]
    %v137 = vld [vmem:[%s0 + $0x30] sm:$0xff]
    %v138 = vld [vmem:[%s0 + $0x38] sm:$0xff]
    %v139 = vpack.c.bf16 %v132, %v131
    %v140 = vpack.c.bf16 %v134, %v133
    %v141 = vpack.c.bf16 %v136, %v135
    %v142 = vpack.c.bf16 %v138, %v137
    %v144 = vlaneseq
    %v145 = vshrl.u32 %v144, 7
    %v146 = vsub.s32 0, %v145
    %v147 = vrot.slane %v130, %v146
    %v148 = vlaneseq
    %v149 = vshrl.u32 %v148, 7
    %v150 = vsub.s32 1, %v149
    %v151 = vrot.slane %v130, %v150
    %v152 = vlaneseq
    %v153 = vshrl.u32 %v152, 7
    %v154 = vsub.s32 2, %v153
    %v155 = vrot.slane %v130, %v154
    %v156 = vlaneseq
    %v157 = vshrl.u32 %v156, 7
    %v158 = vsub.s32 3, %v157
    %v159 = vrot.slane %v130, %v158
    %v168 = vunpack.c.l.b16 %v94
    %v169 = vunpack.c.h.b16 %v94
    %v170 = vunpack.c.l.b16 %v95
    %v171 = vunpack.c.h.b16 %v95
    %v172 = vunpack.c.l.b16 %v96
    %v173 = vunpack.c.h.b16 %v96
    %v174 = vunpack.c.l.b16 %v97
    %v175 = vunpack.c.h.b16 %v97
    %v176 = vpack.c.b16 %v172, %v168
    %v177 = vpack.c.b16 %v173, %v169
    %v178 = vpack.c.b16 %v174, %v170
    %v179 = vpack.c.b16 %v175, %v171
    %vm184 = vcmask 130048
    %v186 = vsel %vm184, %v139, 0
    %v189 = vsel %vm184, %v140, 0
    %v192 = vsel %vm184, %v141, 0
    %v195 = vsel %vm184, %v142, 0
    %197 = vmatprep.subr.bf16.mxu0 %v177
    %198 = vmatpush1.bf16.msra.mxu0 %v176
    %199 = vmatprep.subr.bf16.mxu0 0
    %200 = vmatpush1.bf16.msra.mxu0 0
    %201 = vmatprep.subr.bf16.mxu0 0
    %202 = vmatpush1.bf16.msra.mxu0 0
    %203 = vmatprep.subr.bf16.mxu0 0
    %204 = vmatpush1.bf16.msra.mxu0 0
    %205 = vmatprep.subr.bf16.mxu0 0
    %206 = vmatpush1.bf16.msra.mxu0 0
    %207 = vmatprep.subr.bf16.mxu0 0
    %208 = vmatpush1.bf16.msra.mxu0 0
    %209 = vmatprep.subr.bf16.mxu0 0
    %210 = vmatpush1.bf16.msra.mxu0 0
    %211 = vmatprep.subr.bf16.mxu0 0
    %212 = vmatpush1.bf16.msra.mxu0 0
    %213 = vmatprep.subr.bf16.mxu0 0
    %214 = vmatpush1.bf16.msra.mxu0 0
    %215 = vmatprep.subr.bf16.mxu0 0
    %216 = vmatpush1.bf16.msra.mxu0 0
    %217 = vmatprep.subr.bf16.mxu0 0
    %218 = vmatpush1.bf16.msra.mxu0 0
    %219 = vmatprep.subr.bf16.mxu0 0
    %220 = vmatpush1.bf16.msra.mxu0 0
    %221 = vmatprep.subr.bf16.mxu0 0
    %222 = vmatpush1.bf16.msra.mxu0 0
    %223 = vmatprep.subr.bf16.mxu0 0
    %224 = vmatpush1.bf16.msra.mxu0 0
    %225 = vmatprep.subr.bf16.mxu0 0
    %226 = vmatpush1.bf16.msra.mxu0 0
    %227 = vmatprep.subr.bf16.mxu0 0
    %228 = vmatpush1.bf16.msra.mxu0 0
    %229 = vmatprep.mubr.bf16.mxu0 0
    %230 = vmatmul.mubr.bf16.gmra.mrb[0].mxu0 %v186
    %v231 = vpop.f32.mrb[0].mxu0
    %v232 = vadd.f32 %v147, %v231
    %v233 = vpop.f32.mrb[0].mxu0
    %v234 = vadd.f32 %v151, %v233
    %v235 = vpop.f32.mrb[0].mxu0
    %v236 = vadd.f32 %v147, %v235
    %v237 = vpop.f32.mrb[0].mxu0
    %v238 = vadd.f32 %v151, %v237
    %239 = vmatprep.mubr.bf16.mxu0 0
    %240 = vmatmul.mubr.bf16.gmra.mrb[0].mxu0 %v189
    %v241 = vpop.f32.mrb[0].mxu0
    %v242 = vadd.f32 %v147, %v241
    %v243 = vpop.f32.mrb[0].mxu0
    %v244 = vadd.f32 %v151, %v243
    %v245 = vpop.f32.mrb[0].mxu0
    %v246 = vadd.f32 %v147, %v245
    %v247 = vpop.f32.mrb[0].mxu0
    %v248 = vadd.f32 %v151, %v247
    %249 = vmatprep.mubr.bf16.mxu0 0
    %250 = vmatmul.mubr.bf16.gmra.mrb[0].mxu0 %v192
    %v251 = vpop.f32.mrb[0].mxu0
    %v252 = vadd.f32 %v147, %v251
    %v253 = vpop.f32.mrb[0].mxu0
    %v254 = vadd.f32 %v151, %v253
    %v255 = vpop.f32.mrb[0].mxu0
    %v256 = vadd.f32 %v147, %v255
    %v257 = vpop.f32.mrb[0].mxu0
    %v258 = vadd.f32 %v151, %v257
    %259 = vmatprep.mubr.bf16.mxu0 0
    %260 = vmatmul.mubr.bf16.gmra.mrb[0].mxu0 %v195
    %v261 = vpop.f32.mrb[0].mxu0
    %v262 = vadd.f32 %v147, %v261
    %v263 = vpop.f32.mrb[0].mxu0
    %v264 = vadd.f32 %v151, %v263
    %v265 = vpop.f32.mrb[0].mxu0
    %v266 = vadd.f32 %v147, %v265
    %v267 = vpop.f32.mrb[0].mxu0
    %v268 = vadd.f32 %v151, %v267
    %269 = vdwg.mxu0
    %270 = vmatprep.subr.bf16.mxu0 %v179
    %271 = vmatpush1.bf16.msra.mxu0 %v178
    %272 = vmatprep.subr.bf16.mxu0 0
    %273 = vmatpush1.bf16.msra.mxu0 0
    %274 = vmatprep.subr.bf16.mxu0 0
    %275 = vmatpush1.bf16.msra.mxu0 0
    %276 = vmatprep.subr.bf16.mxu0 0
    %277 = vmatpush1.bf16.msra.mxu0 0
    %278 = vmatprep.subr.bf16.mxu0 0
    %279 = vmatpush1.bf16.msra.mxu0 0
    %280 = vmatprep.subr.bf16.mxu0 0
    %281 = vmatpush1.bf16.msra.mxu0 0
    %282 = vmatprep.subr.bf16.mxu0 0
    %283 = vmatpush1.bf16.msra.mxu0 0
    %284 = vmatprep.subr.bf16.mxu0 0
    %285 = vmatpush1.bf16.msra.mxu0 0
    %286 = vmatprep.subr.bf16.mxu0 0
    %287 = vmatpush1.bf16.msra.mxu0 0
    %288 = vmatprep.subr.bf16.mxu0 0
    %289 = vmatpush1.bf16.msra.mxu0 0
    %290 = vmatprep.subr.bf16.mxu0 0
    %291 = vmatpush1.bf16.msra.mxu0 0
    %292 = vmatprep.subr.bf16.mxu0 0
    %293 = vmatpush1.bf16.msra.mxu0 0
    %294 = vmatprep.subr.bf16.mxu0 0
    %295 = vmatpush1.bf16.msra.mxu0 0
    %296 = vmatprep.subr.bf16.mxu0 0
    %297 = vmatpush1.bf16.msra.mxu0 0
    %298 = vmatprep.subr.bf16.mxu0 0
    %299 = vmatpush1.bf16.msra.mxu0 0
    %300 = vmatprep.subr.bf16.mxu0 0
    %301 = vmatpush1.bf16.msra.mxu0 0
    %302 = vmatprep.mubr.bf16.mxu0 0
    %303 = vmatmul.mubr.bf16.gmra.mrb[0].mxu0 %v186
    %v304 = vpop.f32.mrb[0].mxu0
    %v305 = vadd.f32 %v155, %v304
    %v306 = vpop.f32.mrb[0].mxu0
    %v307 = vadd.f32 %v159, %v306
    %v308 = vpop.f32.mrb[0].mxu0
    %v309 = vadd.f32 %v155, %v308
    %v310 = vpop.f32.mrb[0].mxu0
    %v311 = vadd.f32 %v159, %v310
    %312 = vmatprep.mubr.bf16.mxu0 0
    %313 = vmatmul.mubr.bf16.gmra.mrb[0].mxu0 %v189
    %v314 = vpop.f32.mrb[0].mxu0
    %v315 = vadd.f32 %v155, %v314
    %v316 = vpop.f32.mrb[0].mxu0
    %v317 = vadd.f32 %v159, %v316
    %v318 = vpop.f32.mrb[0].mxu0
    %v319 = vadd.f32 %v155, %v318
    %v320 = vpop.f32.mrb[0].mxu0
    %v321 = vadd.f32 %v159, %v320
    %322 = vmatprep.mubr.bf16.mxu0 0
    %323 = vmatmul.mubr.bf16.gmra.mrb[0].mxu0 %v192
    %v324 = vpop.f32.mrb[0].mxu0
    %v325 = vadd.f32 %v155, %v324
    %v326 = vpop.f32.mrb[0].mxu0
    %v327 = vadd.f32 %v159, %v326
    %v328 = vpop.f32.mrb[0].mxu0
    %v329 = vadd.f32 %v155, %v328
    %v330 = vpop.f32.mrb[0].mxu0
    %v331 = vadd.f32 %v159, %v330
    %332 = vmatprep.mubr.bf16.mxu0 0
    %333 = vmatmul.mubr.bf16.gmra.mrb[0].mxu0 %v195
    %v334 = vpop.f32.mrb[0].mxu0
    %v335 = vadd.f32 %v155, %v334
    %v336 = vpop.f32.mrb[0].mxu0
    %v337 = vadd.f32 %v159, %v336
    %v338 = vpop.f32.mrb[0].mxu0
    %v339 = vadd.f32 %v155, %v338
    %v340 = vpop.f32.mrb[0].mxu0
    %v341 = vadd.f32 %v159, %v340
    %342 = vdwg.mxu0
    %343 = vst [vmem:[#allocation2] sm:$0xff] %v232
    %344 = vst [vmem:[#allocation2 + $0x8] sm:$0xff] %v234
    %345 = vst [vmem:[#allocation2 + $0x10] sm:$0xff] %v305
    %346 = vst [vmem:[#allocation2 + $0x18] sm:$0xff] %v307
    %347 = vst [vmem:[#allocation2 + $0x20] sm:$0xff] %v236
    %348 = vst [vmem:[#allocation2 + $0x28] sm:$0xff] %v238
    %349 = vst [vmem:[#allocation2 + $0x30] sm:$0xff] %v309
    %350 = vst [vmem:[#allocation2 + $0x38] sm:$0xff] %v311
    %351 = vst [vmem:[#allocation2 + $0x40] sm:$0xff] %v242
    %352 = vst [vmem:[#allocation2 + $0x48] sm:$0xff] %v244
    %353 = vst [vmem:[#allocation2 + $0x50] sm:$0xff] %v315
    %354 = vst [vmem:[#allocation2 + $0x58] sm:$0xff] %v317
    %355 = vst [vmem:[#allocation2 + $0x60] sm:$0xff] %v246
    %356 = vst [vmem:[#allocation2 + $0x68] sm:$0xff] %v248
    %357 = vst [vmem:[#allocation2 + $0x70] sm:$0xff] %v319
    %358 = vst [vmem:[#allocation2 + $0x78] sm:$0xff] %v321
    %359 = vst [vmem:[#allocation2 + $0x80] sm:$0xff] %v252
    %360 = vst [vmem:[#allocation2 + $0x88] sm:$0xff] %v254
    %361 = vst [vmem:[#allocation2 + $0x90] sm:$0xff] %v325
    %362 = vst [vmem:[#allocation2 + $0x98] sm:$0xff] %v327
    %363 = vst [vmem:[#allocation2 + $0xa0] sm:$0xff] %v256
    %364 = vst [vmem:[#allocation2 + $0xa8] sm:$0xff] %v258
    %365 = vst [vmem:[#allocation2 + $0xb0] sm:$0xff] %v329
    %366 = vst [vmem:[#allocation2 + $0xb8] sm:$0xff] %v331
    %367 = vst [vmem:[#allocation2 + $0xc0] sm:$0xff] %v262
    %368 = vst [vmem:[#allocation2 + $0xc8] sm:$0xff] %v264
    %369 = vst [vmem:[#allocation2 + $0xd0] sm:$0xff] %v335
    %370 = vst [vmem:[#allocation2 + $0xd8] sm:$0xff] %v337
    %371 = vst [vmem:[#allocation2 + $0xe0] sm:$0xff] %v266
    %372 = vst [vmem:[#allocation2 + $0xe8] sm:$0xff] %v268
    %373 = vst [vmem:[#allocation2 + $0xf0] sm:$0xff] %v339
    %374 = vst [vmem:[#allocation2 + $0xf8] sm:$0xff] %v341
    %v375 = vld [vmem:[#allocation2] sm:$0xff]
    %v376 = vld [vmem:[#allocation2 + $0x8] sm:$0xff]
    %v377 = vld [vmem:[#allocation2 + $0x10] sm:$0xff]
    %v378 = vld [vmem:[#allocation2 + $0x18] sm:$0xff]
    %v411 = vunpack.c.l.b16 %v98
    %v412 = vunpack.c.h.b16 %v98
    %v413 = vunpack.c.l.b16 %v99
    %v414 = vunpack.c.h.b16 %v99
    %v415 = vunpack.c.l.b16 %v100
    %v416 = vunpack.c.h.b16 %v100
    %v417 = vunpack.c.l.b16 %v101
    %v418 = vunpack.c.h.b16 %v101
    %v419 = vunpack.c.l.b16 %v102
    %v420 = vunpack.c.h.b16 %v102
    %v421 = vunpack.c.l.b16 %v103
    %v422 = vunpack.c.h.b16 %v103
    %v423 = vunpack.c.l.b16 %v104
    %v424 = vunpack.c.h.b16 %v104
    %v425 = vunpack.c.l.b16 %v105
    %v426 = vunpack.c.h.b16 %v105
    %v427 = vunpack.c.l.b16 %v106
    %v428 = vunpack.c.h.b16 %v106
    %v429 = vunpack.c.l.b16 %v107
    %v430 = vunpack.c.h.b16 %v107
    %v431 = vunpack.c.l.b16 %v108
    %v432 = vunpack.c.h.b16 %v108
    %v433 = vunpack.c.l.b16 %v109
    %v434 = vunpack.c.h.b16 %v109
    %v435 = vunpack.c.l.b16 %v110
    %v436 = vunpack.c.h.b16 %v110
    %v437 = vunpack.c.l.b16 %v111
    %v438 = vunpack.c.h.b16 %v111
    %v439 = vunpack.c.l.b16 %v112
    %v440 = vunpack.c.h.b16 %v112
    %v441 = vunpack.c.l.b16 %v113
    %v442 = vunpack.c.h.b16 %v113
    %v443 = vunpack.c.l.b16 %v114
    %v444 = vunpack.c.h.b16 %v114
    %v445 = vunpack.c.l.b16 %v115
    %v446 = vunpack.c.h.b16 %v115
    %v447 = vunpack.c.l.b16 %v116
    %v448 = vunpack.c.h.b16 %v116
    %v449 = vunpack.c.l.b16 %v117
    %v450 = vunpack.c.h.b16 %v117
    %v451 = vunpack.c.l.b16 %v118
    %v452 = vunpack.c.h.b16 %v118
    %v453 = vunpack.c.l.b16 %v119
    %v454 = vunpack.c.h.b16 %v119
    %v455 = vunpack.c.l.b16 %v120
    %v456 = vunpack.c.h.b16 %v120
    %v457 = vunpack.c.l.b16 %v121
    %v458 = vunpack.c.h.b16 %v121
    %v459 = vunpack.c.l.b16 %v122
    %v460 = vunpack.c.h.b16 %v122
    %v461 = vunpack.c.l.b16 %v123
    %v462 = vunpack.c.h.b16 %v123
    %v463 = vunpack.c.l.b16 %v124
    %v464 = vunpack.c.h.b16 %v124
    %v465 = vunpack.c.l.b16 %v125
    %v466 = vunpack.c.h.b16 %v125
    %v467 = vunpack.c.l.b16 %v126
    %v468 = vunpack.c.h.b16 %v126
    %v469 = vunpack.c.l.b16 %v127
    %v470 = vunpack.c.h.b16 %v127
    %v471 = vunpack.c.l.b16 %v128
    %v472 = vunpack.c.h.b16 %v128
    %v473 = vunpack.c.l.b16 %v129
    %v474 = vunpack.c.h.b16 %v129
    %v475 = vpack.c.b16 %v415, %v411
    %v476 = vpack.c.b16 %v416, %v412
    %v477 = vpack.c.b16 %v417, %v413
    %v478 = vpack.c.b16 %v418, %v414
    %v479 = vpack.c.b16 %v423, %v419
    %v480 = vpack.c.b16 %v424, %v420
    %v481 = vpack.c.b16 %v425, %v421
    %v482 = vpack.c.b16 %v426, %v422
    %v483 = vpack.c.b16 %v431, %v427
    %v484 = vpack.c.b16 %v432, %v428
    %v485 = vpack.c.b16 %v433, %v429
    %v486 = vpack.c.b16 %v434, %v430
    %v487 = vpack.c.b16 %v439, %v435
    %v488 = vpack.c.b16 %v440, %v436
    %v489 = vpack.c.b16 %v441, %v437
    %v490 = vpack.c.b16 %v442, %v438
    %v491 = vpack.c.b16 %v447, %v443
    %v492 = vpack.c.b16 %v448, %v444
    %v493 = vpack.c.b16 %v449, %v445
    %v494 = vpack.c.b16 %v450, %v446
    %v495 = vpack.c.b16 %v455, %v451
    %v496 = vpack.c.b16 %v456, %v452
    %v497 = vpack.c.b16 %v457, %v453
    %v498 = vpack.c.b16 %v458, %v454
    %v499 = vpack.c.b16 %v463, %v459
    %v500 = vpack.c.b16 %v464, %v460
    %v501 = vpack.c.b16 %v465, %v461
    %v502 = vpack.c.b16 %v466, %v462
    %v503 = vpack.c.b16 %v471, %v467
    %v504 = vpack.c.b16 %v472, %v468
    %v505 = vpack.c.b16 %v473, %v469
    %v506 = vpack.c.b16 %v474, %v470
    %539 = vmatprep.subr.bf16.mxu0 %v476
    %540 = vmatpush1.bf16.msra.mxu0 %v475
    %541 = vmatprep.subr.bf16.mxu0 %v480
    %542 = vmatpush1.bf16.msra.mxu0 %v479
    %543 = vmatprep.subr.bf16.mxu0 %v484
    %544 = vmatpush1.bf16.msra.mxu0 %v483
    %545 = vmatprep.subr.bf16.mxu0 %v488
    %546 = vmatpush1.bf16.msra.mxu0 %v487
    %547 = vmatprep.subr.bf16.mxu0 %v492
    %548 = vmatpush1.bf16.msra.mxu0 %v491
    %549 = vmatprep.subr.bf16.mxu0 %v496
    %550 = vmatpush1.bf16.msra.mxu0 %v495
    %551 = vmatprep.subr.bf16.mxu0 %v500
    %552 = vmatpush1.bf16.msra.mxu0 %v499
    %553 = vmatprep.subr.bf16.mxu0 %v504
    %554 = vmatpush1.bf16.msra.mxu0 %v503
    %555 = vmatprep.subr.bf16.mxu0 0
    %556 = vmatpush1.bf16.msra.mxu0 0
    %557 = vmatprep.subr.bf16.mxu0 0
    %558 = vmatpush1.bf16.msra.mxu0 0
    %559 = vmatprep.subr.bf16.mxu0 0
    %560 = vmatpush1.bf16.msra.mxu0 0
    %561 = vmatprep.subr.bf16.mxu0 0
    %562 = vmatpush1.bf16.msra.mxu0 0
    %563 = vmatprep.subr.bf16.mxu0 0
    %564 = vmatpush1.bf16.msra.mxu0 0
    %565 = vmatprep.subr.bf16.mxu0 0
    %566 = vmatpush1.bf16.msra.mxu0 0
    %567 = vmatprep.subr.bf16.mxu0 0
    %568 = vmatpush1.bf16.msra.mxu0 0
    %569 = vmatprep.subr.bf16.mxu0 0
    %570 = vmatpush1.bf16.msra.mxu0 0
    %571 = vmatprep.mubr.bf16.mxu0 0
    %572 = vmatmul.mubr.bf16.gmra.mrb[0].mxu0 0
    %v573 = vpop.f32.mrb[0].mxu0
    %v574 = vadd.f32 0.0, %v573
    %v575 = vpop.f32.mrb[0].mxu0
    %v576 = vadd.f32 0.0, %v575
    %v577 = vpop.f32.mrb[0].mxu0
    %v578 = vpop.f32.mrb[0].mxu0
    %579 = vdwg.mxu0
    %580 = vmatprep.subr.bf16.mxu0 %v478
    %581 = vmatpush1.bf16.msra.mxu0 %v477
    %582 = vmatprep.subr.bf16.mxu0 %v482
    %583 = vmatpush1.bf16.msra.mxu0 %v481
    %584 = vmatprep.subr.bf16.mxu0 %v486
    %585 = vmatpush1.bf16.msra.mxu0 %v485
    %586 = vmatprep.subr.bf16.mxu0 %v490
    %587 = vmatpush1.bf16.msra.mxu0 %v489
    %588 = vmatprep.subr.bf16.mxu0 %v494
    %589 = vmatpush1.bf16.msra.mxu0 %v493
    %590 = vmatprep.subr.bf16.mxu0 %v498
    %591 = vmatpush1.bf16.msra.mxu0 %v497
    %592 = vmatprep.subr.bf16.mxu0 %v502
    %593 = vmatpush1.bf16.msra.mxu0 %v501
    %594 = vmatprep.subr.bf16.mxu0 %v506
    %595 = vmatpush1.bf16.msra.mxu0 %v505
    %596 = vmatprep.subr.bf16.mxu0 0
    %597 = vmatpush1.bf16.msra.mxu0 0
    %598 = vmatprep.subr.bf16.mxu0 0
    %599 = vmatpush1.bf16.msra.mxu0 0
    %600 = vmatprep.subr.bf16.mxu0 0
    %601 = vmatpush1.bf16.msra.mxu0 0
    %602 = vmatprep.subr.bf16.mxu0 0
    %603 = vmatpush1.bf16.msra.mxu0 0
    %604 = vmatprep.subr.bf16.mxu0 0
    %605 = vmatpush1.bf16.msra.mxu0 0
    %606 = vmatprep.subr.bf16.mxu0 0
    %607 = vmatpush1.bf16.msra.mxu0 0
    %608 = vmatprep.subr.bf16.mxu0 0
    %609 = vmatpush1.bf16.msra.mxu0 0
    %610 = vmatprep.subr.bf16.mxu0 0
    %611 = vmatpush1.bf16.msra.mxu0 0
    %612 = vmatprep.mubr.bf16.mxu0 0
    %613 = vmatmul.mubr.bf16.gmra.mrb[0].mxu0 0
    %v614 = vpop.f32.mrb[0].mxu0
    %v615 = vadd.f32 0.0, %v614
    %v616 = vpop.f32.mrb[0].mxu0
    %v617 = vadd.f32 0.0, %v616
    %v618 = vpop.f32.mrb[0].mxu0
    %v619 = vpop.f32.mrb[0].mxu0
    %620 = vdwg.mxu0
    %v621 = vadd.f32 %v375, %v574
    %v622 = vadd.f32 %v376, %v576
    %v623 = vadd.f32 %v377, %v615
    %v624 = vadd.f32 %v378, %v617
    %v625 = vxor.u32 %v621, 2147483648
    %v626 = vxor.u32 %v622, 2147483648
    %v627 = vxor.u32 %v623, 2147483648
    %v628 = vmul.f32 %v625, 1.442695
    %v629 = vpow.pop %v628
    %v630 = vmul.f32 %v626, 1.442695
    %v631 = vpow.pop %v630
    %v632 = vmul.f32 %v627, 1.442695
    %v633 = vpow.pop %v632
    %v634 = vadd.f32 %v629, 1.0
    %v635 = vadd.f32 %v631, 1.0
    %v636 = vadd.f32 %v633, 1.0
    %v637 = vrcp.pop %v634
    %v638 = vmul.f32 1.0, %v637
    %v639 = vrcp.pop %v635
    %v640 = vmul.f32 1.0, %v639
    %v641 = vrcp.pop %v636
    %v642 = vmul.f32 1.0, %v641
    %v643 = vtanh.pop %v624
    %v644 = vmul.f32 %v640, 0.0
    %v645 = vmul.f32 %v638, %v643
    %v646 = vadd.f32 %v644, %v645
    %v647 = vtanh.pop %v646
    %v648 = vmul.f32 %v642, %v647
    %649 = vst [vmem:[#allocation3] sm:$0xff] %v648
    %v650 = vld [vmem:[#allocation2 + $0x20] sm:$0xff]
    %v651 = vld [vmem:[#allocation2 + $0x28] sm:$0xff]
    %v652 = vld [vmem:[#allocation2 + $0x30] sm:$0xff]
    %v653 = vld [vmem:[#allocation2 + $0x38] sm:$0xff]
    %v654 = vpack.c.bf16 %v648, %v648
    %655 = vmatprep.subr.bf16.mxu0 %v476
    %656 = vmatpush1.bf16.msra.mxu0 %v475
    %657 = vmatprep.subr.bf16.mxu0 %v480
    %658 = vmatpush1.bf16.msra.mxu0 %v479
    %659 = vmatprep.subr.bf16.mxu0 %v484
    %660 = vmatpush1.bf16.msra.mxu0 %v483
    %661 = vmatprep.subr.bf16.mxu0 %v488
    %662 = vmatpush1.bf16.msra.mxu0 %v487
    %663 = vmatprep.subr.bf16.mxu0 %v492
    %664 = vmatpush1.bf16.msra.mxu0 %v491
    %665 = vmatprep.subr.bf16.mxu0 %v496
    %666 = vmatpush1.bf16.msra.mxu0 %v495
    %667 = vmatprep.subr.bf16.mxu0 %v500
    %668 = vmatpush1.bf16.msra.mxu0 %v499
    %669 = vmatprep.subr.bf16.mxu0 %v504
    %670 = vmatpush1.bf16.msra.mxu0 %v503
    %671 = vmatprep.subr.bf16.mxu0 0
    %672 = vmatpush1.bf16.msra.mxu0 0
    %673 = vmatprep.subr.bf16.mxu0 0
    %674 = vmatpush1.bf16.msra.mxu0 0
    %675 = vmatprep.subr.bf16.mxu0 0
    %676 = vmatpush1.bf16.msra.mxu0 0
    %677 = vmatprep.subr.bf16.mxu0 0
    %678 = vmatpush1.bf16.msra.mxu0 0
    %679 = vmatprep.subr.bf16.mxu0 0
    %680 = vmatpush1.bf16.msra.mxu0 0
    %681 = vmatprep.subr.bf16.mxu0 0
    %682 = vmatpush1.bf16.msra.mxu0 0
    %683 = vmatprep.subr.bf16.mxu0 0
    %684 = vmatpush1.bf16.msra.mxu0 0
    %685 = vmatprep.subr.bf16.mxu0 0
    %686 = vmatpush1.bf16.msra.mxu0 0
    %687 = vmatprep.mubr.bf16.mxu0 0
    %688 = vmatmul.mubr.bf16.gmra.mrb[0].mxu0 %v654
    %v689 = vpop.f32.mrb[0].mxu0
    %v690 = vadd.f32 0.0, %v689
    %v691 = vpop.f32.mrb[0].mxu0
    %v692 = vadd.f32 0.0, %v691
    %v693 = vpop.f32.mrb[0].mxu0
    %v694 = vpop.f32.mrb[0].mxu0
    %695 = vdwg.mxu0
    %696 = vmatprep.subr.bf16.mxu0 %v478
    %697 = vmatpush1.bf16.msra.mxu0 %v477
    %698 = vmatprep.subr.bf16.mxu0 %v482
    %699 = vmatpush1.bf16.msra.mxu0 %v481
    %700 = vmatprep.subr.bf16.mxu0 %v486
    %701 = vmatpush1.bf16.msra.mxu0 %v485
    %702 = vmatprep.subr.bf16.mxu0 %v490
    %703 = vmatpush1.bf16.msra.mxu0 %v489
    %704 = vmatprep.subr.bf16.mxu0 %v494
    %705 = vmatpush1.bf16.msra.mxu0 %v493
    %706 = vmatprep.subr.bf16.mxu0 %v498
    %707 = vmatpush1.bf16.msra.mxu0 %v497
    %708 = vmatprep.subr.bf16.mxu0 %v502
    %709 = vmatpush1.bf16.msra.mxu0 %v501
    %710 = vmatprep.subr.bf16.mxu0 %v506
    %711 = vmatpush1.bf16.msra.mxu0 %v505
    %712 = vmatprep.subr.bf16.mxu0 0
    %713 = vmatpush1.bf16.msra.mxu0 0
    %714 = vmatprep.subr.bf16.mxu0 0
    %715 = vmatpush1.bf16.msra.mxu0 0
    %716 = vmatprep.subr.bf16.mxu0 0
    %717 = vmatpush1.bf16.msra.mxu0 0
    %718 = vmatprep.subr.bf16.mxu0 0
    %719 = vmatpush1.bf16.msra.mxu0 0
    %720 = vmatprep.subr.bf16.mxu0 0
    %721 = vmatpush1.bf16.msra.mxu0 0
    %722 = vmatprep.subr.bf16.mxu0 0
    %723 = vmatpush1.bf16.msra.mxu0 0
    %724 = vmatprep.subr.bf16.mxu0 0
    %725 = vmatpush1.bf16.msra.mxu0 0
    %726 = vmatprep.subr.bf16.mxu0 0
    %727 = vmatpush1.bf16.msra.mxu0 0
    %728 = vmatprep.mubr.bf16.mxu0 0
    %729 = vmatmul.mubr.bf16.gmra.mrb[0].mxu0 %v654
    %v730 = vpop.f32.mrb[0].mxu0
    %v731 = vadd.f32 0.0, %v730
    %v732 = vpop.f32.mrb[0].mxu0
    %v733 = vadd.f32 0.0, %v732
    %v734 = vpop.f32.mrb[0].mxu0
    %v735 = vpop.f32.mrb[0].mxu0
    %736 = vdwg.mxu0
    %v737 = vadd.f32 %v650, %v690
    %v738 = vadd.f32 %v651, %v692
    %v739 = vadd.f32 %v652, %v731
    %v740 = vadd.f32 %v653, %v733
    %v741 = vxor.u32 %v737, 2147483648
    %v742 = vxor.u32 %v738, 2147483648
    %v743 = vxor.u32 %v739, 2147483648
    %v744 = vmul.f32 %v741, 1.442695
    %v745 = vpow.pop %v744
    %v746 = vmul.f32 %v742, 1.442695
    %v747 = vpow.pop %v746
    %v748 = vmul.f32 %v743, 1.442695
    %v749 = vpow.pop %v748
    %v750 = vadd.f32 %v745, 1.0
    %v751 = vadd.f32 %v747, 1.0
    %v752 = vadd.f32 %v749, 1.0
    %v753 = vrcp.pop %v750
    %v754 = vmul.f32 1.0, %v753
    %v755 = vrcp.pop %v751
    %v756 = vmul.f32 1.0, %v755
    %v757 = vrcp.pop %v752
    %v758 = vmul.f32 1.0, %v757
    %v759 = vtanh.pop %v740
    %v760 = vmul.f32 %v756, %v646
    %v761 = vmul.f32 %v754, %v759
    %v762 = vadd.f32 %v760, %v761
    %v763 = vtanh.pop %v762
    %v764 = vmul.f32 %v758, %v763
    %765 = vst [vmem:[#allocation3 + $0x8] sm:$0xff] %v764
    %v766 = vld [vmem:[#allocation2 + $0x40] sm:$0xff]
    %v767 = vld [vmem:[#allocation2 + $0x48] sm:$0xff]
    %v768 = vld [vmem:[#allocation2 + $0x50] sm:$0xff]
    %v769 = vld [vmem:[#allocation2 + $0x58] sm:$0xff]
    %v770 = vpack.c.bf16 %v764, %v764
    %771 = vmatprep.subr.bf16.mxu0 %v476
    %772 = vmatpush1.bf16.msra.mxu0 %v475
    %773 = vmatprep.subr.bf16.mxu0 %v480
    %774 = vmatpush1.bf16.msra.mxu0 %v479
    %775 = vmatprep.subr.bf16.mxu0 %v484
    %776 = vmatpush1.bf16.msra.mxu0 %v483
    %777 = vmatprep.subr.bf16.mxu0 %v488
    %778 = vmatpush1.bf16.msra.mxu0 %v487
    %779 = vmatprep.subr.bf16.mxu0 %v492
    %780 = vmatpush1.bf16.msra.mxu0 %v491
    %781 = vmatprep.subr.bf16.mxu0 %v496
    %782 = vmatpush1.bf16.msra.mxu0 %v495
    %783 = vmatprep.subr.bf16.mxu0 %v500
    %784 = vmatpush1.bf16.msra.mxu0 %v499
    %785 = vmatprep.subr.bf16.mxu0 %v504
    %786 = vmatpush1.bf16.msra.mxu0 %v503
    %787 = vmatprep.subr.bf16.mxu0 0
    %788 = vmatpush1.bf16.msra.mxu0 0
    %789 = vmatprep.subr.bf16.mxu0 0
    %790 = vmatpush1.bf16.msra.mxu0 0
    %791 = vmatprep.subr.bf16.mxu0 0
    %792 = vmatpush1.bf16.msra.mxu0 0
    %793 = vmatprep.subr.bf16.mxu0 0
    %794 = vmatpush1.bf16.msra.mxu0 0
    %795 = vmatprep.subr.bf16.mxu0 0
    %796 = vmatpush1.bf16.msra.mxu0 0
    %797 = vmatprep.subr.bf16.mxu0 0
    %798 = vmatpush1.bf16.msra.mxu0 0
    %799 = vmatprep.subr.bf16.mxu0 0
    %800 = vmatpush1.bf16.msra.mxu0 0
    %801 = vmatprep.subr.bf16.mxu0 0
    %802 = vmatpush1.bf16.msra.mxu0 0
    %803 = vmatprep.mubr.bf16.mxu0 0
    %804 = vmatmul.mubr.bf16.gmra.mrb[0].mxu0 %v770
    %v805 = vpop.f32.mrb[0].mxu0
    %v806 = vadd.f32 0.0, %v805
    %v807 = vpop.f32.mrb[0].mxu0
    %v808 = vadd.f32 0.0, %v807
    %v809 = vpop.f32.mrb[0].mxu0
    %v810 = vpop.f32.mrb[0].mxu0
    %811 = vdwg.mxu0
    %812 = vmatprep.subr.bf16.mxu0 %v478
    %813 = vmatpush1.bf16.msra.mxu0 %v477
    %814 = vmatprep.subr.bf16.mxu0 %v482
    %815 = vmatpush1.bf16.msra.mxu0 %v481
    %816 = vmatprep.subr.bf16.mxu0 %v486
    %817 = vmatpush1.bf16.msra.mxu0 %v485
    %818 = vmatprep.subr.bf16.mxu0 %v490
    %819 = vmatpush1.bf16.msra.mxu0 %v489
    %820 = vmatprep.subr.bf16.mxu0 %v494
    %821 = vmatpush1.bf16.msra.mxu0 %v493
    %822 = vmatprep.subr.bf16.mxu0 %v498
    %823 = vmatpush1.bf16.msra.mxu0 %v497
    %824 = vmatprep.subr.bf16.mxu0 %v502
    %825 = vmatpush1.bf16.msra.mxu0 %v501
    %826 = vmatprep.subr.bf16.mxu0 %v506
    %827 = vmatpush1.bf16.msra.mxu0 %v505
    %828 = vmatprep.subr.bf16.mxu0 0
    %829 = vmatpush1.bf16.msra.mxu0 0
    %830 = vmatprep.subr.bf16.mxu0 0
    %831 = vmatpush1.bf16.msra.mxu0 0
    %832 = vmatprep.subr.bf16.mxu0 0
    %833 = vmatpush1.bf16.msra.mxu0 0
    %834 = vmatprep.subr.bf16.mxu0 0
    %835 = vmatpush1.bf16.msra.mxu0 0
    %836 = vmatprep.subr.bf16.mxu0 0
    %837 = vmatpush1.bf16.msra.mxu0 0
    %838 = vmatprep.subr.bf16.mxu0 0
    %839 = vmatpush1.bf16.msra.mxu0 0
    %840 = vmatprep.subr.bf16.mxu0 0
    %841 = vmatpush1.bf16.msra.mxu0 0
    %842 = vmatprep.subr.bf16.mxu0 0
    %843 = vmatpush1.bf16.msra.mxu0 0
    %844 = vmatprep.mubr.bf16.mxu0 0
    %845 = vmatmul.mubr.bf16.gmra.mrb[0].mxu0 %v770
    %v846 = vpop.f32.mrb[0].mxu0
    %v847 = vadd.f32 0.0, %v846
    %v848 = vpop.f32.mrb[0].mxu0
    %v849 = vadd.f32 0.0, %v848
    %v850 = vpop.f32.mrb[0].mxu0
    %v851 = vpop.f32.mrb[0].mxu0
    %852 = vdwg.mxu0
    %v853 = vadd.f32 %v766, %v806
    %v854 = vadd.f32 %v767, %v808
    %v855 = vadd.f32 %v768, %v847
    %v856 = vadd.f32 %v769, %v849
    %v857 = vxor.u32 %v853, 2147483648
    %v858 = vxor.u32 %v854, 2147483648
    %v859 = vxor.u32 %v855, 2147483648
    %v860 = vmul.f32 %v857, 1.442695
    %v861 = vpow.pop %v860
    %v862 = vmul.f32 %v858, 1.442695
    %v863 = vpow.pop %v862
    %v864 = vmul.f32 %v859, 1.442695
    %v865 = vpow.pop %v864
    %v866 = vadd.f32 %v861, 1.0
    %v867 = vadd.f32 %v863, 1.0
    %v868 = vadd.f32 %v865, 1.0
    %v869 = vrcp.pop %v866
    %v870 = vmul.f32 1.0, %v869
    %v871 = vrcp.pop %v867
    %v872 = vmul.f32 1.0, %v871
    %v873 = vrcp.pop %v868
    %v874 = vmul.f32 1.0, %v873
    %v875 = vtanh.pop %v856
    %v876 = vmul.f32 %v872, %v762
    %v877 = vmul.f32 %v870, %v875
    %v878 = vadd.f32 %v876, %v877
    %v879 = vtanh.pop %v878
    %v880 = vmul.f32 %v874, %v879
    %881 = vst [vmem:[#allocation3 + $0x10] sm:$0xff] %v880
    %v882 = vld [vmem:[#allocation2 + $0x60] sm:$0xff]
    %v883 = vld [vmem:[#allocation2 + $0x68] sm:$0xff]
    %v884 = vld [vmem:[#allocation2 + $0x70] sm:$0xff]
    %v885 = vld [vmem:[#allocation2 + $0x78] sm:$0xff]
    %v886 = vpack.c.bf16 %v880, %v880
    %887 = vmatprep.subr.bf16.mxu0 %v476
    %888 = vmatpush1.bf16.msra.mxu0 %v475
    %889 = vmatprep.subr.bf16.mxu0 %v480
    %890 = vmatpush1.bf16.msra.mxu0 %v479
    %891 = vmatprep.subr.bf16.mxu0 %v484
    %892 = vmatpush1.bf16.msra.mxu0 %v483
    %893 = vmatprep.subr.bf16.mxu0 %v488
    %894 = vmatpush1.bf16.msra.mxu0 %v487
    %895 = vmatprep.subr.bf16.mxu0 %v492
    %896 = vmatpush1.bf16.msra.mxu0 %v491
    %897 = vmatprep.subr.bf16.mxu0 %v496
    %898 = vmatpush1.bf16.msra.mxu0 %v495
    %899 = vmatprep.subr.bf16.mxu0 %v500
    %900 = vmatpush1.bf16.msra.mxu0 %v499
    %901 = vmatprep.subr.bf16.mxu0 %v504
    %902 = vmatpush1.bf16.msra.mxu0 %v503
    %903 = vmatprep.subr.bf16.mxu0 0
    %904 = vmatpush1.bf16.msra.mxu0 0
    %905 = vmatprep.subr.bf16.mxu0 0
    %906 = vmatpush1.bf16.msra.mxu0 0
    %907 = vmatprep.subr.bf16.mxu0 0
    %908 = vmatpush1.bf16.msra.mxu0 0
    %909 = vmatprep.subr.bf16.mxu0 0
    %910 = vmatpush1.bf16.msra.mxu0 0
    %911 = vmatprep.subr.bf16.mxu0 0
    %912 = vmatpush1.bf16.msra.mxu0 0
    %913 = vmatprep.subr.bf16.mxu0 0
    %914 = vmatpush1.bf16.msra.mxu0 0
    %915 = vmatprep.subr.bf16.mxu0 0
    %916 = vmatpush1.bf16.msra.mxu0 0
    %917 = vmatprep.subr.bf16.mxu0 0
    %918 = vmatpush1.bf16.msra.mxu0 0
    %919 = vmatprep.mubr.bf16.mxu0 0
    %920 = vmatmul.mubr.bf16.gmra.mrb[0].mxu0 %v886
    %v921 = vpop.f32.mrb[0].mxu0
    %v922 = vadd.f32 0.0, %v921
    %v923 = vpop.f32.mrb[0].mxu0
    %v924 = vadd.f32 0.0, %v923
    %v925 = vpop.f32.mrb[0].mxu0
    %v926 = vpop.f32.mrb[0].mxu0
    %927 = vdwg.mxu0
    %928 = vmatprep.subr.bf16.mxu0 %v478
    %929 = vmatpush1.bf16.msra.mxu0 %v477
    %930 = vmatprep.subr.bf16.mxu0 %v482
    %931 = vmatpush1.bf16.msra.mxu0 %v481
    %932 = vmatprep.subr.bf16.mxu0 %v486
    %933 = vmatpush1.bf16.msra.mxu0 %v485
    %934 = vmatprep.subr.bf16.mxu0 %v490
    %935 = vmatpush1.bf16.msra.mxu0 %v489
    %936 = vmatprep.subr.bf16.mxu0 %v494
    %937 = vmatpush1.bf16.msra.mxu0 %v493
    %938 = vmatprep.subr.bf16.mxu0 %v498
    %939 = vmatpush1.bf16.msra.mxu0 %v497
    %940 = vmatprep.subr.bf16.mxu0 %v502
    %941 = vmatpush1.bf16.msra.mxu0 %v501
    %942 = vmatprep.subr.bf16.mxu0 %v506
    %943 = vmatpush1.bf16.msra.mxu0 %v505
    %944 = vmatprep.subr.bf16.mxu0 0
    %945 = vmatpush1.bf16.msra.mxu0 0
    %946 = vmatprep.subr.bf16.mxu0 0
    %947 = vmatpush1.bf16.msra.mxu0 0
    %948 = vmatprep.subr.bf16.mxu0 0
    %949 = vmatpush1.bf16.msra.mxu0 0
    %950 = vmatprep.subr.bf16.mxu0 0
    %951 = vmatpush1.bf16.msra.mxu0 0
    %952 = vmatprep.subr.bf16.mxu0 0
    %953 = vmatpush1.bf16.msra.mxu0 0
    %954 = vmatprep.subr.bf16.mxu0 0
    %955 = vmatpush1.bf16.msra.mxu0 0
    %956 = vmatprep.subr.bf16.mxu0 0
    %957 = vmatpush1.bf16.msra.mxu0 0
    %958 = vmatprep.subr.bf16.mxu0 0
    %959 = vmatpush1.bf16.msra.mxu0 0
    %960 = vmatprep.mubr.bf16.mxu0 0
    %961 = vmatmul.mubr.bf16.gmra.mrb[0].mxu0 %v886
    %v962 = vpop.f32.mrb[0].mxu0
    %v963 = vadd.f32 0.0, %v962
    %v964 = vpop.f32.mrb[0].mxu0
    %v965 = vadd.f32 0.0, %v964
    %v966 = vpop.f32.mrb[0].mxu0
    %v967 = vpop.f32.mrb[0].mxu0
    %968 = vdwg.mxu0
    %v969 = vadd.f32 %v882, %v922
    %v970 = vadd.f32 %v883, %v924
    %v971 = vadd.f32 %v884, %v963
    %v972 = vadd.f32 %v885, %v965
    %v973 = vxor.u32 %v969, 2147483648
    %v974 = vxor.u32 %v970, 2147483648
    %v975 = vxor.u32 %v971, 2147483648
    %v976 = vmul.f32 %v973, 1.442695
    %v977 = vpow.pop %v976
    %v978 = vmul.f32 %v974, 1.442695
    %v979 = vpow.pop %v978
    %v980 = vmul.f32 %v975, 1.442695
    %v981 = vpow.pop %v980
    %v982 = vadd.f32 %v977, 1.0
    %v983 = vadd.f32 %v979, 1.0
    %v984 = vadd.f32 %v981, 1.0
    %v985 = vrcp.pop %v982
    %v986 = vmul.f32 1.0, %v985
    %v987 = vrcp.pop %v983
    %v988 = vmul.f32 1.0, %v987
    %v989 = vrcp.pop %v984
    %v990 = vmul.f32 1.0, %v989
    %v991 = vtanh.pop %v972
    %v992 = vmul.f32 %v988, %v878
    %v993 = vmul.f32 %v986, %v991
    %v994 = vadd.f32 %v992, %v993
    %v995 = vtanh.pop %v994
    %v996 = vmul.f32 %v990, %v995
    %997 = vst [vmem:[#allocation3 + $0x18] sm:$0xff] %v996
    %v998 = vld [vmem:[#allocation2 + $0x80] sm:$0xff]
    %v999 = vld [vmem:[#allocation2 + $0x88] sm:$0xff]
    %v1000 = vld [vmem:[#allocation2 + $0x90] sm:$0xff]
    %v1001 = vld [vmem:[#allocation2 + $0x98] sm:$0xff]
    %v1002 = vpack.c.bf16 %v996, %v996
    %1003 = vmatprep.subr.bf16.mxu0 %v476
    %1004 = vmatpush1.bf16.msra.mxu0 %v475
    %1005 = vmatprep.subr.bf16.mxu0 %v480
    %1006 = vmatpush1.bf16.msra.mxu0 %v479
    %1007 = vmatprep.subr.bf16.mxu0 %v484
    %1008 = vmatpush1.bf16.msra.mxu0 %v483
    %1009 = vmatprep.subr.bf16.mxu0 %v488
    %1010 = vmatpush1.bf16.msra.mxu0 %v487
    %1011 = vmatprep.subr.bf16.mxu0 %v492
    %1012 = vmatpush1.bf16.msra.mxu0 %v491
    %1013 = vmatprep.subr.bf16.mxu0 %v496
    %1014 = vmatpush1.bf16.msra.mxu0 %v495
    %1015 = vmatprep.subr.bf16.mxu0 %v500
    %1016 = vmatpush1.bf16.msra.mxu0 %v499
    %1017 = vmatprep.subr.bf16.mxu0 %v504
    %1018 = vmatpush1.bf16.msra.mxu0 %v503
    %1019 = vmatprep.subr.bf16.mxu0 0
    %1020 = vmatpush1.bf16.msra.mxu0 0
    %1021 = vmatprep.subr.bf16.mxu0 0
    %1022 = vmatpush1.bf16.msra.mxu0 0
    %1023 = vmatprep.subr.bf16.mxu0 0
    %1024 = vmatpush1.bf16.msra.mxu0 0
    %1025 = vmatprep.subr.bf16.mxu0 0
    %1026 = vmatpush1.bf16.msra.mxu0 0
    %1027 = vmatprep.subr.bf16.mxu0 0
    %1028 = vmatpush1.bf16.msra.mxu0 0
    %1029 = vmatprep.subr.bf16.mxu0 0
    %1030 = vmatpush1.bf16.msra.mxu0 0
    %1031 = vmatprep.subr.bf16.mxu0 0
    %1032 = vmatpush1.bf16.msra.mxu0 0
    %1033 = vmatprep.subr.bf16.mxu0 0
    %1034 = vmatpush1.bf16.msra.mxu0 0
    %1035 = vmatprep.mubr.bf16.mxu0 0
    %1036 = vmatmul.mubr.bf16.gmra.mrb[0].mxu0 %v1002
    %v1037 = vpop.f32.mrb[0].mxu0
    %v1038 = vadd.f32 0.0, %v1037
    %v1039 = vpop.f32.mrb[0].mxu0
    %v1040 = vadd.f32 0.0, %v1039
    %v1041 = vpop.f32.mrb[0].mxu0
    %v1042 = vpop.f32.mrb[0].mxu0
    %1043 = vdwg.mxu0
    %1044 = vmatprep.subr.bf16.mxu0 %v478
    %1045 = vmatpush1.bf16.msra.mxu0 %v477
    %1046 = vmatprep.subr.bf16.mxu0 %v482
    %1047 = vmatpush1.bf16.msra.mxu0 %v481
    %1048 = vmatprep.subr.bf16.mxu0 %v486
    %1049 = vmatpush1.bf16.msra.mxu0 %v485
    %1050 = vmatprep.subr.bf16.mxu0 %v490
    %1051 = vmatpush1.bf16.msra.mxu0 %v489
    %1052 = vmatprep.subr.bf16.mxu0 %v494
    %1053 = vmatpush1.bf16.msra.mxu0 %v493
    %1054 = vmatprep.subr.bf16.mxu0 %v498
    %1055 = vmatpush1.bf16.msra.mxu0 %v497
    %1056 = vmatprep.subr.bf16.mxu0 %v502
    %1057 = vmatpush1.bf16.msra.mxu0 %v501
    %1058 = vmatprep.subr.bf16.mxu0 %v506
    %1059 = vmatpush1.bf16.msra.mxu0 %v505
    %1060 = vmatprep.subr.bf16.mxu0 0
    %1061 = vmatpush1.bf16.msra.mxu0 0
    %1062 = vmatprep.subr.bf16.mxu0 0
    %1063 = vmatpush1.bf16.msra.mxu0 0
    %1064 = vmatprep.subr.bf16.mxu0 0
    %1065 = vmatpush1.bf16.msra.mxu0 0
    %1066 = vmatprep.subr.bf16.mxu0 0
    %1067 = vmatpush1.bf16.msra.mxu0 0
    %1068 = vmatprep.subr.bf16.mxu0 0
    %1069 = vmatpush1.bf16.msra.mxu0 0
    %1070 = vmatprep.subr.bf16.mxu0 0
    %1071 = vmatpush1.bf16.msra.mxu0 0
    %1072 = vmatprep.subr.bf16.mxu0 0
    %1073 = vmatpush1.bf16.msra.mxu0 0
    %1074 = vmatprep.subr.bf16.mxu0 0
    %1075 = vmatpush1.bf16.msra.mxu0 0
    %1076 = vmatprep.mubr.bf16.mxu0 0
    %1077 = vmatmul.mubr.bf16.gmra.mrb[0].mxu0 %v1002
    %v1078 = vpop.f32.mrb[0].mxu0
    %v1079 = vadd.f32 0.0, %v1078
    %v1080 = vpop.f32.mrb[0].mxu0
    %v1081 = vadd.f32 0.0, %v1080
    %v1082 = vpop.f32.mrb[0].mxu0
    %v1083 = vpop.f32.mrb[0].mxu0
    %1084 = vdwg.mxu0
    %v1085 = vadd.f32 %v998, %v1038
    %v1086 = vadd.f32 %v999, %v1040
    %v1087 = vadd.f32 %v1000, %v1079
    %v1088 = vadd.f32 %v1001, %v1081
    %v1089 = vxor.u32 %v1085, 2147483648
    %v1090 = vxor.u32 %v1086, 2147483648
    %v1091 = vxor.u32 %v1087, 2147483648
    %v1092 = vmul.f32 %v1089, 1.442695
    %v1093 = vpow.pop %v1092
    %v1094 = vmul.f32 %v1090, 1.442695
    %v1095 = vpow.pop %v1094
    %v1096 = vmul.f32 %v1091, 1.442695
    %v1097 = vpow.pop %v1096
    %v1098 = vadd.f32 %v1093, 1.0
    %v1099 = vadd.f32 %v1095, 1.0
    %v1100 = vadd.f32 %v1097, 1.0
    %v1101 = vrcp.pop %v1098
    %v1102 = vmul.f32 1.0, %v1101
    %v1103 = vrcp.pop %v1099
    %v1104 = vmul.f32 1.0, %v1103
    %v1105 = vrcp.pop %v1100
    %v1106 = vmul.f32 1.0, %v1105
    %v1107 = vtanh.pop %v1088
    %v1108 = vmul.f32 %v1104, %v994
    %v1109 = vmul.f32 %v1102, %v1107
    %v1110 = vadd.f32 %v1108, %v1109
    %v1111 = vtanh.pop %v1110
    %v1112 = vmul.f32 %v1106, %v1111
    %1113 = vst [vmem:[#allocation3 + $0x20] sm:$0xff] %v1112
    %v1114 = vld [vmem:[#allocation2 + $0xa0] sm:$0xff]
    %v1115 = vld [vmem:[#allocation2 + $0xa8] sm:$0xff]
    %v1116 = vld [vmem:[#allocation2 + $0xb0] sm:$0xff]
    %v1117 = vld [vmem:[#allocation2 + $0xb8] sm:$0xff]
    %v1118 = vpack.c.bf16 %v1112, %v1112
    %1119 = vmatprep.subr.bf16.mxu0 %v476
    %1120 = vmatpush1.bf16.msra.mxu0 %v475
    %1121 = vmatprep.subr.bf16.mxu0 %v480
    %1122 = vmatpush1.bf16.msra.mxu0 %v479
    %1123 = vmatprep.subr.bf16.mxu0 %v484
    %1124 = vmatpush1.bf16.msra.mxu0 %v483
    %1125 = vmatprep.subr.bf16.mxu0 %v488
    %1126 = vmatpush1.bf16.msra.mxu0 %v487
    %1127 = vmatprep.subr.bf16.mxu0 %v492
    %1128 = vmatpush1.bf16.msra.mxu0 %v491
    %1129 = vmatprep.subr.bf16.mxu0 %v496
    %1130 = vmatpush1.bf16.msra.mxu0 %v495
    %1131 = vmatprep.subr.bf16.mxu0 %v500
    %1132 = vmatpush1.bf16.msra.mxu0 %v499
    %1133 = vmatprep.subr.bf16.mxu0 %v504
    %1134 = vmatpush1.bf16.msra.mxu0 %v503
    %1135 = vmatprep.subr.bf16.mxu0 0
    %1136 = vmatpush1.bf16.msra.mxu0 0
    %1137 = vmatprep.subr.bf16.mxu0 0
    %1138 = vmatpush1.bf16.msra.mxu0 0
    %1139 = vmatprep.subr.bf16.mxu0 0
    %1140 = vmatpush1.bf16.msra.mxu0 0
    %1141 = vmatprep.subr.bf16.mxu0 0
    %1142 = vmatpush1.bf16.msra.mxu0 0
    %1143 = vmatprep.subr.bf16.mxu0 0
    %1144 = vmatpush1.bf16.msra.mxu0 0
    %1145 = vmatprep.subr.bf16.mxu0 0
    %1146 = vmatpush1.bf16.msra.mxu0 0
    %1147 = vmatprep.subr.bf16.mxu0 0
    %1148 = vmatpush1.bf16.msra.mxu0 0
    %1149 = vmatprep.subr.bf16.mxu0 0
    %1150 = vmatpush1.bf16.msra.mxu0 0
    %1151 = vmatprep.mubr.bf16.mxu0 0
    %1152 = vmatmul.mubr.bf16.gmra.mrb[0].mxu0 %v1118
    %v1153 = vpop.f32.mrb[0].mxu0
    %v1154 = vadd.f32 0.0, %v1153
    %v1155 = vpop.f32.mrb[0].mxu0
    %v1156 = vadd.f32 0.0, %v1155
    %v1157 = vpop.f32.mrb[0].mxu0
    %v1158 = vpop.f32.mrb[0].mxu0
    %1159 = vdwg.mxu0
    %1160 = vmatprep.subr.bf16.mxu0 %v478
    %1161 = vmatpush1.bf16.msra.mxu0 %v477
    %1162 = vmatprep.subr.bf16.mxu0 %v482
    %1163 = vmatpush1.bf16.msra.mxu0 %v481
    %1164 = vmatprep.subr.bf16.mxu0 %v486
    %1165 = vmatpush1.bf16.msra.mxu0 %v485
    %1166 = vmatprep.subr.bf16.mxu0 %v490
    %1167 = vmatpush1.bf16.msra.mxu0 %v489
    %1168 = vmatprep.subr.bf16.mxu0 %v494
    %1169 = vmatpush1.bf16.msra.mxu0 %v493
    %1170 = vmatprep.subr.bf16.mxu0 %v498
    %1171 = vmatpush1.bf16.msra.mxu0 %v497
    %1172 = vmatprep.subr.bf16.mxu0 %v502
    %1173 = vmatpush1.bf16.msra.mxu0 %v501
    %1174 = vmatprep.subr.bf16.mxu0 %v506
    %1175 = vmatpush1.bf16.msra.mxu0 %v505
    %1176 = vmatprep.subr.bf16.mxu0 0
    %1177 = vmatpush1.bf16.msra.mxu0 0
    %1178 = vmatprep.subr.bf16.mxu0 0
    %1179 = vmatpush1.bf16.msra.mxu0 0
    %1180 = vmatprep.subr.bf16.mxu0 0
    %1181 = vmatpush1.bf16.msra.mxu0 0
    %1182 = vmatprep.subr.bf16.mxu0 0
    %1183 = vmatpush1.bf16.msra.mxu0 0
    %1184 = vmatprep.subr.bf16.mxu0 0
    %1185 = vmatpush1.bf16.msra.mxu0 0
    %1186 = vmatprep.subr.bf16.mxu0 0
    %1187 = vmatpush1.bf16.msra.mxu0 0
    %1188 = vmatprep.subr.bf16.mxu0 0
    %1189 = vmatpush1.bf16.msra.mxu0 0
    %1190 = vmatprep.subr.bf16.mxu0 0
    %1191 = vmatpush1.bf16.msra.mxu0 0
    %1192 = vmatprep.mubr.bf16.mxu0 0
    %1193 = vmatmul.mubr.bf16.gmra.mrb[0].mxu0 %v1118
    %v1194 = vpop.f32.mrb[0].mxu0
    %v1195 = vadd.f32 0.0, %v1194
    %v1196 = vpop.f32.mrb[0].mxu0
    %v1197 = vadd.f32 0.0, %v1196
    %v1198 = vpop.f32.mrb[0].mxu0
    %v1199 = vpop.f32.mrb[0].mxu0
    %1200 = vdwg.mxu0
    %v1201 = vadd.f32 %v1114, %v1154
    %v1202 = vadd.f32 %v1115, %v1156
    %v1203 = vadd.f32 %v1116, %v1195
    %v1204 = vadd.f32 %v1117, %v1197
    %v1205 = vxor.u32 %v1201, 2147483648
    %v1206 = vxor.u32 %v1202, 2147483648
    %v1207 = vxor.u32 %v1203, 2147483648
    %v1208 = vmul.f32 %v1205, 1.442695
    %v1209 = vpow.pop %v1208
    %v1210 = vmul.f32 %v1206, 1.442695
    %v1211 = vpow.pop %v1210
    %v1212 = vmul.f32 %v1207, 1.442695
    %v1213 = vpow.pop %v1212
    %v1214 = vadd.f32 %v1209, 1.0
    %v1215 = vadd.f32 %v1211, 1.0
    %v1216 = vadd.f32 %v1213, 1.0
    %v1217 = vrcp.pop %v1214
    %v1218 = vmul.f32 1.0, %v1217
    %v1219 = vrcp.pop %v1215
    %v1220 = vmul.f32 1.0, %v1219
    %v1221 = vrcp.pop %v1216
    %v1222 = vmul.f32 1.0, %v1221
    %v1223 = vtanh.pop %v1204
    %v1224 = vmul.f32 %v1220, %v1110
    %v1225 = vmul.f32 %v1218, %v1223
    %v1226 = vadd.f32 %v1224, %v1225
    %v1227 = vtanh.pop %v1226
    %v1228 = vmul.f32 %v1222, %v1227
    %1229 = vst [vmem:[#allocation3 + $0x28] sm:$0xff] %v1228
    %v1230 = vld [vmem:[#allocation2 + $0xc0] sm:$0xff]
    %v1231 = vld [vmem:[#allocation2 + $0xc8] sm:$0xff]
    %v1232 = vld [vmem:[#allocation2 + $0xd0] sm:$0xff]
    %v1233 = vld [vmem:[#allocation2 + $0xd8] sm:$0xff]
    %v1234 = vpack.c.bf16 %v1228, %v1228
    %1235 = vmatprep.subr.bf16.mxu0 %v476
    %1236 = vmatpush1.bf16.msra.mxu0 %v475
    %1237 = vmatprep.subr.bf16.mxu0 %v480
    %1238 = vmatpush1.bf16.msra.mxu0 %v479
    %1239 = vmatprep.subr.bf16.mxu0 %v484
    %1240 = vmatpush1.bf16.msra.mxu0 %v483
    %1241 = vmatprep.subr.bf16.mxu0 %v488
    %1242 = vmatpush1.bf16.msra.mxu0 %v487
    %1243 = vmatprep.subr.bf16.mxu0 %v492
    %1244 = vmatpush1.bf16.msra.mxu0 %v491
    %1245 = vmatprep.subr.bf16.mxu0 %v496
    %1246 = vmatpush1.bf16.msra.mxu0 %v495
    %1247 = vmatprep.subr.bf16.mxu0 %v500
    %1248 = vmatpush1.bf16.msra.mxu0 %v499
    %1249 = vmatprep.subr.bf16.mxu0 %v504
    %1250 = vmatpush1.bf16.msra.mxu0 %v503
    %1251 = vmatprep.subr.bf16.mxu0 0
    %1252 = vmatpush1.bf16.msra.mxu0 0
    %1253 = vmatprep.subr.bf16.mxu0 0
    %1254 = vmatpush1.bf16.msra.mxu0 0
    %1255 = vmatprep.subr.bf16.mxu0 0
    %1256 = vmatpush1.bf16.msra.mxu0 0
    %1257 = vmatprep.subr.bf16.mxu0 0
    %1258 = vmatpush1.bf16.msra.mxu0 0
    %1259 = vmatprep.subr.bf16.mxu0 0
    %1260 = vmatpush1.bf16.msra.mxu0 0
    %1261 = vmatprep.subr.bf16.mxu0 0
    %1262 = vmatpush1.bf16.msra.mxu0 0
    %1263 = vmatprep.subr.bf16.mxu0 0
    %1264 = vmatpush1.bf16.msra.mxu0 0
    %1265 = vmatprep.subr.bf16.mxu0 0
    %1266 = vmatpush1.bf16.msra.mxu0 0
    %1267 = vmatprep.mubr.bf16.mxu0 0
    %1268 = vmatmul.mubr.bf16.gmra.mrb[0].mxu0 %v1234
    %v1269 = vpop.f32.mrb[0].mxu0
    %v1270 = vadd.f32 0.0, %v1269
    %v1271 = vpop.f32.mrb[0].mxu0
    %v1272 = vadd.f32 0.0, %v1271
    %v1273 = vpop.f32.mrb[0].mxu0
    %v1274 = vpop.f32.mrb[0].mxu0
    %1275 = vdwg.mxu0
    %1276 = vmatprep.subr.bf16.mxu0 %v478
    %1277 = vmatpush1.bf16.msra.mxu0 %v477
    %1278 = vmatprep.subr.bf16.mxu0 %v482
    %1279 = vmatpush1.bf16.msra.mxu0 %v481
    %1280 = vmatprep.subr.bf16.mxu0 %v486
    %1281 = vmatpush1.bf16.msra.mxu0 %v485
    %1282 = vmatprep.subr.bf16.mxu0 %v490
    %1283 = vmatpush1.bf16.msra.mxu0 %v489
    %1284 = vmatprep.subr.bf16.mxu0 %v494
    %1285 = vmatpush1.bf16.msra.mxu0 %v493
    %1286 = vmatprep.subr.bf16.mxu0 %v498
    %1287 = vmatpush1.bf16.msra.mxu0 %v497
    %1288 = vmatprep.subr.bf16.mxu0 %v502
    %1289 = vmatpush1.bf16.msra.mxu0 %v501
    %1290 = vmatprep.subr.bf16.mxu0 %v506
    %1291 = vmatpush1.bf16.msra.mxu0 %v505
    %1292 = vmatprep.subr.bf16.mxu0 0
    %1293 = vmatpush1.bf16.msra.mxu0 0
    %1294 = vmatprep.subr.bf16.mxu0 0
    %1295 = vmatpush1.bf16.msra.mxu0 0
    %1296 = vmatprep.subr.bf16.mxu0 0
    %1297 = vmatpush1.bf16.msra.mxu0 0
    %1298 = vmatprep.subr.bf16.mxu0 0
    %1299 = vmatpush1.bf16.msra.mxu0 0
    %1300 = vmatprep.subr.bf16.mxu0 0
    %1301 = vmatpush1.bf16.msra.mxu0 0
    %1302 = vmatprep.subr.bf16.mxu0 0
    %1303 = vmatpush1.bf16.msra.mxu0 0
    %1304 = vmatprep.subr.bf16.mxu0 0
    %1305 = vmatpush1.bf16.msra.mxu0 0
    %1306 = vmatprep.subr.bf16.mxu0 0
    %1307 = vmatpush1.bf16.msra.mxu0 0
    %1308 = vmatprep.mubr.bf16.mxu0 0
    %1309 = vmatmul.mubr.bf16.gmra.mrb[0].mxu0 %v1234
    %v1310 = vpop.f32.mrb[0].mxu0
    %v1311 = vadd.f32 0.0, %v1310
    %v1312 = vpop.f32.mrb[0].mxu0
    %v1313 = vadd.f32 0.0, %v1312
    %v1314 = vpop.f32.mrb[0].mxu0
    %v1315 = vpop.f32.mrb[0].mxu0
    %1316 = vdwg.mxu0
    %v1317 = vadd.f32 %v1230, %v1270
    %v1318 = vadd.f32 %v1231, %v1272
    %v1319 = vadd.f32 %v1232, %v1311
    %v1320 = vadd.f32 %v1233, %v1313
    %v1321 = vxor.u32 %v1317, 2147483648
    %v1322 = vxor.u32 %v1318, 2147483648
    %v1323 = vxor.u32 %v1319, 2147483648
    %v1324 = vmul.f32 %v1321, 1.442695
    %v1325 = vpow.pop %v1324
    %v1326 = vmul.f32 %v1322, 1.442695
    %v1327 = vpow.pop %v1326
    %v1328 = vmul.f32 %v1323, 1.442695
    %v1329 = vpow.pop %v1328
    %v1330 = vadd.f32 %v1325, 1.0
    %v1331 = vadd.f32 %v1327, 1.0
    %v1332 = vadd.f32 %v1329, 1.0
    %v1333 = vrcp.pop %v1330
    %v1334 = vmul.f32 1.0, %v1333
    %v1335 = vrcp.pop %v1331
    %v1336 = vmul.f32 1.0, %v1335
    %v1337 = vrcp.pop %v1332
    %v1338 = vmul.f32 1.0, %v1337
    %v1339 = vtanh.pop %v1320
    %v1340 = vmul.f32 %v1336, %v1226
    %v1341 = vmul.f32 %v1334, %v1339
    %v1342 = vadd.f32 %v1340, %v1341
    %v1343 = vtanh.pop %v1342
    %v1344 = vmul.f32 %v1338, %v1343
    %1345 = vst [vmem:[#allocation3 + $0x30] sm:$0xff] %v1344
    %v1346 = vld [vmem:[#allocation2 + $0xe0] sm:$0xff]
    %v1347 = vld [vmem:[#allocation2 + $0xe8] sm:$0xff]
    %v1348 = vld [vmem:[#allocation2 + $0xf0] sm:$0xff]
    %v1349 = vld [vmem:[#allocation2 + $0xf8] sm:$0xff]
    %v1350 = vpack.c.bf16 %v1344, %v1344
    %1351 = vmatprep.subr.bf16.mxu0 %v476
    %1352 = vmatpush1.bf16.msra.mxu0 %v475
    %1353 = vmatprep.subr.bf16.mxu0 %v480
    %1354 = vmatpush1.bf16.msra.mxu0 %v479
    %1355 = vmatprep.subr.bf16.mxu0 %v484
    %1356 = vmatpush1.bf16.msra.mxu0 %v483
    %1357 = vmatprep.subr.bf16.mxu0 %v488
    %1358 = vmatpush1.bf16.msra.mxu0 %v487
    %1359 = vmatprep.subr.bf16.mxu0 %v492
    %1360 = vmatpush1.bf16.msra.mxu0 %v491
    %1361 = vmatprep.subr.bf16.mxu0 %v496
    %1362 = vmatpush1.bf16.msra.mxu0 %v495
    %1363 = vmatprep.subr.bf16.mxu0 %v500
    %1364 = vmatpush1.bf16.msra.mxu0 %v499
    %1365 = vmatprep.subr.bf16.mxu0 %v504
    %1366 = vmatpush1.bf16.msra.mxu0 %v503
    %1367 = vmatprep.subr.bf16.mxu0 0
    %1368 = vmatpush1.bf16.msra.mxu0 0
    %1369 = vmatprep.subr.bf16.mxu0 0
    %1370 = vmatpush1.bf16.msra.mxu0 0
    %1371 = vmatprep.subr.bf16.mxu0 0
    %1372 = vmatpush1.bf16.msra.mxu0 0
    %1373 = vmatprep.subr.bf16.mxu0 0
    %1374 = vmatpush1.bf16.msra.mxu0 0
    %1375 = vmatprep.subr.bf16.mxu0 0
    %1376 = vmatpush1.bf16.msra.mxu0 0
    %1377 = vmatprep.subr.bf16.mxu0 0
    %1378 = vmatpush1.bf16.msra.mxu0 0
    %1379 = vmatprep.subr.bf16.mxu0 0
    %1380 = vmatpush1.bf16.msra.mxu0 0
    %1381 = vmatprep.subr.bf16.mxu0 0
    %1382 = vmatpush1.bf16.msra.mxu0 0
    %1383 = vmatprep.mubr.bf16.mxu0 0
    %1384 = vmatmul.mubr.bf16.gmra.mrb[0].mxu0 %v1350
    %v1385 = vpop.f32.mrb[0].mxu0
    %v1386 = vadd.f32 0.0, %v1385
    %v1387 = vpop.f32.mrb[0].mxu0
    %v1388 = vadd.f32 0.0, %v1387
    %v1389 = vpop.f32.mrb[0].mxu0
    %v1390 = vpop.f32.mrb[0].mxu0
    %1391 = vdwg.mxu0
    %1392 = vmatprep.subr.bf16.mxu0 %v478
    %1393 = vmatpush1.bf16.msra.mxu0 %v477
    %1394 = vmatprep.subr.bf16.mxu0 %v482
    %1395 = vmatpush1.bf16.msra.mxu0 %v481
    %1396 = vmatprep.subr.bf16.mxu0 %v486
    %1397 = vmatpush1.bf16.msra.mxu0 %v485
    %1398 = vmatprep.subr.bf16.mxu0 %v490
    %1399 = vmatpush1.bf16.msra.mxu0 %v489
    %1400 = vmatprep.subr.bf16.mxu0 %v494
    %1401 = vmatpush1.bf16.msra.mxu0 %v493
    %1402 = vmatprep.subr.bf16.mxu0 %v498
    %1403 = vmatpush1.bf16.msra.mxu0 %v497
    %1404 = vmatprep.subr.bf16.mxu0 %v502
    %1405 = vmatpush1.bf16.msra.mxu0 %v501
    %1406 = vmatprep.subr.bf16.mxu0 %v506
    %1407 = vmatpush1.bf16.msra.mxu0 %v505
    %1408 = vmatprep.subr.bf16.mxu0 0
    %1409 = vmatpush1.bf16.msra.mxu0 0
    %1410 = vmatprep.subr.bf16.mxu0 0
    %1411 = vmatpush1.bf16.msra.mxu0 0
    %1412 = vmatprep.subr.bf16.mxu0 0
    %1413 = vmatpush1.bf16.msra.mxu0 0
    %1414 = vmatprep.subr.bf16.mxu0 0
    %1415 = vmatpush1.bf16.msra.mxu0 0
    %1416 = vmatprep.subr.bf16.mxu0 0
    %1417 = vmatpush1.bf16.msra.mxu0 0
    %1418 = vmatprep.subr.bf16.mxu0 0
    %1419 = vmatpush1.bf16.msra.mxu0 0
    %1420 = vmatprep.subr.bf16.mxu0 0
    %1421 = vmatpush1.bf16.msra.mxu0 0
    %1422 = vmatprep.subr.bf16.mxu0 0
    %1423 = vmatpush1.bf16.msra.mxu0 0
    %1424 = vmatprep.mubr.bf16.mxu0 0
    %1425 = vmatmul.mubr.bf16.gmra.mrb[0].mxu0 %v1350
    %v1426 = vpop.f32.mrb[0].mxu0
    %v1427 = vadd.f32 0.0, %v1426
    %v1428 = vpop.f32.mrb[0].mxu0
    %v1429 = vadd.f32 0.0, %v1428
    %v1430 = vpop.f32.mrb[0].mxu0
    %v1431 = vpop.f32.mrb[0].mxu0
    %1432 = vdwg.mxu0
    %v1433 = vadd.f32 %v1346, %v1386
    %v1434 = vadd.f32 %v1347, %v1388
    %v1435 = vadd.f32 %v1348, %v1427
    %v1436 = vadd.f32 %v1349, %v1429
    %v1437 = vxor.u32 %v1433, 2147483648
    %v1438 = vxor.u32 %v1434, 2147483648
    %v1439 = vxor.u32 %v1435, 2147483648
    %v1440 = vmul.f32 %v1437, 1.442695
    %v1441 = vpow.pop %v1440
    %v1442 = vmul.f32 %v1438, 1.442695
    %v1443 = vpow.pop %v1442
    %v1444 = vmul.f32 %v1439, 1.442695
    %v1445 = vpow.pop %v1444
    %v1446 = vadd.f32 %v1441, 1.0
    %v1447 = vadd.f32 %v1443, 1.0
    %v1448 = vadd.f32 %v1445, 1.0
    %v1449 = vrcp.pop %v1446
    %v1450 = vmul.f32 1.0, %v1449
    %v1451 = vrcp.pop %v1447
    %v1452 = vmul.f32 1.0, %v1451
    %v1453 = vrcp.pop %v1448
    %v1454 = vmul.f32 1.0, %v1453
    %v1455 = vtanh.pop %v1436
    %v1456 = vmul.f32 %v1452, %v1342
    %v1457 = vmul.f32 %v1450, %v1455
    %v1458 = vadd.f32 %v1456, %v1457
    %v1459 = vtanh.pop %v1458
    %v1460 = vmul.f32 %v1454, %v1459
    %1461 = vst [vmem:[#allocation3 + $0x38] sm:$0xff] %v1460
    %v1462 = vld [vmem:[#allocation6] sm:$0xff]
    %v1463 = vld [vmem:[#allocation6 + $0x8] sm:$0xff]
    %v1464 = vld [vmem:[#allocation6 + $0x10] sm:$0xff]
    %v1465 = vld [vmem:[#allocation6 + $0x18] sm:$0xff]
    %v1466 = vld [vmem:[#allocation6 + $0x20] sm:$0xff]
    %v1467 = vld [vmem:[#allocation6 + $0x28] sm:$0xff]
    %v1468 = vld [vmem:[#allocation6 + $0x30] sm:$0xff]
    %v1469 = vld [vmem:[#allocation6 + $0x38] sm:$0xff]
    %v1470 = vld [vmem:[#allocation6 + $0x40] sm:$0xff]
    %v1471 = vld [vmem:[#allocation6 + $0x48] sm:$0xff]
    %v1472 = vld [vmem:[#allocation6 + $0x50] sm:$0xff]
    %v1473 = vld [vmem:[#allocation6 + $0x58] sm:$0xff]
    %v1474 = vld [vmem:[#allocation6 + $0x60] sm:$0xff]
    %v1475 = vld [vmem:[#allocation6 + $0x68] sm:$0xff]
    %v1476 = vld [vmem:[#allocation6 + $0x70] sm:$0xff]
    %v1477 = vld [vmem:[#allocation6 + $0x78] sm:$0xff]
    %v1478 = vld [vmem:[#allocation6 + $0x80] sm:$0xff]
    %v1479 = vld [vmem:[#allocation6 + $0x88] sm:$0xff]
    %v1480 = vld [vmem:[#allocation6 + $0x90] sm:$0xff]
    %v1481 = vld [vmem:[#allocation6 + $0x98] sm:$0xff]
    %v1482 = vld [vmem:[#allocation6 + $0xa0] sm:$0xff]
    %v1483 = vld [vmem:[#allocation6 + $0xa8] sm:$0xff]
    %v1484 = vld [vmem:[#allocation6 + $0xb0] sm:$0xff]
    %v1485 = vld [vmem:[#allocation6 + $0xb8] sm:$0xff]
    %v1486 = vld [vmem:[#allocation6 + $0xc0] sm:$0xff]
    %v1487 = vld [vmem:[#allocation6 + $0xc8] sm:$0xff]
    %v1488 = vld [vmem:[#allocation6 + $0xd0] sm:$0xff]
    %v1489 = vld [vmem:[#allocation6 + $0xd8] sm:$0xff]
    %v1490 = vld [vmem:[#allocation6 + $0xe0] sm:$0xff]
    %v1491 = vld [vmem:[#allocation6 + $0xe8] sm:$0xff]
    %v1492 = vld [vmem:[#allocation6 + $0xf0] sm:$0xff]
    %v1493 = vld [vmem:[#allocation6 + $0xf8] sm:$0xff]
    %v1494 = vld [vmem:[#allocation8] sm:$0xff]
    %v1495 = vld [vmem:[#allocation8 + $0x8] sm:$0xff]
    %v1496 = vld [vmem:[#allocation8 + $0x10] sm:$0xff]
    %v1497 = vld [vmem:[#allocation8 + $0x18] sm:$0xff]
    %v1498 = vld [vmem:[#allocation8 + $0x20] sm:$0xff]
    %v1499 = vld [vmem:[#allocation8 + $0x28] sm:$0xff]
    %v1500 = vld [vmem:[#allocation8 + $0x30] sm:$0xff]
    %v1501 = vld [vmem:[#allocation8 + $0x38] sm:$0xff]
    %v1502 = vld [vmem:[#allocation8 + $0x40] sm:$0xff]
    %v1503 = vld [vmem:[#allocation8 + $0x48] sm:$0xff]
    %v1504 = vld [vmem:[#allocation8 + $0x50] sm:$0xff]
    %v1505 = vld [vmem:[#allocation8 + $0x58] sm:$0xff]
    %v1506 = vld [vmem:[#allocation8 + $0x60] sm:$0xff]
    %v1507 = vld [vmem:[#allocation8 + $0x68] sm:$0xff]
    %v1508 = vld [vmem:[#allocation8 + $0x70] sm:$0xff]
    %v1509 = vld [vmem:[#allocation8 + $0x78] sm:$0xff]
    %v1510 = vld [vmem:[#allocation8 + $0x80] sm:$0xff]
    %v1511 = vld [vmem:[#allocation8 + $0x88] sm:$0xff]
    %v1512 = vld [vmem:[#allocation8 + $0x90] sm:$0xff]
    %v1513 = vld [vmem:[#allocation8 + $0x98] sm:$0xff]
    %v1514 = vld [vmem:[#allocation8 + $0xa0] sm:$0xff]
    %v1515 = vld [vmem:[#allocation8 + $0xa8] sm:$0xff]
    %v1516 = vld [vmem:[#allocation8 + $0xb0] sm:$0xff]
    %v1517 = vld [vmem:[#allocation8 + $0xb8] sm:$0xff]
    %v1518 = vld [vmem:[#allocation8 + $0xc0] sm:$0xff]
    %v1519 = vld [vmem:[#allocation8 + $0xc8] sm:$0xff]
    %v1520 = vld [vmem:[#allocation8 + $0xd0] sm:$0xff]
    %v1521 = vld [vmem:[#allocation8 + $0xd8] sm:$0xff]
    %v1522 = vld [vmem:[#allocation8 + $0xe0] sm:$0xff]
    %v1523 = vld [vmem:[#allocation8 + $0xe8] sm:$0xff]
    %v1524 = vld [vmem:[#allocation8 + $0xf0] sm:$0xff]
    %v1525 = vld [vmem:[#allocation8 + $0xf8] sm:$0xff]
    %v1526 = vld [vmem:[%s6] sm:$0xf]
    %v1527 = vld [vmem:[#allocation3] sm:$0xff]
    %v1528 = vld [vmem:[#allocation3 + $0x8] sm:$0xff]
    %v1529 = vld [vmem:[#allocation3 + $0x10] sm:$0xff]
    %v1530 = vld [vmem:[#allocation3 + $0x18] sm:$0xff]
    %v1531 = vld [vmem:[#allocation3 + $0x20] sm:$0xff]
    %v1532 = vld [vmem:[#allocation3 + $0x28] sm:$0xff]
    %v1533 = vld [vmem:[#allocation3 + $0x30] sm:$0xff]
    %v1534 = vld [vmem:[#allocation3 + $0x38] sm:$0xff]
    %v1535 = vpack.c.bf16 %v1528, %v1527
    %v1536 = vpack.c.bf16 %v1530, %v1529
    %v1537 = vpack.c.bf16 %v1532, %v1531
    %v1538 = vpack.c.bf16 %v1534, %v1533
    %v1540 = vlaneseq
    %v1541 = vshrl.u32 %v1540, 7
    %v1542 = vsub.s32 0, %v1541
    %v1543 = vrot.slane %v1526, %v1542
    %v1544 = vlaneseq
    %v1545 = vshrl.u32 %v1544, 7
    %v1546 = vsub.s32 1, %v1545
    %v1547 = vrot.slane %v1526, %v1546
    %v1548 = vlaneseq
    %v1549 = vshrl.u32 %v1548, 7
    %v1550 = vsub.s32 2, %v1549
    %v1551 = vrot.slane %v1526, %v1550
    %v1552 = vlaneseq
    %v1553 = vshrl.u32 %v1552, 7
    %v1554 = vsub.s32 3, %v1553
    %v1555 = vrot.slane %v1526, %v1554
    %v1592 = vunpack.c.l.b16 %v1462
    %v1593 = vunpack.c.h.b16 %v1462
    %v1594 = vunpack.c.l.b16 %v1463
    %v1595 = vunpack.c.h.b16 %v1463
    %v1596 = vunpack.c.l.b16 %v1464
    %v1597 = vunpack.c.h.b16 %v1464
    %v1598 = vunpack.c.l.b16 %v1465
    %v1599 = vunpack.c.h.b16 %v1465
    %v1600 = vunpack.c.l.b16 %v1466
    %v1601 = vunpack.c.h.b16 %v1466
    %v1602 = vunpack.c.l.b16 %v1467
    %v1603 = vunpack.c.h.b16 %v1467
    %v1604 = vunpack.c.l.b16 %v1468
    %v1605 = vunpack.c.h.b16 %v1468
    %v1606 = vunpack.c.l.b16 %v1469
    %v1607 = vunpack.c.h.b16 %v1469
    %v1608 = vunpack.c.l.b16 %v1470
    %v1609 = vunpack.c.h.b16 %v1470
    %v1610 = vunpack.c.l.b16 %v1471
    %v1611 = vunpack.c.h.b16 %v1471
    %v1612 = vunpack.c.l.b16 %v1472
    %v1613 = vunpack.c.h.b16 %v1472
    %v1614 = vunpack.c.l.b16 %v1473
    %v1615 = vunpack.c.h.b16 %v1473
    %v1616 = vunpack.c.l.b16 %v1474
    %v1617 = vunpack.c.h.b16 %v1474
    %v1618 = vunpack.c.l.b16 %v1475
    %v1619 = vunpack.c.h.b16 %v1475
    %v1620 = vunpack.c.l.b16 %v1476
    %v1621 = vunpack.c.h.b16 %v1476
    %v1622 = vunpack.c.l.b16 %v1477
    %v1623 = vunpack.c.h.b16 %v1477
    %v1624 = vunpack.c.l.b16 %v1478
    %v1625 = vunpack.c.h.b16 %v1478
    %v1626 = vunpack.c.l.b16 %v1479
    %v1627 = vunpack.c.h.b16 %v1479
    %v1628 = vunpack.c.l.b16 %v1480
    %v1629 = vunpack.c.h.b16 %v1480
    %v1630 = vunpack.c.l.b16 %v1481
    %v1631 = vunpack.c.h.b16 %v1481
    %v1632 = vunpack.c.l.b16 %v1482
    %v1633 = vunpack.c.h.b16 %v1482
    %v1634 = vunpack.c.l.b16 %v1483
    %v1635 = vunpack.c.h.b16 %v1483
    %v1636 = vunpack.c.l.b16 %v1484
    %v1637 = vunpack.c.h.b16 %v1484
    %v1638 = vunpack.c.l.b16 %v1485
    %v1639 = vunpack.c.h.b16 %v1485
    %v1640 = vunpack.c.l.b16 %v1486
    %v1641 = vunpack.c.h.b16 %v1486
    %v1642 = vunpack.c.l.b16 %v1487
    %v1643 = vunpack.c.h.b16 %v1487
    %v1644 = vunpack.c.l.b16 %v1488
    %v1645 = vunpack.c.h.b16 %v1488
    %v1646 = vunpack.c.l.b16 %v1489
    %v1647 = vunpack.c.h.b16 %v1489
    %v1648 = vunpack.c.l.b16 %v1490
    %v1649 = vunpack.c.h.b16 %v1490
    %v1650 = vunpack.c.l.b16 %v1491
    %v1651 = vunpack.c.h.b16 %v1491
    %v1652 = vunpack.c.l.b16 %v1492
    %v1653 = vunpack.c.h.b16 %v1492
    %v1654 = vunpack.c.l.b16 %v1493
    %v1655 = vunpack.c.h.b16 %v1493
    %v1656 = vpack.c.b16 %v1596, %v1592
    %v1657 = vpack.c.b16 %v1597, %v1593
    %v1658 = vpack.c.b16 %v1598, %v1594
    %v1659 = vpack.c.b16 %v1599, %v1595
    %v1660 = vpack.c.b16 %v1604, %v1600
    %v1661 = vpack.c.b16 %v1605, %v1601
    %v1662 = vpack.c.b16 %v1606, %v1602
    %v1663 = vpack.c.b16 %v1607, %v1603
    %v1664 = vpack.c.b16 %v1612, %v1608
    %v1665 = vpack.c.b16 %v1613, %v1609
    %v1666 = vpack.c.b16 %v1614, %v1610
    %v1667 = vpack.c.b16 %v1615, %v1611
    %v1668 = vpack.c.b16 %v1620, %v1616
    %v1669 = vpack.c.b16 %v1621, %v1617
    %v1670 = vpack.c.b16 %v1622, %v1618
    %v1671 = vpack.c.b16 %v1623, %v1619
    %v1672 = vpack.c.b16 %v1628, %v1624
    %v1673 = vpack.c.b16 %v1629, %v1625
    %v1674 = vpack.c.b16 %v1630, %v1626
    %v1675 = vpack.c.b16 %v1631, %v1627
    %v1676 = vpack.c.b16 %v1636, %v1632
    %v1677 = vpack.c.b16 %v1637, %v1633
    %v1678 = vpack.c.b16 %v1638, %v1634
    %v1679 = vpack.c.b16 %v1639, %v1635
    %v1680 = vpack.c.b16 %v1644, %v1640
    %v1681 = vpack.c.b16 %v1645, %v1641
    %v1682 = vpack.c.b16 %v1646, %v1642
    %v1683 = vpack.c.b16 %v1647, %v1643
    %v1684 = vpack.c.b16 %v1652, %v1648
    %v1685 = vpack.c.b16 %v1653, %v1649
    %v1686 = vpack.c.b16 %v1654, %v1650
    %v1687 = vpack.c.b16 %v1655, %v1651
    %1720 = vmatprep.subr.bf16.mxu0 %v1657
    %1721 = vmatpush1.bf16.msra.mxu0 %v1656
    %1722 = vmatprep.subr.bf16.mxu0 %v1661
    %1723 = vmatpush1.bf16.msra.mxu0 %v1660
    %1724 = vmatprep.subr.bf16.mxu0 %v1665
    %1725 = vmatpush1.bf16.msra.mxu0 %v1664
    %1726 = vmatprep.subr.bf16.mxu0 %v1669
    %1727 = vmatpush1.bf16.msra.mxu0 %v1668
    %1728 = vmatprep.subr.bf16.mxu0 %v1673
    %1729 = vmatpush1.bf16.msra.mxu0 %v1672
    %1730 = vmatprep.subr.bf16.mxu0 %v1677
    %1731 = vmatpush1.bf16.msra.mxu0 %v1676
    %1732 = vmatprep.subr.bf16.mxu0 %v1681
    %1733 = vmatpush1.bf16.msra.mxu0 %v1680
    %1734 = vmatprep.subr.bf16.mxu0 %v1685
    %1735 = vmatpush1.bf16.msra.mxu0 %v1684
    %1736 = vmatprep.subr.bf16.mxu0 0
    %1737 = vmatpush1.bf16.msra.mxu0 0
    %1738 = vmatprep.subr.bf16.mxu0 0
    %1739 = vmatpush1.bf16.msra.mxu0 0
    %1740 = vmatprep.subr.bf16.mxu0 0
    %1741 = vmatpush1.bf16.msra.mxu0 0
    %1742 = vmatprep.subr.bf16.mxu0 0
    %1743 = vmatpush1.bf16.msra.mxu0 0
    %1744 = vmatprep.subr.bf16.mxu0 0
    %1745 = vmatpush1.bf16.msra.mxu0 0
    %1746 = vmatprep.subr.bf16.mxu0 0
    %1747 = vmatpush1.bf16.msra.mxu0 0
    %1748 = vmatprep.subr.bf16.mxu0 0
    %1749 = vmatpush1.bf16.msra.mxu0 0
    %1750 = vmatprep.subr.bf16.mxu0 0
    %1751 = vmatpush1.bf16.msra.mxu0 0
    %1752 = vmatprep.mubr.bf16.mxu0 0
    %1753 = vmatmul.mubr.bf16.gmra.mrb[0].mxu0 %v1535
    %v1754 = vpop.f32.mrb[0].mxu0
    %v1755 = vadd.f32 %v1543, %v1754
    %v1756 = vpop.f32.mrb[0].mxu0
    %v1757 = vadd.f32 %v1547, %v1756
    %v1758 = vpop.f32.mrb[0].mxu0
    %v1759 = vadd.f32 %v1543, %v1758
    %v1760 = vpop.f32.mrb[0].mxu0
    %v1761 = vadd.f32 %v1547, %v1760
    %1762 = vmatprep.mubr.bf16.mxu0 0
    %1763 = vmatmul.mubr.bf16.gmra.mrb[0].mxu0 %v1536
    %v1764 = vpop.f32.mrb[0].mxu0
    %v1765 = vadd.f32 %v1543, %v1764
    %v1766 = vpop.f32.mrb[0].mxu0
    %v1767 = vadd.f32 %v1547, %v1766
    %v1768 = vpop.f32.mrb[0].mxu0
    %v1769 = vadd.f32 %v1543, %v1768
    %v1770 = vpop.f32.mrb[0].mxu0
    %v1771 = vadd.f32 %v1547, %v1770
    %1772 = vmatprep.mubr.bf16.mxu0 0
    %1773 = vmatmul.mubr.bf16.gmra.mrb[0].mxu0 %v1537
    %v1774 = vpop.f32.mrb[0].mxu0
    %v1775 = vadd.f32 %v1543, %v1774
    %v1776 = vpop.f32.mrb[0].mxu0
    %v1777 = vadd.f32 %v1547, %v1776
    %v1778 = vpop.f32.mrb[0].mxu0
    %v1779 = vadd.f32 %v1543, %v1778
    %v1780 = vpop.f32.mrb[0].mxu0
    %v1781 = vadd.f32 %v1547, %v1780
    %1782 = vmatprep.mubr.bf16.mxu0 0
    %1783 = vmatmul.mubr.bf16.gmra.mrb[0].mxu0 %v1538
    %v1784 = vpop.f32.mrb[0].mxu0
    %v1785 = vadd.f32 %v1543, %v1784
    %v1786 = vpop.f32.mrb[0].mxu0
    %v1787 = vadd.f32 %v1547, %v1786
    %v1788 = vpop.f32.mrb[0].mxu0
    %v1789 = vadd.f32 %v1543, %v1788
    %v1790 = vpop.f32.mrb[0].mxu0
    %v1791 = vadd.f32 %v1547, %v1790
    %1792 = vdwg.mxu0
    %1793 = vmatprep.subr.bf16.mxu0 %v1659
    %1794 = vmatpush1.bf16.msra.mxu0 %v1658
    %1795 = vmatprep.subr.bf16.mxu0 %v1663
    %1796 = vmatpush1.bf16.msra.mxu0 %v1662
    %1797 = vmatprep.subr.bf16.mxu0 %v1667
    %1798 = vmatpush1.bf16.msra.mxu0 %v1666
    %1799 = vmatprep.subr.bf16.mxu0 %v1671
    %1800 = vmatpush1.bf16.msra.mxu0 %v1670
    %1801 = vmatprep.subr.bf16.mxu0 %v1675
    %1802 = vmatpush1.bf16.msra.mxu0 %v1674
    %1803 = vmatprep.subr.bf16.mxu0 %v1679
    %1804 = vmatpush1.bf16.msra.mxu0 %v1678
    %1805 = vmatprep.subr.bf16.mxu0 %v1683
    %1806 = vmatpush1.bf16.msra.mxu0 %v1682
    %1807 = vmatprep.subr.bf16.mxu0 %v1687
    %1808 = vmatpush1.bf16.msra.mxu0 %v1686
    %1809 = vmatprep.subr.bf16.mxu0 0
    %1810 = vmatpush1.bf16.msra.mxu0 0
    %1811 = vmatprep.subr.bf16.mxu0 0
    %1812 = vmatpush1.bf16.msra.mxu0 0
    %1813 = vmatprep.subr.bf16.mxu0 0
    %1814 = vmatpush1.bf16.msra.mxu0 0
    %1815 = vmatprep.subr.bf16.mxu0 0
    %1816 = vmatpush1.bf16.msra.mxu0 0
    %1817 = vmatprep.subr.bf16.mxu0 0
    %1818 = vmatpush1.bf16.msra.mxu0 0
    %1819 = vmatprep.subr.bf16.mxu0 0
    %1820 = vmatpush1.bf16.msra.mxu0 0
    %1821 = vmatprep.subr.bf16.mxu0 0
    %1822 = vmatpush1.bf16.msra.mxu0 0
    %1823 = vmatprep.subr.bf16.mxu0 0
    %1824 = vmatpush1.bf16.msra.mxu0 0
    %1825 = vmatprep.mubr.bf16.mxu0 0
    %1826 = vmatmul.mubr.bf16.gmra.mrb[0].mxu0 %v1535
    %v1827 = vpop.f32.mrb[0].mxu0
    %v1828 = vadd.f32 %v1551, %v1827
    %v1829 = vpop.f32.mrb[0].mxu0
    %v1830 = vadd.f32 %v1555, %v1829
    %v1831 = vpop.f32.mrb[0].mxu0
    %v1832 = vadd.f32 %v1551, %v1831
    %v1833 = vpop.f32.mrb[0].mxu0
    %v1834 = vadd.f32 %v1555, %v1833
    %1835 = vmatprep.mubr.bf16.mxu0 0
    %1836 = vmatmul.mubr.bf16.gmra.mrb[0].mxu0 %v1536
    %v1837 = vpop.f32.mrb[0].mxu0
    %v1838 = vadd.f32 %v1551, %v1837
    %v1839 = vpop.f32.mrb[0].mxu0
    %v1840 = vadd.f32 %v1555, %v1839
    %v1841 = vpop.f32.mrb[0].mxu0
    %v1842 = vadd.f32 %v1551, %v1841
    %v1843 = vpop.f32.mrb[0].mxu0
    %v1844 = vadd.f32 %v1555, %v1843
    %1845 = vmatprep.mubr.bf16.mxu0 0
    %1846 = vmatmul.mubr.bf16.gmra.mrb[0].mxu0 %v1537
    %v1847 = vpop.f32.mrb[0].mxu0
    %v1848 = vadd.f32 %v1551, %v1847
    %v1849 = vpop.f32.mrb[0].mxu0
    %v1850 = vadd.f32 %v1555, %v1849
    %v1851 = vpop.f32.mrb[0].mxu0
    %v1852 = vadd.f32 %v1551, %v1851
    %v1853 = vpop.f32.mrb[0].mxu0
    %v1854 = vadd.f32 %v1555, %v1853
    %1855 = vmatprep.mubr.bf16.mxu0 0
    %1856 = vmatmul.mubr.bf16.gmra.mrb[0].mxu0 %v1538
    %v1857 = vpop.f32.mrb[0].mxu0
    %v1858 = vadd.f32 %v1551, %v1857
    %v1859 = vpop.f32.mrb[0].mxu0
    %v1860 = vadd.f32 %v1555, %v1859
    %v1861 = vpop.f32.mrb[0].mxu0
    %v1862 = vadd.f32 %v1551, %v1861
    %v1863 = vpop.f32.mrb[0].mxu0
    %v1864 = vadd.f32 %v1555, %v1863
    %1865 = vdwg.mxu0
    %1866 = vst [vmem:[#allocation2] sm:$0xff] %v1755
    %1867 = vst [vmem:[#allocation2 + $0x8] sm:$0xff] %v1757
    %1868 = vst [vmem:[#allocation2 + $0x10] sm:$0xff] %v1828
    %1869 = vst [vmem:[#allocation2 + $0x18] sm:$0xff] %v1830
    %1870 = vst [vmem:[#allocation2 + $0x20] sm:$0xff] %v1759
    %1871 = vst [vmem:[#allocation2 + $0x28] sm:$0xff] %v1761
    %1872 = vst [vmem:[#allocation2 + $0x30] sm:$0xff] %v1832
    %1873 = vst [vmem:[#allocation2 + $0x38] sm:$0xff] %v1834
    %1874 = vst [vmem:[#allocation2 + $0x40] sm:$0xff] %v1765
    %1875 = vst [vmem:[#allocation2 + $0x48] sm:$0xff] %v1767
    %1876 = vst [vmem:[#allocation2 + $0x50] sm:$0xff] %v1838
    %1877 = vst [vmem:[#allocation2 + $0x58] sm:$0xff] %v1840
    %1878 = vst [vmem:[#allocation2 + $0x60] sm:$0xff] %v1769
    %1879 = vst [vmem:[#allocation2 + $0x68] sm:$0xff] %v1771
    %1880 = vst [vmem:[#allocation2 + $0x70] sm:$0xff] %v1842
    %1881 = vst [vmem:[#allocation2 + $0x78] sm:$0xff] %v1844
    %1882 = vst [vmem:[#allocation2 + $0x80] sm:$0xff] %v1775
    %1883 = vst [vmem:[#allocation2 + $0x88] sm:$0xff] %v1777
    %1884 = vst [vmem:[#allocation2 + $0x90] sm:$0xff] %v1848
    %1885 = vst [vmem:[#allocation2 + $0x98] sm:$0xff] %v1850
    %1886 = vst [vmem:[#allocation2 + $0xa0] sm:$0xff] %v1779
    %1887 = vst [vmem:[#allocation2 + $0xa8] sm:$0xff] %v1781
    %1888 = vst [vmem:[#allocation2 + $0xb0] sm:$0xff] %v1852
    %1889 = vst [vmem:[#allocation2 + $0xb8] sm:$0xff] %v1854
    %1890 = vst [vmem:[#allocation2 + $0xc0] sm:$0xff] %v1785
    %1891 = vst [vmem:[#allocation2 + $0xc8] sm:$0xff] %v1787
    %1892 = vst [vmem:[#allocation2 + $0xd0] sm:$0xff] %v1858
    %1893 = vst [vmem:[#allocation2 + $0xd8] sm:$0xff] %v1860
    %1894 = vst [vmem:[#allocation2 + $0xe0] sm:$0xff] %v1789
    %1895 = vst [vmem:[#allocation2 + $0xe8] sm:$0xff] %v1791
    %1896 = vst [vmem:[#allocation2 + $0xf0] sm:$0xff] %v1862
    %1897 = vst [vmem:[#allocation2 + $0xf8] sm:$0xff] %v1864
    %v1898 = vld [vmem:[#allocation2] sm:$0xff]
    %v1899 = vld [vmem:[#allocation2 + $0x8] sm:$0xff]
    %v1900 = vld [vmem:[#allocation2 + $0x10] sm:$0xff]
    %v1901 = vld [vmem:[#allocation2 + $0x18] sm:$0xff]
    %v1934 = vunpack.c.l.b16 %v1494
    %v1935 = vunpack.c.h.b16 %v1494
    %v1936 = vunpack.c.l.b16 %v1495
    %v1937 = vunpack.c.h.b16 %v1495
    %v1938 = vunpack.c.l.b16 %v1496
    %v1939 = vunpack.c.h.b16 %v1496
    %v1940 = vunpack.c.l.b16 %v1497
    %v1941 = vunpack.c.h.b16 %v1497
    %v1942 = vunpack.c.l.b16 %v1498
    %v1943 = vunpack.c.h.b16 %v1498
    %v1944 = vunpack.c.l.b16 %v1499
    %v1945 = vunpack.c.h.b16 %v1499
    %v1946 = vunpack.c.l.b16 %v1500
    %v1947 = vunpack.c.h.b16 %v1500
    %v1948 = vunpack.c.l.b16 %v1501
    %v1949 = vunpack.c.h.b16 %v1501
    %v1950 = vunpack.c.l.b16 %v1502
    %v1951 = vunpack.c.h.b16 %v1502
    %v1952 = vunpack.c.l.b16 %v1503
    %v1953 = vunpack.c.h.b16 %v1503
    %v1954 = vunpack.c.l.b16 %v1504
    %v1955 = vunpack.c.h.b16 %v1504
    %v1956 = vunpack.c.l.b16 %v1505
    %v1957 = vunpack.c.h.b16 %v1505
    %v1958 = vunpack.c.l.b16 %v1506
    %v1959 = vunpack.c.h.b16 %v1506
    %v1960 = vunpack.c.l.b16 %v1507
    %v1961 = vunpack.c.h.b16 %v1507
    %v1962 = vunpack.c.l.b16 %v1508
    %v1963 = vunpack.c.h.b16 %v1508
    %v1964 = vunpack.c.l.b16 %v1509
    %v1965 = vunpack.c.h.b16 %v1509
    %v1966 = vunpack.c.l.b16 %v1510
    %v1967 = vunpack.c.h.b16 %v1510
    %v1968 = vunpack.c.l.b16 %v1511
    %v1969 = vunpack.c.h.b16 %v1511
    %v1970 = vunpack.c.l.b16 %v1512
    %v1971 = vunpack.c.h.b16 %v1512
    %v1972 = vunpack.c.l.b16 %v1513
    %v1973 = vunpack.c.h.b16 %v1513
    %v1974 = vunpack.c.l.b16 %v1514
    %v1975 = vunpack.c.h.b16 %v1514
    %v1976 = vunpack.c.l.b16 %v1515
    %v1977 = vunpack.c.h.b16 %v1515
    %v1978 = vunpack.c.l.b16 %v1516
    %v1979 = vunpack.c.h.b16 %v1516
    %v1980 = vunpack.c.l.b16 %v1517
    %v1981 = vunpack.c.h.b16 %v1517
    %v1982 = vunpack.c.l.b16 %v1518
    %v1983 = vunpack.c.h.b16 %v1518
    %v1984 = vunpack.c.l.b16 %v1519
    %v1985 = vunpack.c.h.b16 %v1519
    %v1986 = vunpack.c.l.b16 %v1520
    %v1987 = vunpack.c.h.b16 %v1520
    %v1988 = vunpack.c.l.b16 %v1521
    %v1989 = vunpack.c.h.b16 %v1521
    %v1990 = vunpack.c.l.b16 %v1522
    %v1991 = vunpack.c.h.b16 %v1522
    %v1992 = vunpack.c.l.b16 %v1523
    %v1993 = vunpack.c.h.b16 %v1523
    %v1994 = vunpack.c.l.b16 %v1524
    %v1995 = vunpack.c.h.b16 %v1524
    %v1996 = vunpack.c.l.b16 %v1525
    %v1997 = vunpack.c.h.b16 %v1525
    %v1998 = vpack.c.b16 %v1938, %v1934
    %v1999 = vpack.c.b16 %v1939, %v1935
    %v2000 = vpack.c.b16 %v1940, %v1936
    %v2001 = vpack.c.b16 %v1941, %v1937
    %v2002 = vpack.c.b16 %v1946, %v1942
    %v2003 = vpack.c.b16 %v1947, %v1943
    %v2004 = vpack.c.b16 %v1948, %v1944
    %v2005 = vpack.c.b16 %v1949, %v1945
    %v2006 = vpack.c.b16 %v1954, %v1950
    %v2007 = vpack.c.b16 %v1955, %v1951
    %v2008 = vpack.c.b16 %v1956, %v1952
    %v2009 = vpack.c.b16 %v1957, %v1953
    %v2010 = vpack.c.b16 %v1962, %v1958
    %v2011 = vpack.c.b16 %v1963, %v1959
    %v2012 = vpack.c.b16 %v1964, %v1960
    %v2013 = vpack.c.b16 %v1965, %v1961
    %v2014 = vpack.c.b16 %v1970, %v1966
    %v2015 = vpack.c.b16 %v1971, %v1967
    %v2016 = vpack.c.b16 %v1972, %v1968
    %v2017 = vpack.c.b16 %v1973, %v1969
    %v2018 = vpack.c.b16 %v1978, %v1974
    %v2019 = vpack.c.b16 %v1979, %v1975
    %v2020 = vpack.c.b16 %v1980, %v1976
    %v2021 = vpack.c.b16 %v1981, %v1977
    %v2022 = vpack.c.b16 %v1986, %v1982
    %v2023 = vpack.c.b16 %v1987, %v1983
    %v2024 = vpack.c.b16 %v1988, %v1984
    %v2025 = vpack.c.b16 %v1989, %v1985
    %v2026 = vpack.c.b16 %v1994, %v1990
    %v2027 = vpack.c.b16 %v1995, %v1991
    %v2028 = vpack.c.b16 %v1996, %v1992
    %v2029 = vpack.c.b16 %v1997, %v1993
    %2062 = vmatprep.subr.bf16.mxu0 %v1999
    %2063 = vmatpush1.bf16.msra.mxu0 %v1998
    %2064 = vmatprep.subr.bf16.mxu0 %v2003
    %2065 = vmatpush1.bf16.msra.mxu0 %v2002
    %2066 = vmatprep.subr.bf16.mxu0 %v2007
    %2067 = vmatpush1.bf16.msra.mxu0 %v2006
    %2068 = vmatprep.subr.bf16.mxu0 %v2011
    %2069 = vmatpush1.bf16.msra.mxu0 %v2010
    %2070 = vmatprep.subr.bf16.mxu0 %v2015
    %2071 = vmatpush1.bf16.msra.mxu0 %v2014
    %2072 = vmatprep.subr.bf16.mxu0 %v2019
    %2073 = vmatpush1.bf16.msra.mxu0 %v2018
    %2074 = vmatprep.subr.bf16.mxu0 %v2023
    %2075 = vmatpush1.bf16.msra.mxu0 %v2022
    %2076 = vmatprep.subr.bf16.mxu0 %v2027
    %2077 = vmatpush1.bf16.msra.mxu0 %v2026
    %2078 = vmatprep.subr.bf16.mxu0 0
    %2079 = vmatpush1.bf16.msra.mxu0 0
    %2080 = vmatprep.subr.bf16.mxu0 0
    %2081 = vmatpush1.bf16.msra.mxu0 0
    %2082 = vmatprep.subr.bf16.mxu0 0
    %2083 = vmatpush1.bf16.msra.mxu0 0
    %2084 = vmatprep.subr.bf16.mxu0 0
    %2085 = vmatpush1.bf16.msra.mxu0 0
    %2086 = vmatprep.subr.bf16.mxu0 0
    %2087 = vmatpush1.bf16.msra.mxu0 0
    %2088 = vmatprep.subr.bf16.mxu0 0
    %2089 = vmatpush1.bf16.msra.mxu0 0
    %2090 = vmatprep.subr.bf16.mxu0 0
    %2091 = vmatpush1.bf16.msra.mxu0 0
    %2092 = vmatprep.subr.bf16.mxu0 0
    %2093 = vmatpush1.bf16.msra.mxu0 0
    %2094 = vmatprep.mubr.bf16.mxu0 0
    %2095 = vmatmul.mubr.bf16.gmra.mrb[0].mxu0 0
    %v2096 = vpop.f32.mrb[0].mxu0
    %v2097 = vadd.f32 0.0, %v2096
    %v2098 = vpop.f32.mrb[0].mxu0
    %v2099 = vadd.f32 0.0, %v2098
    %v2100 = vpop.f32.mrb[0].mxu0
    %v2101 = vpop.f32.mrb[0].mxu0
    %2102 = vdwg.mxu0
    %2103 = vmatprep.subr.bf16.mxu0 %v2001
    %2104 = vmatpush1.bf16.msra.mxu0 %v2000
    %2105 = vmatprep.subr.bf16.mxu0 %v2005
    %2106 = vmatpush1.bf16.msra.mxu0 %v2004
    %2107 = vmatprep.subr.bf16.mxu0 %v2009
    %2108 = vmatpush1.bf16.msra.mxu0 %v2008
    %2109 = vmatprep.subr.bf16.mxu0 %v2013
    %2110 = vmatpush1.bf16.msra.mxu0 %v2012
    %2111 = vmatprep.subr.bf16.mxu0 %v2017
    %2112 = vmatpush1.bf16.msra.mxu0 %v2016
    %2113 = vmatprep.subr.bf16.mxu0 %v2021
    %2114 = vmatpush1.bf16.msra.mxu0 %v2020
    %2115 = vmatprep.subr.bf16.mxu0 %v2025
    %2116 = vmatpush1.bf16.msra.mxu0 %v2024
    %2117 = vmatprep.subr.bf16.mxu0 %v2029
    %2118 = vmatpush1.bf16.msra.mxu0 %v2028
    %2119 = vmatprep.subr.bf16.mxu0 0
    %2120 = vmatpush1.bf16.msra.mxu0 0
    %2121 = vmatprep.subr.bf16.mxu0 0
    %2122 = vmatpush1.bf16.msra.mxu0 0
    %2123 = vmatprep.subr.bf16.mxu0 0
    %2124 = vmatpush1.bf16.msra.mxu0 0
    %2125 = vmatprep.subr.bf16.mxu0 0
    %2126 = vmatpush1.bf16.msra.mxu0 0
    %2127 = vmatprep.subr.bf16.mxu0 0
    %2128 = vmatpush1.bf16.msra.mxu0 0
    %2129 = vmatprep.subr.bf16.mxu0 0
    %2130 = vmatpush1.bf16.msra.mxu0 0
    %2131 = vmatprep.subr.bf16.mxu0 0
    %2132 = vmatpush1.bf16.msra.mxu0 0
    %2133 = vmatprep.subr.bf16.mxu0 0
    %2134 = vmatpush1.bf16.msra.mxu0 0
    %2135 = vmatprep.mubr.bf16.mxu0 0
    %2136 = vmatmul.mubr.bf16.gmra.mrb[0].mxu0 0
    %v2137 = vpop.f32.mrb[0].mxu0
    %v2138 = vadd.f32 0.0, %v2137
    %v2139 = vpop.f32.mrb[0].mxu0
    %v2140 = vadd.f32 0.0, %v2139
    %v2141 = vpop.f32.mrb[0].mxu0
    %v2142 = vpop.f32.mrb[0].mxu0
    %2143 = vdwg.mxu0
    %v2144 = vadd.f32 %v1898, %v2097
    %v2145 = vadd.f32 %v1899, %v2099
    %v2146 = vadd.f32 %v1900, %v2138
    %v2147 = vadd.f32 %v1901, %v2140
    %v2148 = vxor.u32 %v2144, 2147483648
    %v2149 = vxor.u32 %v2145, 2147483648
    %v2150 = vxor.u32 %v2146, 2147483648
    %v2151 = vmul.f32 %v2148, 1.442695
    %v2152 = vpow.pop %v2151
    %v2153 = vmul.f32 %v2149, 1.442695
    %v2154 = vpow.pop %v2153
    %v2155 = vmul.f32 %v2150, 1.442695
    %v2156 = vpow.pop %v2155
    %v2157 = vadd.f32 %v2152, 1.0
    %v2158 = vadd.f32 %v2154, 1.0
    %v2159 = vadd.f32 %v2156, 1.0
    %v2160 = vrcp.pop %v2157
    %v2161 = vmul.f32 1.0, %v2160
    %v2162 = vrcp.pop %v2158
    %v2163 = vmul.f32 1.0, %v2162
    %v2164 = vrcp.pop %v2159
    %v2165 = vmul.f32 1.0, %v2164
    %v2166 = vtanh.pop %v2147
    %v2167 = vmul.f32 %v2163, 0.0
    %v2168 = vmul.f32 %v2161, %v2166
    %v2169 = vadd.f32 %v2167, %v2168
    %v2170 = vtanh.pop %v2169
    %v2171 = vmul.f32 %v2165, %v2170
    %2172 = vst [vmem:[#allocation3] sm:$0xff] %v2171
    %v2173 = vld [vmem:[#allocation2 + $0x20] sm:$0xff]
    %v2174 = vld [vmem:[#allocation2 + $0x28] sm:$0xff]
    %v2175 = vld [vmem:[#allocation2 + $0x30] sm:$0xff]
    %v2176 = vld [vmem:[#allocation2 + $0x38] sm:$0xff]
    %v2177 = vpack.c.bf16 %v2171, %v2171
    %2178 = vmatprep.subr.bf16.mxu0 %v1999
    %2179 = vmatpush1.bf16.msra.mxu0 %v1998
    %2180 = vmatprep.subr.bf16.mxu0 %v2003
    %2181 = vmatpush1.bf16.msra.mxu0 %v2002
    %2182 = vmatprep.subr.bf16.mxu0 %v2007
    %2183 = vmatpush1.bf16.msra.mxu0 %v2006
    %2184 = vmatprep.subr.bf16.mxu0 %v2011
    %2185 = vmatpush1.bf16.msra.mxu0 %v2010
    %2186 = vmatprep.subr.bf16.mxu0 %v2015
    %2187 = vmatpush1.bf16.msra.mxu0 %v2014
    %2188 = vmatprep.subr.bf16.mxu0 %v2019
    %2189 = vmatpush1.bf16.msra.mxu0 %v2018
    %2190 = vmatprep.subr.bf16.mxu0 %v2023
    %2191 = vmatpush1.bf16.msra.mxu0 %v2022
    %2192 = vmatprep.subr.bf16.mxu0 %v2027
    %2193 = vmatpush1.bf16.msra.mxu0 %v2026
    %2194 = vmatprep.subr.bf16.mxu0 0
    %2195 = vmatpush1.bf16.msra.mxu0 0
    %2196 = vmatprep.subr.bf16.mxu0 0
    %2197 = vmatpush1.bf16.msra.mxu0 0
    %2198 = vmatprep.subr.bf16.mxu0 0
    %2199 = vmatpush1.bf16.msra.mxu0 0
    %2200 = vmatprep.subr.bf16.mxu0 0
    %2201 = vmatpush1.bf16.msra.mxu0 0
    %2202 = vmatprep.subr.bf16.mxu0 0
    %2203 = vmatpush1.bf16.msra.mxu0 0
    %2204 = vmatprep.subr.bf16.mxu0 0
    %2205 = vmatpush1.bf16.msra.mxu0 0
    %2206 = vmatprep.subr.bf16.mxu0 0
    %2207 = vmatpush1.bf16.msra.mxu0 0
    %2208 = vmatprep.subr.bf16.mxu0 0
    %2209 = vmatpush1.bf16.msra.mxu0 0
    %2210 = vmatprep.mubr.bf16.mxu0 0
    %2211 = vmatmul.mubr.bf16.gmra.mrb[0].mxu0 %v2177
    %v2212 = vpop.f32.mrb[0].mxu0
    %v2213 = vadd.f32 0.0, %v2212
    %v2214 = vpop.f32.mrb[0].mxu0
    %v2215 = vadd.f32 0.0, %v2214
    %v2216 = vpop.f32.mrb[0].mxu0
    %v2217 = vpop.f32.mrb[0].mxu0
    %2218 = vdwg.mxu0
    %2219 = vmatprep.subr.bf16.mxu0 %v2001
    %2220 = vmatpush1.bf16.msra.mxu0 %v2000
    %2221 = vmatprep.subr.bf16.mxu0 %v2005
    %2222 = vmatpush1.bf16.msra.mxu0 %v2004
    %2223 = vmatprep.subr.bf16.mxu0 %v2009
    %2224 = vmatpush1.bf16.msra.mxu0 %v2008
    %2225 = vmatprep.subr.bf16.mxu0 %v2013
    %2226 = vmatpush1.bf16.msra.mxu0 %v2012
    %2227 = vmatprep.subr.bf16.mxu0 %v2017
    %2228 = vmatpush1.bf16.msra.mxu0 %v2016
    %2229 = vmatprep.subr.bf16.mxu0 %v2021
    %2230 = vmatpush1.bf16.msra.mxu0 %v2020
    %2231 = vmatprep.subr.bf16.mxu0 %v2025
    %2232 = vmatpush1.bf16.msra.mxu0 %v2024
    %2233 = vmatprep.subr.bf16.mxu0 %v2029
    %2234 = vmatpush1.bf16.msra.mxu0 %v2028
    %2235 = vmatprep.subr.bf16.mxu0 0
    %2236 = vmatpush1.bf16.msra.mxu0 0
    %2237 = vmatprep.subr.bf16.mxu0 0
    %2238 = vmatpush1.bf16.msra.mxu0 0
    %2239 = vmatprep.subr.bf16.mxu0 0
    %2240 = vmatpush1.bf16.msra.mxu0 0
    %2241 = vmatprep.subr.bf16.mxu0 0
    %2242 = vmatpush1.bf16.msra.mxu0 0
    %2243 = vmatprep.subr.bf16.mxu0 0
    %2244 = vmatpush1.bf16.msra.mxu0 0
    %2245 = vmatprep.subr.bf16.mxu0 0
    %2246 = vmatpush1.bf16.msra.mxu0 0
    %2247 = vmatprep.subr.bf16.mxu0 0
    %2248 = vmatpush1.bf16.msra.mxu0 0
    %2249 = vmatprep.subr.bf16.mxu0 0
    %2250 = vmatpush1.bf16.msra.mxu0 0
    %2251 = vmatprep.mubr.bf16.mxu0 0
    %2252 = vmatmul.mubr.bf16.gmra.mrb[0].mxu0 %v2177
    %v2253 = vpop.f32.mrb[0].mxu0
    %v2254 = vadd.f32 0.0, %v2253
    %v2255 = vpop.f32.mrb[0].mxu0
    %v2256 = vadd.f32 0.0, %v2255
    %v2257 = vpop.f32.mrb[0].mxu0
    %v2258 = vpop.f32.mrb[0].mxu0
    %2259 = vdwg.mxu0
    %v2260 = vadd.f32 %v2173, %v2213
    %v2261 = vadd.f32 %v2174, %v2215
    %v2262 = vadd.f32 %v2175, %v2254
    %v2263 = vadd.f32 %v2176, %v2256
    %v2264 = vxor.u32 %v2260, 2147483648
    %v2265 = vxor.u32 %v2261, 2147483648
    %v2266 = vxor.u32 %v2262, 2147483648
    %v2267 = vmul.f32 %v2264, 1.442695
    %v2268 = vpow.pop %v2267
    %v2269 = vmul.f32 %v2265, 1.442695
    %v2270 = vpow.pop %v2269
    %v2271 = vmul.f32 %v2266, 1.442695
    %v2272 = vpow.pop %v2271
    %v2273 = vadd.f32 %v2268, 1.0
    %v2274 = vadd.f32 %v2270, 1.0
    %v2275 = vadd.f32 %v2272, 1.0
    %v2276 = vrcp.pop %v2273
    %v2277 = vmul.f32 1.0, %v2276
    %v2278 = vrcp.pop %v2274
    %v2279 = vmul.f32 1.0, %v2278
    %v2280 = vrcp.pop %v2275
    %v2281 = vmul.f32 1.0, %v2280
    %v2282 = vtanh.pop %v2263
    %v2283 = vmul.f32 %v2279, %v2169
    %v2284 = vmul.f32 %v2277, %v2282
    %v2285 = vadd.f32 %v2283, %v2284
    %v2286 = vtanh.pop %v2285
    %v2287 = vmul.f32 %v2281, %v2286
    %2288 = vst [vmem:[#allocation3 + $0x8] sm:$0xff] %v2287
    %v2289 = vld [vmem:[#allocation2 + $0x40] sm:$0xff]
    %v2290 = vld [vmem:[#allocation2 + $0x48] sm:$0xff]
    %v2291 = vld [vmem:[#allocation2 + $0x50] sm:$0xff]
    %v2292 = vld [vmem:[#allocation2 + $0x58] sm:$0xff]
    %v2293 = vpack.c.bf16 %v2287, %v2287
    %2294 = vmatprep.subr.bf16.mxu0 %v1999
    %2295 = vmatpush1.bf16.msra.mxu0 %v1998
    %2296 = vmatprep.subr.bf16.mxu0 %v2003
    %2297 = vmatpush1.bf16.msra.mxu0 %v2002
    %2298 = vmatprep.subr.bf16.mxu0 %v2007
    %2299 = vmatpush1.bf16.msra.mxu0 %v2006
    %2300 = vmatprep.subr.bf16.mxu0 %v2011
    %2301 = vmatpush1.bf16.msra.mxu0 %v2010
    %2302 = vmatprep.subr.bf16.mxu0 %v2015
    %2303 = vmatpush1.bf16.msra.mxu0 %v2014
    %2304 = vmatprep.subr.bf16.mxu0 %v2019
    %2305 = vmatpush1.bf16.msra.mxu0 %v2018
    %2306 = vmatprep.subr.bf16.mxu0 %v2023
    %2307 = vmatpush1.bf16.msra.mxu0 %v2022
    %2308 = vmatprep.subr.bf16.mxu0 %v2027
    %2309 = vmatpush1.bf16.msra.mxu0 %v2026
    %2310 = vmatprep.subr.bf16.mxu0 0
    %2311 = vmatpush1.bf16.msra.mxu0 0
    %2312 = vmatprep.subr.bf16.mxu0 0
    %2313 = vmatpush1.bf16.msra.mxu0 0
    %2314 = vmatprep.subr.bf16.mxu0 0
    %2315 = vmatpush1.bf16.msra.mxu0 0
    %2316 = vmatprep.subr.bf16.mxu0 0
    %2317 = vmatpush1.bf16.msra.mxu0 0
    %2318 = vmatprep.subr.bf16.mxu0 0
    %2319 = vmatpush1.bf16.msra.mxu0 0
    %2320 = vmatprep.subr.bf16.mxu0 0
    %2321 = vmatpush1.bf16.msra.mxu0 0
    %2322 = vmatprep.subr.bf16.mxu0 0
    %2323 = vmatpush1.bf16.msra.mxu0 0
    %2324 = vmatprep.subr.bf16.mxu0 0
    %2325 = vmatpush1.bf16.msra.mxu0 0
    %2326 = vmatprep.mubr.bf16.mxu0 0
    %2327 = vmatmul.mubr.bf16.gmra.mrb[0].mxu0 %v2293
    %v2328 = vpop.f32.mrb[0].mxu0
    %v2329 = vadd.f32 0.0, %v2328
    %v2330 = vpop.f32.mrb[0].mxu0
    %v2331 = vadd.f32 0.0, %v2330
    %v2332 = vpop.f32.mrb[0].mxu0
    %v2333 = vpop.f32.mrb[0].mxu0
    %2334 = vdwg.mxu0
    %2335 = vmatprep.subr.bf16.mxu0 %v2001
    %2336 = vmatpush1.bf16.msra.mxu0 %v2000
    %2337 = vmatprep.subr.bf16.mxu0 %v2005
    %2338 = vmatpush1.bf16.msra.mxu0 %v2004
    %2339 = vmatprep.subr.bf16.mxu0 %v2009
    %2340 = vmatpush1.bf16.msra.mxu0 %v2008
    %2341 = vmatprep.subr.bf16.mxu0 %v2013
    %2342 = vmatpush1.bf16.msra.mxu0 %v2012
    %2343 = vmatprep.subr.bf16.mxu0 %v2017
    %2344 = vmatpush1.bf16.msra.mxu0 %v2016
    %2345 = vmatprep.subr.bf16.mxu0 %v2021
    %2346 = vmatpush1.bf16.msra.mxu0 %v2020
    %2347 = vmatprep.subr.bf16.mxu0 %v2025
    %2348 = vmatpush1.bf16.msra.mxu0 %v2024
    %2349 = vmatprep.subr.bf16.mxu0 %v2029
    %2350 = vmatpush1.bf16.msra.mxu0 %v2028
    %2351 = vmatprep.subr.bf16.mxu0 0
    %2352 = vmatpush1.bf16.msra.mxu0 0
    %2353 = vmatprep.subr.bf16.mxu0 0
    %2354 = vmatpush1.bf16.msra.mxu0 0
    %2355 = vmatprep.subr.bf16.mxu0 0
    %2356 = vmatpush1.bf16.msra.mxu0 0
    %2357 = vmatprep.subr.bf16.mxu0 0
    %2358 = vmatpush1.bf16.msra.mxu0 0
    %2359 = vmatprep.subr.bf16.mxu0 0
    %2360 = vmatpush1.bf16.msra.mxu0 0
    %2361 = vmatprep.subr.bf16.mxu0 0
    %2362 = vmatpush1.bf16.msra.mxu0 0
    %2363 = vmatprep.subr.bf16.mxu0 0
    %2364 = vmatpush1.bf16.msra.mxu0 0
    %2365 = vmatprep.subr.bf16.mxu0 0
    %2366 = vmatpush1.bf16.msra.mxu0 0
    %2367 = vmatprep.mubr.bf16.mxu0 0
    %2368 = vmatmul.mubr.bf16.gmra.mrb[0].mxu0 %v2293
    %v2369 = vpop.f32.mrb[0].mxu0
    %v2370 = vadd.f32 0.0, %v2369
    %v2371 = vpop.f32.mrb[0].mxu0
    %v2372 = vadd.f32 0.0, %v2371
    %v2373 = vpop.f32.mrb[0].mxu0
    %v2374 = vpop.f32.mrb[0].mxu0
    %2375 = vdwg.mxu0
    %v2376 = vadd.f32 %v2289, %v2329
    %v2377 = vadd.f32 %v2290, %v2331
    %v2378 = vadd.f32 %v2291, %v2370
    %v2379 = vadd.f32 %v2292, %v2372
    %v2380 = vxor.u32 %v2376, 2147483648
    %v2381 = vxor.u32 %v2377, 2147483648
    %v2382 = vxor.u32 %v2378, 2147483648
    %v2383 = vmul.f32 %v2380, 1.442695
    %v2384 = vpow.pop %v2383
    %v2385 = vmul.f32 %v2381, 1.442695
    %v2386 = vpow.pop %v2385
    %v2387 = vmul.f32 %v2382, 1.442695
    %v2388 = vpow.pop %v2387
    %v2389 = vadd.f32 %v2384, 1.0
    %v2390 = vadd.f32 %v2386, 1.0
    %v2391 = vadd.f32 %v2388, 1.0
    %v2392 = vrcp.pop %v2389
    %v2393 = vmul.f32 1.0, %v2392
    %v2394 = vrcp.pop %v2390
    %v2395 = vmul.f32 1.0, %v2394
    %v2396 = vrcp.pop %v2391
    %v2397 = vmul.f32 1.0, %v2396
    %v2398 = vtanh.pop %v2379
    %v2399 = vmul.f32 %v2395, %v2285
    %v2400 = vmul.f32 %v2393, %v2398
    %v2401 = vadd.f32 %v2399, %v2400
    %v2402 = vtanh.pop %v2401
    %v2403 = vmul.f32 %v2397, %v2402
    %2404 = vst [vmem:[#allocation3 + $0x10] sm:$0xff] %v2403
    %v2405 = vld [vmem:[#allocation2 + $0x60] sm:$0xff]
    %v2406 = vld [vmem:[#allocation2 + $0x68] sm:$0xff]
    %v2407 = vld [vmem:[#allocation2 + $0x70] sm:$0xff]
    %v2408 = vld [vmem:[#allocation2 + $0x78] sm:$0xff]
    %v2409 = vpack.c.bf16 %v2403, %v2403
    %2410 = vmatprep.subr.bf16.mxu0 %v1999
    %2411 = vmatpush1.bf16.msra.mxu0 %v1998
    %2412 = vmatprep.subr.bf16.mxu0 %v2003
    %2413 = vmatpush1.bf16.msra.mxu0 %v2002
    %2414 = vmatprep.subr.bf16.mxu0 %v2007
    %2415 = vmatpush1.bf16.msra.mxu0 %v2006
    %2416 = vmatprep.subr.bf16.mxu0 %v2011
    %2417 = vmatpush1.bf16.msra.mxu0 %v2010
    %2418 = vmatprep.subr.bf16.mxu0 %v2015
    %2419 = vmatpush1.bf16.msra.mxu0 %v2014
    %2420 = vmatprep.subr.bf16.mxu0 %v2019
    %2421 = vmatpush1.bf16.msra.mxu0 %v2018
    %2422 = vmatprep.subr.bf16.mxu0 %v2023
    %2423 = vmatpush1.bf16.msra.mxu0 %v2022
    %2424 = vmatprep.subr.bf16.mxu0 %v2027
    %2425 = vmatpush1.bf16.msra.mxu0 %v2026
    %2426 = vmatprep.subr.bf16.mxu0 0
    %2427 = vmatpush1.bf16.msra.mxu0 0
    %2428 = vmatprep.subr.bf16.mxu0 0
    %2429 = vmatpush1.bf16.msra.mxu0 0
    %2430 = vmatprep.subr.bf16.mxu0 0
    %2431 = vmatpush1.bf16.msra.mxu0 0
    %2432 = vmatprep.subr.bf16.mxu0 0
    %2433 = vmatpush1.bf16.msra.mxu0 0
    %2434 = vmatprep.subr.bf16.mxu0 0
    %2435 = vmatpush1.bf16.msra.mxu0 0
    %2436 = vmatprep.subr.bf16.mxu0 0
    %2437 = vmatpush1.bf16.msra.mxu0 0
    %2438 = vmatprep.subr.bf16.mxu0 0
    %2439 = vmatpush1.bf16.msra.mxu0 0
    %2440 = vmatprep.subr.bf16.mxu0 0
    %2441 = vmatpush1.bf16.msra.mxu0 0
    %2442 = vmatprep.mubr.bf16.mxu0 0
    %2443 = vmatmul.mubr.bf16.gmra.mrb[0].mxu0 %v2409
    %v2444 = vpop.f32.mrb[0].mxu0
    %v2445 = vadd.f32 0.0, %v2444
    %v2446 = vpop.f32.mrb[0].mxu0
    %v2447 = vadd.f32 0.0, %v2446
    %v2448 = vpop.f32.mrb[0].mxu0
    %v2449 = vpop.f32.mrb[0].mxu0
    %2450 = vdwg.mxu0
    %2451 = vmatprep.subr.bf16.mxu0 %v2001
    %2452 = vmatpush1.bf16.msra.mxu0 %v2000
    %2453 = vmatprep.subr.bf16.mxu0 %v2005
    %2454 = vmatpush1.bf16.msra.mxu0 %v2004
    %2455 = vmatprep.subr.bf16.mxu0 %v2009
    %2456 = vmatpush1.bf16.msra.mxu0 %v2008
    %2457 = vmatprep.subr.bf16.mxu0 %v2013
    %2458 = vmatpush1.bf16.msra.mxu0 %v2012
    %2459 = vmatprep.subr.bf16.mxu0 %v2017
    %2460 = vmatpush1.bf16.msra.mxu0 %v2016
    %2461 = vmatprep.subr.bf16.mxu0 %v2021
    %2462 = vmatpush1.bf16.msra.mxu0 %v2020
    %2463 = vmatprep.subr.bf16.mxu0 %v2025
    %2464 = vmatpush1.bf16.msra.mxu0 %v2024
    %2465 = vmatprep.subr.bf16.mxu0 %v2029
    %2466 = vmatpush1.bf16.msra.mxu0 %v2028
    %2467 = vmatprep.subr.bf16.mxu0 0
    %2468 = vmatpush1.bf16.msra.mxu0 0
    %2469 = vmatprep.subr.bf16.mxu0 0
    %2470 = vmatpush1.bf16.msra.mxu0 0
    %2471 = vmatprep.subr.bf16.mxu0 0
    %2472 = vmatpush1.bf16.msra.mxu0 0
    %2473 = vmatprep.subr.bf16.mxu0 0
    %2474 = vmatpush1.bf16.msra.mxu0 0
    %2475 = vmatprep.subr.bf16.mxu0 0
    %2476 = vmatpush1.bf16.msra.mxu0 0
    %2477 = vmatprep.subr.bf16.mxu0 0
    %2478 = vmatpush1.bf16.msra.mxu0 0
    %2479 = vmatprep.subr.bf16.mxu0 0
    %2480 = vmatpush1.bf16.msra.mxu0 0
    %2481 = vmatprep.subr.bf16.mxu0 0
    %2482 = vmatpush1.bf16.msra.mxu0 0
    %2483 = vmatprep.mubr.bf16.mxu0 0
    %2484 = vmatmul.mubr.bf16.gmra.mrb[0].mxu0 %v2409
    %v2485 = vpop.f32.mrb[0].mxu0
    %v2486 = vadd.f32 0.0, %v2485
    %v2487 = vpop.f32.mrb[0].mxu0
    %v2488 = vadd.f32 0.0, %v2487
    %v2489 = vpop.f32.mrb[0].mxu0
    %v2490 = vpop.f32.mrb[0].mxu0
    %2491 = vdwg.mxu0
    %v2492 = vadd.f32 %v2405, %v2445
    %v2493 = vadd.f32 %v2406, %v2447
    %v2494 = vadd.f32 %v2407, %v2486
    %v2495 = vadd.f32 %v2408, %v2488
    %v2496 = vxor.u32 %v2492, 2147483648
    %v2497 = vxor.u32 %v2493, 2147483648
    %v2498 = vxor.u32 %v2494, 2147483648
    %v2499 = vmul.f32 %v2496, 1.442695
    %v2500 = vpow.pop %v2499
    %v2501 = vmul.f32 %v2497, 1.442695
    %v2502 = vpow.pop %v2501
    %v2503 = vmul.f32 %v2498, 1.442695
    %v2504 = vpow.pop %v2503
    %v2505 = vadd.f32 %v2500, 1.0
    %v2506 = vadd.f32 %v2502, 1.0
    %v2507 = vadd.f32 %v2504, 1.0
    %v2508 = vrcp.pop %v2505
    %v2509 = vmul.f32 1.0, %v2508
    %v2510 = vrcp.pop %v2506
    %v2511 = vmul.f32 1.0, %v2510
    %v2512 = vrcp.pop %v2507
    %v2513 = vmul.f32 1.0, %v2512
    %v2514 = vtanh.pop %v2495
    %v2515 = vmul.f32 %v2511, %v2401
    %v2516 = vmul.f32 %v2509, %v2514
    %v2517 = vadd.f32 %v2515, %v2516
    %v2518 = vtanh.pop %v2517
    %v2519 = vmul.f32 %v2513, %v2518
    %2520 = vst [vmem:[#allocation3 + $0x18] sm:$0xff] %v2519
    %v2521 = vld [vmem:[#allocation2 + $0x80] sm:$0xff]
    %v2522 = vld [vmem:[#allocation2 + $0x88] sm:$0xff]
    %v2523 = vld [vmem:[#allocation2 + $0x90] sm:$0xff]
    %v2524 = vld [vmem:[#allocation2 + $0x98] sm:$0xff]
    %v2525 = vpack.c.bf16 %v2519, %v2519
    %2526 = vmatprep.subr.bf16.mxu0 %v1999
    %2527 = vmatpush1.bf16.msra.mxu0 %v1998
    %2528 = vmatprep.subr.bf16.mxu0 %v2003
    %2529 = vmatpush1.bf16.msra.mxu0 %v2002
    %2530 = vmatprep.subr.bf16.mxu0 %v2007
    %2531 = vmatpush1.bf16.msra.mxu0 %v2006
    %2532 = vmatprep.subr.bf16.mxu0 %v2011
    %2533 = vmatpush1.bf16.msra.mxu0 %v2010
    %2534 = vmatprep.subr.bf16.mxu0 %v2015
    %2535 = vmatpush1.bf16.msra.mxu0 %v2014
    %2536 = vmatprep.subr.bf16.mxu0 %v2019
    %2537 = vmatpush1.bf16.msra.mxu0 %v2018
    %2538 = vmatprep.subr.bf16.mxu0 %v2023
    %2539 = vmatpush1.bf16.msra.mxu0 %v2022
    %2540 = vmatprep.subr.bf16.mxu0 %v2027
    %2541 = vmatpush1.bf16.msra.mxu0 %v2026
    %2542 = vmatprep.subr.bf16.mxu0 0
    %2543 = vmatpush1.bf16.msra.mxu0 0
    %2544 = vmatprep.subr.bf16.mxu0 0
    %2545 = vmatpush1.bf16.msra.mxu0 0
    %2546 = vmatprep.subr.bf16.mxu0 0
    %2547 = vmatpush1.bf16.msra.mxu0 0
    %2548 = vmatprep.subr.bf16.mxu0 0
    %2549 = vmatpush1.bf16.msra.mxu0 0
    %2550 = vmatprep.subr.bf16.mxu0 0
    %2551 = vmatpush1.bf16.msra.mxu0 0
    %2552 = vmatprep.subr.bf16.mxu0 0
    %2553 = vmatpush1.bf16.msra.mxu0 0
    %2554 = vmatprep.subr.bf16.mxu0 0
    %2555 = vmatpush1.bf16.msra.mxu0 0
    %2556 = vmatprep.subr.bf16.mxu0 0
    %2557 = vmatpush1.bf16.msra.mxu0 0
    %2558 = vmatprep.mubr.bf16.mxu0 0
    %2559 = vmatmul.mubr.bf16.gmra.mrb[0].mxu0 %v2525
    %v2560 = vpop.f32.mrb[0].mxu0
    %v2561 = vadd.f32 0.0, %v2560
    %v2562 = vpop.f32.mrb[0].mxu0
    %v2563 = vadd.f32 0.0, %v2562
    %v2564 = vpop.f32.mrb[0].mxu0
    %v2565 = vpop.f32.mrb[0].mxu0
    %2566 = vdwg.mxu0
    %2567 = vmatprep.subr.bf16.mxu0 %v2001
    %2568 = vmatpush1.bf16.msra.mxu0 %v2000
    %2569 = vmatprep.subr.bf16.mxu0 %v2005
    %2570 = vmatpush1.bf16.msra.mxu0 %v2004
    %2571 = vmatprep.subr.bf16.mxu0 %v2009
    %2572 = vmatpush1.bf16.msra.mxu0 %v2008
    %2573 = vmatprep.subr.bf16.mxu0 %v2013
    %2574 = vmatpush1.bf16.msra.mxu0 %v2012
    %2575 = vmatprep.subr.bf16.mxu0 %v2017
    %2576 = vmatpush1.bf16.msra.mxu0 %v2016
    %2577 = vmatprep.subr.bf16.mxu0 %v2021
    %2578 = vmatpush1.bf16.msra.mxu0 %v2020
    %2579 = vmatprep.subr.bf16.mxu0 %v2025
    %2580 = vmatpush1.bf16.msra.mxu0 %v2024
    %2581 = vmatprep.subr.bf16.mxu0 %v2029
    %2582 = vmatpush1.bf16.msra.mxu0 %v2028
    %2583 = vmatprep.subr.bf16.mxu0 0
    %2584 = vmatpush1.bf16.msra.mxu0 0
    %2585 = vmatprep.subr.bf16.mxu0 0
    %2586 = vmatpush1.bf16.msra.mxu0 0
    %2587 = vmatprep.subr.bf16.mxu0 0
    %2588 = vmatpush1.bf16.msra.mxu0 0
    %2589 = vmatprep.subr.bf16.mxu0 0
    %2590 = vmatpush1.bf16.msra.mxu0 0
    %2591 = vmatprep.subr.bf16.mxu0 0
    %2592 = vmatpush1.bf16.msra.mxu0 0
    %2593 = vmatprep.subr.bf16.mxu0 0
    %2594 = vmatpush1.bf16.msra.mxu0 0
    %2595 = vmatprep.subr.bf16.mxu0 0
    %2596 = vmatpush1.bf16.msra.mxu0 0
    %2597 = vmatprep.subr.bf16.mxu0 0
    %2598 = vmatpush1.bf16.msra.mxu0 0
    %2599 = vmatprep.mubr.bf16.mxu0 0
    %2600 = vmatmul.mubr.bf16.gmra.mrb[0].mxu0 %v2525
    %v2601 = vpop.f32.mrb[0].mxu0
    %v2602 = vadd.f32 0.0, %v2601
    %v2603 = vpop.f32.mrb[0].mxu0
    %v2604 = vadd.f32 0.0, %v2603
    %v2605 = vpop.f32.mrb[0].mxu0
    %v2606 = vpop.f32.mrb[0].mxu0
    %2607 = vdwg.mxu0
    %v2608 = vadd.f32 %v2521, %v2561
    %v2609 = vadd.f32 %v2522, %v2563
    %v2610 = vadd.f32 %v2523, %v2602
    %v2611 = vadd.f32 %v2524, %v2604
    %v2612 = vxor.u32 %v2608, 2147483648
    %v2613 = vxor.u32 %v2609, 2147483648
    %v2614 = vxor.u32 %v2610, 2147483648
    %v2615 = vmul.f32 %v2612, 1.442695
    %v2616 = vpow.pop %v2615
    %v2617 = vmul.f32 %v2613, 1.442695
    %v2618 = vpow.pop %v2617
    %v2619 = vmul.f32 %v2614, 1.442695
    %v2620 = vpow.pop %v2619
    %v2621 = vadd.f32 %v2616, 1.0
    %v2622 = vadd.f32 %v2618, 1.0
    %v2623 = vadd.f32 %v2620, 1.0
    %v2624 = vrcp.pop %v2621
    %v2625 = vmul.f32 1.0, %v2624
    %v2626 = vrcp.pop %v2622
    %v2627 = vmul.f32 1.0, %v2626
    %v2628 = vrcp.pop %v2623
    %v2629 = vmul.f32 1.0, %v2628
    %v2630 = vtanh.pop %v2611
    %v2631 = vmul.f32 %v2627, %v2517
    %v2632 = vmul.f32 %v2625, %v2630
    %v2633 = vadd.f32 %v2631, %v2632
    %v2634 = vtanh.pop %v2633
    %v2635 = vmul.f32 %v2629, %v2634
    %2636 = vst [vmem:[#allocation3 + $0x20] sm:$0xff] %v2635
    %v2637 = vld [vmem:[#allocation2 + $0xa0] sm:$0xff]
    %v2638 = vld [vmem:[#allocation2 + $0xa8] sm:$0xff]
    %v2639 = vld [vmem:[#allocation2 + $0xb0] sm:$0xff]
    %v2640 = vld [vmem:[#allocation2 + $0xb8] sm:$0xff]
    %v2641 = vpack.c.bf16 %v2635, %v2635
    %2642 = vmatprep.subr.bf16.mxu0 %v1999
    %2643 = vmatpush1.bf16.msra.mxu0 %v1998
    %2644 = vmatprep.subr.bf16.mxu0 %v2003
    %2645 = vmatpush1.bf16.msra.mxu0 %v2002
    %2646 = vmatprep.subr.bf16.mxu0 %v2007
    %2647 = vmatpush1.bf16.msra.mxu0 %v2006
    %2648 = vmatprep.subr.bf16.mxu0 %v2011
    %2649 = vmatpush1.bf16.msra.mxu0 %v2010
    %2650 = vmatprep.subr.bf16.mxu0 %v2015
    %2651 = vmatpush1.bf16.msra.mxu0 %v2014
    %2652 = vmatprep.subr.bf16.mxu0 %v2019
    %2653 = vmatpush1.bf16.msra.mxu0 %v2018
    %2654 = vmatprep.subr.bf16.mxu0 %v2023
    %2655 = vmatpush1.bf16.msra.mxu0 %v2022
    %2656 = vmatprep.subr.bf16.mxu0 %v2027
    %2657 = vmatpush1.bf16.msra.mxu0 %v2026
    %2658 = vmatprep.subr.bf16.mxu0 0
    %2659 = vmatpush1.bf16.msra.mxu0 0
    %2660 = vmatprep.subr.bf16.mxu0 0
    %2661 = vmatpush1.bf16.msra.mxu0 0
    %2662 = vmatprep.subr.bf16.mxu0 0
    %2663 = vmatpush1.bf16.msra.mxu0 0
    %2664 = vmatprep.subr.bf16.mxu0 0
    %2665 = vmatpush1.bf16.msra.mxu0 0
    %2666 = vmatprep.subr.bf16.mxu0 0
    %2667 = vmatpush1.bf16.msra.mxu0 0
    %2668 = vmatprep.subr.bf16.mxu0 0
    %2669 = vmatpush1.bf16.msra.mxu0 0
    %2670 = vmatprep.subr.bf16.mxu0 0
    %2671 = vmatpush1.bf16.msra.mxu0 0
    %2672 = vmatprep.subr.bf16.mxu0 0
    %2673 = vmatpush1.bf16.msra.mxu0 0
    %2674 = vmatprep.mubr.bf16.mxu0 0
    %2675 = vmatmul.mubr.bf16.gmra.mrb[0].mxu0 %v2641
    %v2676 = vpop.f32.mrb[0].mxu0
    %v2677 = vadd.f32 0.0, %v2676
    %v2678 = vpop.f32.mrb[0].mxu0
    %v2679 = vadd.f32 0.0, %v2678
    %v2680 = vpop.f32.mrb[0].mxu0
    %v2681 = vpop.f32.mrb[0].mxu0
    %2682 = vdwg.mxu0
    %2683 = vmatprep.subr.bf16.mxu0 %v2001
    %2684 = vmatpush1.bf16.msra.mxu0 %v2000
    %2685 = vmatprep.subr.bf16.mxu0 %v2005
    %2686 = vmatpush1.bf16.msra.mxu0 %v2004
    %2687 = vmatprep.subr.bf16.mxu0 %v2009
    %2688 = vmatpush1.bf16.msra.mxu0 %v2008
    %2689 = vmatprep.subr.bf16.mxu0 %v2013
    %2690 = vmatpush1.bf16.msra.mxu0 %v2012
    %2691 = vmatprep.subr.bf16.mxu0 %v2017
    %2692 = vmatpush1.bf16.msra.mxu0 %v2016
    %2693 = vmatprep.subr.bf16.mxu0 %v2021
    %2694 = vmatpush1.bf16.msra.mxu0 %v2020
    %2695 = vmatprep.subr.bf16.mxu0 %v2025
    %2696 = vmatpush1.bf16.msra.mxu0 %v2024
    %2697 = vmatprep.subr.bf16.mxu0 %v2029
    %2698 = vmatpush1.bf16.msra.mxu0 %v2028
    %2699 = vmatprep.subr.bf16.mxu0 0
    %2700 = vmatpush1.bf16.msra.mxu0 0
    %2701 = vmatprep.subr.bf16.mxu0 0
    %2702 = vmatpush1.bf16.msra.mxu0 0
    %2703 = vmatprep.subr.bf16.mxu0 0
    %2704 = vmatpush1.bf16.msra.mxu0 0
    %2705 = vmatprep.subr.bf16.mxu0 0
    %2706 = vmatpush1.bf16.msra.mxu0 0
    %2707 = vmatprep.subr.bf16.mxu0 0
    %2708 = vmatpush1.bf16.msra.mxu0 0
    %2709 = vmatprep.subr.bf16.mxu0 0
    %2710 = vmatpush1.bf16.msra.mxu0 0
    %2711 = vmatprep.subr.bf16.mxu0 0
    %2712 = vmatpush1.bf16.msra.mxu0 0
    %2713 = vmatprep.subr.bf16.mxu0 0
    %2714 = vmatpush1.bf16.msra.mxu0 0
    %2715 = vmatprep.mubr.bf16.mxu0 0
    %2716 = vmatmul.mubr.bf16.gmra.mrb[0].mxu0 %v2641
    %v2717 = vpop.f32.mrb[0].mxu0
    %v2718 = vadd.f32 0.0, %v2717
    %v2719 = vpop.f32.mrb[0].mxu0
    %v2720 = vadd.f32 0.0, %v2719
    %v2721 = vpop.f32.mrb[0].mxu0
    %v2722 = vpop.f32.mrb[0].mxu0
    %2723 = vdwg.mxu0
    %v2724 = vadd.f32 %v2637, %v2677
    %v2725 = vadd.f32 %v2638, %v2679
    %v2726 = vadd.f32 %v2639, %v2718
    %v2727 = vadd.f32 %v2640, %v2720
    %v2728 = vxor.u32 %v2724, 2147483648
    %v2729 = vxor.u32 %v2725, 2147483648
    %v2730 = vxor.u32 %v2726, 2147483648
    %v2731 = vmul.f32 %v2728, 1.442695
    %v2732 = vpow.pop %v2731
    %v2733 = vmul.f32 %v2729, 1.442695
    %v2734 = vpow.pop %v2733
    %v2735 = vmul.f32 %v2730, 1.442695
    %v2736 = vpow.pop %v2735
    %v2737 = vadd.f32 %v2732, 1.0
    %v2738 = vadd.f32 %v2734, 1.0
    %v2739 = vadd.f32 %v2736, 1.0
    %v2740 = vrcp.pop %v2737
    %v2741 = vmul.f32 1.0, %v2740
    %v2742 = vrcp.pop %v2738
    %v2743 = vmul.f32 1.0, %v2742
    %v2744 = vrcp.pop %v2739
    %v2745 = vmul.f32 1.0, %v2744
    %v2746 = vtanh.pop %v2727
    %v2747 = vmul.f32 %v2743, %v2633
    %v2748 = vmul.f32 %v2741, %v2746
    %v2749 = vadd.f32 %v2747, %v2748
    %v2750 = vtanh.pop %v2749
    %v2751 = vmul.f32 %v2745, %v2750
    %2752 = vst [vmem:[#allocation3 + $0x28] sm:$0xff] %v2751
    %v2753 = vld [vmem:[#allocation2 + $0xc0] sm:$0xff]
    %v2754 = vld [vmem:[#allocation2 + $0xc8] sm:$0xff]
    %v2755 = vld [vmem:[#allocation2 + $0xd0] sm:$0xff]
    %v2756 = vld [vmem:[#allocation2 + $0xd8] sm:$0xff]
    %v2757 = vpack.c.bf16 %v2751, %v2751
    %2758 = vmatprep.subr.bf16.mxu0 %v1999
    %2759 = vmatpush1.bf16.msra.mxu0 %v1998
    %2760 = vmatprep.subr.bf16.mxu0 %v2003
    %2761 = vmatpush1.bf16.msra.mxu0 %v2002
    %2762 = vmatprep.subr.bf16.mxu0 %v2007
    %2763 = vmatpush1.bf16.msra.mxu0 %v2006
    %2764 = vmatprep.subr.bf16.mxu0 %v2011
    %2765 = vmatpush1.bf16.msra.mxu0 %v2010
    %2766 = vmatprep.subr.bf16.mxu0 %v2015
    %2767 = vmatpush1.bf16.msra.mxu0 %v2014
    %2768 = vmatprep.subr.bf16.mxu0 %v2019
    %2769 = vmatpush1.bf16.msra.mxu0 %v2018
    %2770 = vmatprep.subr.bf16.mxu0 %v2023
    %2771 = vmatpush1.bf16.msra.mxu0 %v2022
    %2772 = vmatprep.subr.bf16.mxu0 %v2027
    %2773 = vmatpush1.bf16.msra.mxu0 %v2026
    %2774 = vmatprep.subr.bf16.mxu0 0
    %2775 = vmatpush1.bf16.msra.mxu0 0
    %2776 = vmatprep.subr.bf16.mxu0 0
    %2777 = vmatpush1.bf16.msra.mxu0 0
    %2778 = vmatprep.subr.bf16.mxu0 0
    %2779 = vmatpush1.bf16.msra.mxu0 0
    %2780 = vmatprep.subr.bf16.mxu0 0
    %2781 = vmatpush1.bf16.msra.mxu0 0
    %2782 = vmatprep.subr.bf16.mxu0 0
    %2783 = vmatpush1.bf16.msra.mxu0 0
    %2784 = vmatprep.subr.bf16.mxu0 0
    %2785 = vmatpush1.bf16.msra.mxu0 0
    %2786 = vmatprep.subr.bf16.mxu0 0
    %2787 = vmatpush1.bf16.msra.mxu0 0
    %2788 = vmatprep.subr.bf16.mxu0 0
    %2789 = vmatpush1.bf16.msra.mxu0 0
    %2790 = vmatprep.mubr.bf16.mxu0 0
    %2791 = vmatmul.mubr.bf16.gmra.mrb[0].mxu0 %v2757
    %v2792 = vpop.f32.mrb[0].mxu0
    %v2793 = vadd.f32 0.0, %v2792
    %v2794 = vpop.f32.mrb[0].mxu0
    %v2795 = vadd.f32 0.0, %v2794
    %v2796 = vpop.f32.mrb[0].mxu0
    %v2797 = vpop.f32.mrb[0].mxu0
    %2798 = vdwg.mxu0
    %2799 = vmatprep.subr.bf16.mxu0 %v2001
    %2800 = vmatpush1.bf16.msra.mxu0 %v2000
    %2801 = vmatprep.subr.bf16.mxu0 %v2005
    %2802 = vmatpush1.bf16.msra.mxu0 %v2004
    %2803 = vmatprep.subr.bf16.mxu0 %v2009
    %2804 = vmatpush1.bf16.msra.mxu0 %v2008
    %2805 = vmatprep.subr.bf16.mxu0 %v2013
    %2806 = vmatpush1.bf16.msra.mxu0 %v2012
    %2807 = vmatprep.subr.bf16.mxu0 %v2017
    %2808 = vmatpush1.bf16.msra.mxu0 %v2016
    %2809 = vmatprep.subr.bf16.mxu0 %v2021
    %2810 = vmatpush1.bf16.msra.mxu0 %v2020
    %2811 = vmatprep.subr.bf16.mxu0 %v2025
    %2812 = vmatpush1.bf16.msra.mxu0 %v2024
    %2813 = vmatprep.subr.bf16.mxu0 %v2029
    %2814 = vmatpush1.bf16.msra.mxu0 %v2028
    %2815 = vmatprep.subr.bf16.mxu0 0
    %2816 = vmatpush1.bf16.msra.mxu0 0
    %2817 = vmatprep.subr.bf16.mxu0 0
    %2818 = vmatpush1.bf16.msra.mxu0 0
    %2819 = vmatprep.subr.bf16.mxu0 0
    %2820 = vmatpush1.bf16.msra.mxu0 0
    %2821 = vmatprep.subr.bf16.mxu0 0
    %2822 = vmatpush1.bf16.msra.mxu0 0
    %2823 = vmatprep.subr.bf16.mxu0 0
    %2824 = vmatpush1.bf16.msra.mxu0 0
    %2825 = vmatprep.subr.bf16.mxu0 0
    %2826 = vmatpush1.bf16.msra.mxu0 0
    %2827 = vmatprep.subr.bf16.mxu0 0
    %2828 = vmatpush1.bf16.msra.mxu0 0
    %2829 = vmatprep.subr.bf16.mxu0 0
    %2830 = vmatpush1.bf16.msra.mxu0 0
    %2831 = vmatprep.mubr.bf16.mxu0 0
    %2832 = vmatmul.mubr.bf16.gmra.mrb[0].mxu0 %v2757
    %v2833 = vpop.f32.mrb[0].mxu0
    %v2834 = vadd.f32 0.0, %v2833
    %v2835 = vpop.f32.mrb[0].mxu0
    %v2836 = vadd.f32 0.0, %v2835
    %v2837 = vpop.f32.mrb[0].mxu0
    %v2838 = vpop.f32.mrb[0].mxu0
    %2839 = vdwg.mxu0
    %v2840 = vadd.f32 %v2753, %v2793
    %v2841 = vadd.f32 %v2754, %v2795
    %v2842 = vadd.f32 %v2755, %v2834
    %v2843 = vadd.f32 %v2756, %v2836
    %v2844 = vxor.u32 %v2840, 2147483648
    %v2845 = vxor.u32 %v2841, 2147483648
    %v2846 = vxor.u32 %v2842, 2147483648
    %v2847 = vmul.f32 %v2844, 1.442695
    %v2848 = vpow.pop %v2847
    %v2849 = vmul.f32 %v2845, 1.442695
    %v2850 = vpow.pop %v2849
    %v2851 = vmul.f32 %v2846, 1.442695
    %v2852 = vpow.pop %v2851
    %v2853 = vadd.f32 %v2848, 1.0
    %v2854 = vadd.f32 %v2850, 1.0
    %v2855 = vadd.f32 %v2852, 1.0
    %v2856 = vrcp.pop %v2853
    %v2857 = vmul.f32 1.0, %v2856
    %v2858 = vrcp.pop %v2854
    %v2859 = vmul.f32 1.0, %v2858
    %v2860 = vrcp.pop %v2855
    %v2861 = vmul.f32 1.0, %v2860
    %v2862 = vtanh.pop %v2843
    %v2863 = vmul.f32 %v2859, %v2749
    %v2864 = vmul.f32 %v2857, %v2862
    %v2865 = vadd.f32 %v2863, %v2864
    %v2866 = vtanh.pop %v2865
    %v2867 = vmul.f32 %v2861, %v2866
    %2868 = vst [vmem:[#allocation3 + $0x30] sm:$0xff] %v2867
    %v2869 = vld [vmem:[#allocation2 + $0xe0] sm:$0xff]
    %v2870 = vld [vmem:[#allocation2 + $0xe8] sm:$0xff]
    %v2871 = vld [vmem:[#allocation2 + $0xf0] sm:$0xff]
    %v2872 = vld [vmem:[#allocation2 + $0xf8] sm:$0xff]
    %v2873 = vpack.c.bf16 %v2867, %v2867
    %2874 = vmatprep.subr.bf16.mxu0 %v1999
    %2875 = vmatpush1.bf16.msra.mxu0 %v1998
    %2876 = vmatprep.subr.bf16.mxu0 %v2003
    %2877 = vmatpush1.bf16.msra.mxu0 %v2002
    %2878 = vmatprep.subr.bf16.mxu0 %v2007
    %2879 = vmatpush1.bf16.msra.mxu0 %v2006
    %2880 = vmatprep.subr.bf16.mxu0 %v2011
    %2881 = vmatpush1.bf16.msra.mxu0 %v2010
    %2882 = vmatprep.subr.bf16.mxu0 %v2015
    %2883 = vmatpush1.bf16.msra.mxu0 %v2014
    %2884 = vmatprep.subr.bf16.mxu0 %v2019
    %2885 = vmatpush1.bf16.msra.mxu0 %v2018
    %2886 = vmatprep.subr.bf16.mxu0 %v2023
    %2887 = vmatpush1.bf16.msra.mxu0 %v2022
    %2888 = vmatprep.subr.bf16.mxu0 %v2027
    %2889 = vmatpush1.bf16.msra.mxu0 %v2026
    %2890 = vmatprep.subr.bf16.mxu0 0
    %2891 = vmatpush1.bf16.msra.mxu0 0
    %2892 = vmatprep.subr.bf16.mxu0 0
    %2893 = vmatpush1.bf16.msra.mxu0 0
    %2894 = vmatprep.subr.bf16.mxu0 0
    %2895 = vmatpush1.bf16.msra.mxu0 0
    %2896 = vmatprep.subr.bf16.mxu0 0
    %2897 = vmatpush1.bf16.msra.mxu0 0
    %2898 = vmatprep.subr.bf16.mxu0 0
    %2899 = vmatpush1.bf16.msra.mxu0 0
    %2900 = vmatprep.subr.bf16.mxu0 0
    %2901 = vmatpush1.bf16.msra.mxu0 0
    %2902 = vmatprep.subr.bf16.mxu0 0
    %2903 = vmatpush1.bf16.msra.mxu0 0
    %2904 = vmatprep.subr.bf16.mxu0 0
    %2905 = vmatpush1.bf16.msra.mxu0 0
    %2906 = vmatprep.mubr.bf16.mxu0 0
    %2907 = vmatmul.mubr.bf16.gmra.mrb[0].mxu0 %v2873
    %v2908 = vpop.f32.mrb[0].mxu0
    %v2909 = vadd.f32 0.0, %v2908
    %v2910 = vpop.f32.mrb[0].mxu0
    %v2911 = vadd.f32 0.0, %v2910
    %v2912 = vpop.f32.mrb[0].mxu0
    %v2913 = vpop.f32.mrb[0].mxu0
    %2914 = vdwg.mxu0
    %2915 = vmatprep.subr.bf16.mxu0 %v2001
    %2916 = vmatpush1.bf16.msra.mxu0 %v2000
    %2917 = vmatprep.subr.bf16.mxu0 %v2005
    %2918 = vmatpush1.bf16.msra.mxu0 %v2004
    %2919 = vmatprep.subr.bf16.mxu0 %v2009
    %2920 = vmatpush1.bf16.msra.mxu0 %v2008
    %2921 = vmatprep.subr.bf16.mxu0 %v2013
    %2922 = vmatpush1.bf16.msra.mxu0 %v2012
    %2923 = vmatprep.subr.bf16.mxu0 %v2017
    %2924 = vmatpush1.bf16.msra.mxu0 %v2016
    %2925 = vmatprep.subr.bf16.mxu0 %v2021
    %2926 = vmatpush1.bf16.msra.mxu0 %v2020
    %2927 = vmatprep.subr.bf16.mxu0 %v2025
    %2928 = vmatpush1.bf16.msra.mxu0 %v2024
    %2929 = vmatprep.subr.bf16.mxu0 %v2029
    %2930 = vmatpush1.bf16.msra.mxu0 %v2028
    %2931 = vmatprep.subr.bf16.mxu0 0
    %2932 = vmatpush1.bf16.msra.mxu0 0
    %2933 = vmatprep.subr.bf16.mxu0 0
    %2934 = vmatpush1.bf16.msra.mxu0 0
    %2935 = vmatprep.subr.bf16.mxu0 0
    %2936 = vmatpush1.bf16.msra.mxu0 0
    %2937 = vmatprep.subr.bf16.mxu0 0
    %2938 = vmatpush1.bf16.msra.mxu0 0
    %2939 = vmatprep.subr.bf16.mxu0 0
    %2940 = vmatpush1.bf16.msra.mxu0 0
    %2941 = vmatprep.subr.bf16.mxu0 0
    %2942 = vmatpush1.bf16.msra.mxu0 0
    %2943 = vmatprep.subr.bf16.mxu0 0
    %2944 = vmatpush1.bf16.msra.mxu0 0
    %2945 = vmatprep.subr.bf16.mxu0 0
    %2946 = vmatpush1.bf16.msra.mxu0 0
    %2947 = vmatprep.mubr.bf16.mxu0 0
    %2948 = vmatmul.mubr.bf16.gmra.mrb[0].mxu0 %v2873
    %v2949 = vpop.f32.mrb[0].mxu0
    %v2950 = vadd.f32 0.0, %v2949
    %v2951 = vpop.f32.mrb[0].mxu0
    %v2952 = vadd.f32 0.0, %v2951
    %v2953 = vpop.f32.mrb[0].mxu0
    %v2954 = vpop.f32.mrb[0].mxu0
    %2955 = vdwg.mxu0
    %v2956 = vadd.f32 %v2869, %v2909
    %v2957 = vadd.f32 %v2870, %v2911
    %v2958 = vadd.f32 %v2871, %v2950
    %v2959 = vadd.f32 %v2872, %v2952
    %v2960 = vxor.u32 %v2956, 2147483648
    %v2961 = vxor.u32 %v2957, 2147483648
    %v2962 = vxor.u32 %v2958, 2147483648
    %v2963 = vmul.f32 %v2960, 1.442695
    %v2964 = vpow.pop %v2963
    %v2965 = vmul.f32 %v2961, 1.442695
    %v2966 = vpow.pop %v2965
    %v2967 = vmul.f32 %v2962, 1.442695
    %v2968 = vpow.pop %v2967
    %v2969 = vadd.f32 %v2964, 1.0
    %v2970 = vadd.f32 %v2966, 1.0
    %v2971 = vadd.f32 %v2968, 1.0
    %v2972 = vrcp.pop %v2969
    %v2973 = vmul.f32 1.0, %v2972
    %v2974 = vrcp.pop %v2970
    %v2975 = vmul.f32 1.0, %v2974
    %v2976 = vrcp.pop %v2971
    %v2977 = vmul.f32 1.0, %v2976
    %v2978 = vtanh.pop %v2959
    %v2979 = vmul.f32 %v2975, %v2865
    %v2980 = vmul.f32 %v2973, %v2978
    %v2981 = vadd.f32 %v2979, %v2980
    %v2982 = vtanh.pop %v2981
    %v2983 = vmul.f32 %v2977, %v2982
    %2984 = vst [vmem:[#allocation3 + $0x38] sm:$0xff] %v2983
    %v2985 = vld [vmem:[#allocation3] sm:$0xff]
    %v2986 = vld [vmem:[#allocation3 + $0x8] sm:$0xff]
    %v2987 = vld [vmem:[#allocation3 + $0x10] sm:$0xff]
    %v2988 = vld [vmem:[#allocation3 + $0x18] sm:$0xff]
    %v2989 = vld [vmem:[#allocation3 + $0x20] sm:$0xff]
    %v2990 = vld [vmem:[#allocation3 + $0x28] sm:$0xff]
    %v2991 = vld [vmem:[#allocation3 + $0x30] sm:$0xff]
    %v2992 = vld [vmem:[#allocation3 + $0x38] sm:$0xff]
    %v2993 = vmax.f32 %v2985, 0.0
    %v2994 = vmax.f32 %v2986, 0.0
    %v2995 = vmax.f32 %v2987, 0.0
    %v2996 = vmax.f32 %v2988, 0.0
    %v2997 = vmax.f32 %v2989, 0.0
    %v2998 = vmax.f32 %v2990, 0.0
    %v2999 = vmax.f32 %v2991, 0.0
    %v3000 = vmax.f32 %v2992, 0.0
    %v3001 = vpack.c.bf16 %v2994, %v2993
    %v3002 = vpack.c.bf16 %v2996, %v2995
    %v3003 = vpack.c.bf16 %v2998, %v2997
    %v3004 = vpack.c.bf16 %v3000, %v2999
    %v3005 = vld [vmem:[%s7] sm:$0xf]
    %v3006 = vld [vmem:[%s7 + $0x4] sm:$0xf]
    %v3007 = vld [vmem:[%s7 + $0x8] sm:$0xf]
    %v3008 = vld [vmem:[%s7 + $0xc] sm:$0xf]
    %v3009 = vld [vmem:[%s7 + $0x10] sm:$0xf]
    %v3010 = vld [vmem:[%s7 + $0x14] sm:$0xf]
    %v3011 = vld [vmem:[%s7 + $0x18] sm:$0xf]
    %v3012 = vld [vmem:[%s7 + $0x1c] sm:$0xf]
    %v3013 = vld [vmem:[%s7 + $0x20] sm:$0xf]
    %v3014 = vld [vmem:[%s7 + $0x24] sm:$0xf]
    %v3015 = vld [vmem:[%s7 + $0x28] sm:$0xf]
    %v3016 = vld [vmem:[%s7 + $0x2c] sm:$0xf]
    %v3017 = vld [vmem:[%s7 + $0x30] sm:$0xf]
    %v3018 = vld [vmem:[%s7 + $0x34] sm:$0xf]
    %v3019 = vld [vmem:[%s7 + $0x38] sm:$0xf]
    %v3020 = vld [vmem:[%s7 + $0x3c] sm:$0xf]
    %v3021 = vld [vmem:[%s8] sm:$0x1]
    %v3023 = vlaneseq
    %v3024 = vshrl.u32 %v3023, 7
    %v3025 = vsub.s32 0, %v3024
    %v3026 = vrot.slane %v3021, %v3025
    %v3044 = vunpack.c.l.b16 %v3005
    %v3045 = vunpack.c.l.b16 %v3006
    %v3046 = vunpack.c.l.b16 %v3007
    %v3047 = vunpack.c.l.b16 %v3008
    %v3048 = vunpack.c.l.b16 %v3009
    %v3049 = vunpack.c.l.b16 %v3010
    %v3050 = vunpack.c.l.b16 %v3011
    %v3051 = vunpack.c.l.b16 %v3012
    %v3052 = vunpack.c.l.b16 %v3013
    %v3053 = vunpack.c.l.b16 %v3014
    %v3054 = vunpack.c.l.b16 %v3015
    %v3055 = vunpack.c.l.b16 %v3016
    %v3056 = vunpack.c.l.b16 %v3017
    %v3057 = vunpack.c.l.b16 %v3018
    %v3058 = vunpack.c.l.b16 %v3019
    %v3059 = vunpack.c.l.b16 %v3020
    %v3060 = vpack.c.b16 %v3045, %v3044
    %v3061 = vpack.c.b16 %v3047, %v3046
    %v3062 = vpack.c.b16 %v3049, %v3048
    %v3063 = vpack.c.b16 %v3051, %v3050
    %v3064 = vpack.c.b16 %v3053, %v3052
    %v3065 = vpack.c.b16 %v3055, %v3054
    %v3066 = vpack.c.b16 %v3057, %v3056
    %v3067 = vpack.c.b16 %v3059, %v3058
    %3076 = vmatprep.subr.bf16.mxu0 0
    %3077 = vmatpush1.bf16.msra.mxu0 %v3060
    %3078 = vmatprep.subr.bf16.mxu0 0
    %3079 = vmatpush1.bf16.msra.mxu0 %v3061
    %3080 = vmatprep.subr.bf16.mxu0 0
    %3081 = vmatpush1.bf16.msra.mxu0 %v3062
    %3082 = vmatprep.subr.bf16.mxu0 0
    %3083 = vmatpush1.bf16.msra.mxu0 %v3063
    %3084 = vmatprep.subr.bf16.mxu0 0
    %3085 = vmatpush1.bf16.msra.mxu0 %v3064
    %3086 = vmatprep.subr.bf16.mxu0 0
    %3087 = vmatpush1.bf16.msra.mxu0 %v3065
    %3088 = vmatprep.subr.bf16.mxu0 0
    %3089 = vmatpush1.bf16.msra.mxu0 %v3066
    %3090 = vmatprep.subr.bf16.mxu0 0
    %3091 = vmatpush1.bf16.msra.mxu0 %v3067
    %3092 = vmatprep.subr.bf16.mxu0 0
    %3093 = vmatpush1.bf16.msra.mxu0 0
    %3094 = vmatprep.subr.bf16.mxu0 0
    %3095 = vmatpush1.bf16.msra.mxu0 0
    %3096 = vmatprep.subr.bf16.mxu0 0
    %3097 = vmatpush1.bf16.msra.mxu0 0
    %3098 = vmatprep.subr.bf16.mxu0 0
    %3099 = vmatpush1.bf16.msra.mxu0 0
    %3100 = vmatprep.subr.bf16.mxu0 0
    %3101 = vmatpush1.bf16.msra.mxu0 0
    %3102 = vmatprep.subr.bf16.mxu0 0
    %3103 = vmatpush1.bf16.msra.mxu0 0
    %3104 = vmatprep.subr.bf16.mxu0 0
    %3105 = vmatpush1.bf16.msra.mxu0 0
    %3106 = vmatprep.subr.bf16.mxu0 0
    %3107 = vmatpush1.bf16.msra.mxu0 0
    %3108 = vmatprep.mubr.bf16.mxu0 0
    %3109 = vmatmul.mubr.bf16.gmra.mrb[0].mxu0 %v3001
    %v3110 = vpop.f32.mrb[0].mxu0
    %v3111 = vadd.f32 %v3026, %v3110
    %v3112 = vpop.f32.mrb[0].mxu0
    %v3113 = vpop.f32.mrb[0].mxu0
    %v3114 = vadd.f32 %v3026, %v3113
    %v3115 = vpop.f32.mrb[0].mxu0
    %3116 = vmatprep.mubr.bf16.mxu0 0
    %3117 = vmatmul.mubr.bf16.gmra.mrb[0].mxu0 %v3002
    %v3118 = vpop.f32.mrb[0].mxu0
    %v3119 = vadd.f32 %v3026, %v3118
    %v3120 = vpop.f32.mrb[0].mxu0
    %v3121 = vpop.f32.mrb[0].mxu0
    %v3122 = vadd.f32 %v3026, %v3121
    %v3123 = vpop.f32.mrb[0].mxu0
    %3124 = vmatprep.mubr.bf16.mxu0 0
    %3125 = vmatmul.mubr.bf16.gmra.mrb[0].mxu0 %v3003
    %v3126 = vpop.f32.mrb[0].mxu0
    %v3127 = vadd.f32 %v3026, %v3126
    %v3128 = vpop.f32.mrb[0].mxu0
    %v3129 = vpop.f32.mrb[0].mxu0
    %v3130 = vadd.f32 %v3026, %v3129
    %v3131 = vpop.f32.mrb[0].mxu0
    %3132 = vmatprep.mubr.bf16.mxu0 0
    %3133 = vmatmul.mubr.bf16.gmra.mrb[0].mxu0 %v3004
    %v3134 = vpop.f32.mrb[0].mxu0
    %v3135 = vadd.f32 %v3026, %v3134
    %v3136 = vpop.f32.mrb[0].mxu0
    %v3137 = vpop.f32.mrb[0].mxu0
    %v3138 = vadd.f32 %v3026, %v3137
    %v3139 = vpop.f32.mrb[0].mxu0
    %3140 = vdwg.mxu0
    %v3141 = vmax.f32 %v3111, 0.0
    %v3142 = vmax.f32 %v3114, 0.0
    %v3143 = vmax.f32 %v3119, 0.0
    %v3144 = vmax.f32 %v3122, 0.0
    %v3145 = vmax.f32 %v3127, 0.0
    %v3146 = vmax.f32 %v3130, 0.0
    %v3147 = vmax.f32 %v3135, 0.0
    %v3148 = vmax.f32 %v3138, 0.0
    %v3149 = vpack.c.bf16 %v3142, %v3141
    %v3150 = vpack.c.bf16 %v3144, %v3143
    %v3151 = vpack.c.bf16 %v3146, %v3145
    %v3152 = vpack.c.bf16 %v3148, %v3147
    %v3153 = vld [vmem:[#allocation9] sm:$0xf]
    %v3154 = vld [vmem:[#allocation9 + $0x4] sm:$0xf]
    %v3155 = vld [vmem:[#allocation9 + $0x8] sm:$0xf]
    %v3156 = vld [vmem:[#allocation9 + $0xc] sm:$0xf]
    %v3157 = vld [vmem:[#allocation9 + $0x10] sm:$0xf]
    %v3158 = vld [vmem:[#allocation9 + $0x14] sm:$0xf]
    %v3159 = vld [vmem:[#allocation9 + $0x18] sm:$0xf]
    %v3160 = vld [vmem:[#allocation9 + $0x1c] sm:$0xf]
    %v3161 = vld [vmem:[#allocation9 + $0x20] sm:$0xf]
    %v3162 = vld [vmem:[#allocation9 + $0x24] sm:$0xf]
    %v3163 = vld [vmem:[#allocation9 + $0x28] sm:$0xf]
    %v3164 = vld [vmem:[#allocation9 + $0x2c] sm:$0xf]
    %v3165 = vld [vmem:[#allocation9 + $0x30] sm:$0xf]
    %v3166 = vld [vmem:[#allocation9 + $0x34] sm:$0xf]
    %v3167 = vld [vmem:[#allocation9 + $0x38] sm:$0xf]
    %v3168 = vld [vmem:[#allocation9 + $0x3c] sm:$0xf]
    %v3169 = vld [vmem:[%s10] sm:$0x1]
    %v3171 = vlaneseq
    %v3172 = vshrl.u32 %v3171, 7
    %v3173 = vsub.s32 0, %v3172
    %v3174 = vrot.slane %v3169, %v3173
    %v3192 = vunpack.c.l.b16 %v3153
    %v3193 = vunpack.c.l.b16 %v3154
    %v3194 = vunpack.c.l.b16 %v3155
    %v3195 = vunpack.c.l.b16 %v3156
    %v3196 = vunpack.c.l.b16 %v3157
    %v3197 = vunpack.c.l.b16 %v3158
    %v3198 = vunpack.c.l.b16 %v3159
    %v3199 = vunpack.c.l.b16 %v3160
    %v3200 = vunpack.c.l.b16 %v3161
    %v3201 = vunpack.c.l.b16 %v3162
    %v3202 = vunpack.c.l.b16 %v3163
    %v3203 = vunpack.c.l.b16 %v3164
    %v3204 = vunpack.c.l.b16 %v3165
    %v3205 = vunpack.c.l.b16 %v3166
    %v3206 = vunpack.c.l.b16 %v3167
    %v3207 = vunpack.c.l.b16 %v3168
    %v3208 = vpack.c.b16 %v3193, %v3192
    %v3209 = vpack.c.b16 %v3195, %v3194
    %v3210 = vpack.c.b16 %v3197, %v3196
    %v3211 = vpack.c.b16 %v3199, %v3198
    %v3212 = vpack.c.b16 %v3201, %v3200
    %v3213 = vpack.c.b16 %v3203, %v3202
    %v3214 = vpack.c.b16 %v3205, %v3204
    %v3215 = vpack.c.b16 %v3207, %v3206
    %3224 = vmatprep.subr.bf16.mxu0 0
    %3225 = vmatpush1.bf16.msra.mxu0 %v3208
    %3226 = vmatprep.subr.bf16.mxu0 0
    %3227 = vmatpush1.bf16.msra.mxu0 %v3209
    %3228 = vmatprep.subr.bf16.mxu0 0
    %3229 = vmatpush1.bf16.msra.mxu0 %v3210
    %3230 = vmatprep.subr.bf16.mxu0 0
    %3231 = vmatpush1.bf16.msra.mxu0 %v3211
    %3232 = vmatprep.subr.bf16.mxu0 0
    %3233 = vmatpush1.bf16.msra.mxu0 %v3212
    %3234 = vmatprep.subr.bf16.mxu0 0
    %3235 = vmatpush1.bf16.msra.mxu0 %v3213
    %3236 = vmatprep.subr.bf16.mxu0 0
    %3237 = vmatpush1.bf16.msra.mxu0 %v3214
    %3238 = vmatprep.subr.bf16.mxu0 0
    %3239 = vmatpush1.bf16.msra.mxu0 %v3215
    %3240 = vmatprep.subr.bf16.mxu0 0
    %3241 = vmatpush1.bf16.msra.mxu0 0
    %3242 = vmatprep.subr.bf16.mxu0 0
    %3243 = vmatpush1.bf16.msra.mxu0 0
    %3244 = vmatprep.subr.bf16.mxu0 0
    %3245 = vmatpush1.bf16.msra.mxu0 0
    %3246 = vmatprep.subr.bf16.mxu0 0
    %3247 = vmatpush1.bf16.msra.mxu0 0
    %3248 = vmatprep.subr.bf16.mxu0 0
    %3249 = vmatpush1.bf16.msra.mxu0 0
    %3250 = vmatprep.subr.bf16.mxu0 0
    %3251 = vmatpush1.bf16.msra.mxu0 0
    %3252 = vmatprep.subr.bf16.mxu0 0
    %3253 = vmatpush1.bf16.msra.mxu0 0
    %3254 = vmatprep.subr.bf16.mxu0 0
    %3255 = vmatpush1.bf16.msra.mxu0 0
    %3256 = vmatprep.mubr.bf16.mxu0 0
    %3257 = vmatmul.mubr.bf16.gmra.mrb[0].mxu0 %v3149
    %v3258 = vpop.f32.mrb[0].mxu0
    %v3259 = vadd.f32 %v3174, %v3258
    %v3260 = vpop.f32.mrb[0].mxu0
    %v3261 = vpop.f32.mrb[0].mxu0
    %v3262 = vadd.f32 %v3174, %v3261
    %v3263 = vpop.f32.mrb[0].mxu0
    %3264 = vmatprep.mubr.bf16.mxu0 0
    %3265 = vmatmul.mubr.bf16.gmra.mrb[0].mxu0 %v3150
    %v3266 = vpop.f32.mrb[0].mxu0
    %v3267 = vadd.f32 %v3174, %v3266
    %v3268 = vpop.f32.mrb[0].mxu0
    %v3269 = vpop.f32.mrb[0].mxu0
    %v3270 = vadd.f32 %v3174, %v3269
    %v3271 = vpop.f32.mrb[0].mxu0
    %3272 = vmatprep.mubr.bf16.mxu0 0
    %3273 = vmatmul.mubr.bf16.gmra.mrb[0].mxu0 %v3151
    %v3274 = vpop.f32.mrb[0].mxu0
    %v3275 = vadd.f32 %v3174, %v3274
    %v3276 = vpop.f32.mrb[0].mxu0
    %v3277 = vpop.f32.mrb[0].mxu0
    %v3278 = vadd.f32 %v3174, %v3277
    %v3279 = vpop.f32.mrb[0].mxu0
    %3280 = vmatprep.mubr.bf16.mxu0 0
    %3281 = vmatmul.mubr.bf16.gmra.mrb[0].mxu0 %v3152
    %v3282 = vpop.f32.mrb[0].mxu0
    %v3283 = vadd.f32 %v3174, %v3282
    %v3284 = vpop.f32.mrb[0].mxu0
    %v3285 = vpop.f32.mrb[0].mxu0
    %v3286 = vadd.f32 %v3174, %v3285
    %v3287 = vpop.f32.mrb[0].mxu0
    %3288 = vdwg.mxu0
    %3289 = vst [vmem:[%s11] sm:$0xff] %v3259
    %3290 = vst [vmem:[%s11 + $0x8] sm:$0xff] %v3262
    %3291 = vst [vmem:[%s11 + $0x10] sm:$0xff] %v3267
    %3292 = vst [vmem:[%s11 + $0x18] sm:$0xff] %v3270
    %3293 = vst [vmem:[%s11 + $0x20] sm:$0xff] %v3275
    %3294 = vst [vmem:[%s11 + $0x28] sm:$0xff] %v3278
    %3295 = vst [vmem:[%s11 + $0x30] sm:$0xff] %v3283
    %3296 = vst [vmem:[%s11 + $0x38] sm:$0xff] %v3286
    // Predicated region
    $region62: #{fwd.1} parent=1 // pred_check
      _
    $region63: #{fwd.1} parent=1 // pred_check_branch
      %3298 = sbr.rel (0) target = $region65
    $region64: #{fwd.1} parent=1 // pred_region
      _
    $region65: #{fwd.1} parent=1 // pred_fallthru
      _
    // Predicated region
    $region66: #{fwd.1} parent=1 // pred_check
      _
    $region67: #{fwd.1} parent=1 // pred_check_branch
      %3300 = sbr.rel (0) target = $region69
    $region68: #{fwd.1} parent=1 // pred_region
      _
    $region69: #{fwd.1} parent=1 // pred_fallthru
      _
    %3301 = vsyncpa [#allocation5], 1
    %3302 = vsyncpa [#allocation7], 1
    %3303 = vsyncpa [#allocation10], 1

</llo_original>
